<compile_context>
chip_gen: v5e
topology: v5e:2x2
jax: 0.10.0
libtpu: 0.0.40
codegen_flags: <defaults>
</compile_context>

<pallas_src>
import functools

import jax
import jax.numpy as jnp
from jax.experimental import pallas as pl
from jax.experimental.pallas import tpu as pltpu

_LANE = 128   # channel dims are zero-padded to multiples of the lane width
_PAD = 8      # 8-aligned left offset of the image columns inside the scratch


# --------------------------------------------------------------------------
# helpers
# --------------------------------------------------------------------------
def _round_up(x, m):
    return (x + m - 1) // m * m


def _pick_tile(total, target, multiple=1):
    """Largest divisor of `total` that is <= target and (when possible) a
    multiple of `multiple`."""
    t = max(1, min(target, total))
    for cand in range(t, 0, -1):
        if total % cand == 0 and cand % multiple == 0:
            return cand
    return total  # full extent is always a legal block size


def _tpu_defaults():
    """Generation-aware scoped-VMEM budget and conv row-tile."""
    kind = ""
    try:
        kind = (jax.devices()[0].device_kind or "").lower()
    except Exception:
        pass
    if "v7" in kind:                      # 64 MiB VMEM per TensorCore
        return 40 * 1024 * 1024, 16
    if "v5" in kind or "v6" in kind:      # 128 MiB VMEM
        return 100 * 1024 * 1024, 64
    return 64 * 1024 * 1024, 32


def fold_bn(conv_bias, gamma, beta, mean, var, eps=1e-5):
    scale = gamma / jnp.sqrt(var + eps)
    shift = (conv_bias - mean) * scale + beta
    return scale, shift


def interp_matrix(out_size, in_size):
    """Row-stochastic bilinear interpolation matrix (align_corners=True)."""
    o = jnp.arange(out_size, dtype=jnp.float32)
    if out_size > 1:
        src = o * (in_size - 1) / (out_size - 1)
    else:
        src = jnp.zeros_like(o)
    i0 = jnp.clip(jnp.floor(src).astype(jnp.int32), 0, max(in_size - 2, 0))
    frac = src - i0.astype(jnp.float32)
    rows = jnp.arange(out_size)
    R = jnp.zeros((out_size, in_size), jnp.float32)
    R = R.at[rows, i0].add(1.0 - frac)
    R = R.at[rows, jnp.minimum(i0 + 1, in_size - 1)].add(frac)
    return R


# --------------------------------------------------------------------------
# conv3x3 + folded BN + ReLU (+ optional fused 1x1 conv) kernel
# --------------------------------------------------------------------------
def _conv_tile_compute(top_ref, body_ref, bot_ref, w_ref, scale_ref, shift_ref,
                       o_ref, xp_ref, w3_ref=None, b3_ref=None):
    th, W = o_ref.shape[1], o_ref.shape[2]
    cin = body_ref.shape[3]
    dt = body_ref.dtype
    P = _PAD

    # Assemble the column-padded input rows in VMEM scratch.  The body/halo
    # rows land at sublane offset P (=8), i.e. aligned full-tile stores; only
    # the two 1-column zero borders are (cheap) masked column stores.
    zcol = jnp.zeros((th + 2, 1, cin), dt)
    xp_ref[:, P - 1:P, :] = zcol                     # left zero border
    xp_ref[:, W + P:W + P + 1, :] = zcol             # right zero border
    xp_ref[0:1, P:P + W, :] = top_ref[0]
    xp_ref[1:th + 1, P:P + W, :] = body_ref[0]
    xp_ref[th + 1:th + 2, P:P + W, :] = bot_ref[0]
    xp = xp_ref[...]                                 # (th+2, W+2P, cin)

    cout = w_ref.shape[2]
    acc = jnp.zeros((th, W, cout), jnp.float32)
    # 3x3 conv as 3 MXU contractions with K = 3*cin: the kw taps are folded
    # into the contraction (lane-aligned concat, since cin % 128 == 0); the
    # kh taps are plain leading-dim plane slices.
    for kh in range(3):
        slab = xp[kh:kh + th]
        patch = jnp.concatenate(
            [slab[:, P - 1:P - 1 + W, :],            # kw = 0  (column c-1)
             slab[:, P:P + W, :],                    # kw = 1  (column c)
             slab[:, P + 1:P + 1 + W, :]],           # kw = 2  (column c+1)
            axis=-1)                                 # (th, W, 3*cin)
        acc = acc + jnp.einsum("hwi,io->hwo", patch, w_ref[kh],
                               preferred_element_type=jnp.float32)

    y = jnp.maximum(acc * scale_ref[0] + shift_ref[0], 0.0)  # folded BN + ReLU
    if w3_ref is not None:                                    # fused 1x1 conv
        y = jnp.einsum("hwi,io->hwo", y.astype(jnp.bfloat16), w3_ref[...],
                       preferred_element_type=jnp.float32) + b3_ref[0]
    o_ref[0] = y.astype(o_ref.dtype)


def _conv_kernel_plain(top_ref, body_ref, bot_ref, w_ref, scale_ref, shift_ref,
                       o_ref, xp_ref):
    _conv_tile_compute(top_ref, body_ref, bot_ref, w_ref, scale_ref, shift_ref,
                       o_ref, xp_ref)


def _conv_kernel_fused(top_ref, body_ref, bot_ref, w_ref, scale_ref, shift_ref,
                       w3_ref, b3_ref, o_ref, xp_ref):
    _conv_tile_compute(top_ref, body_ref, bot_ref, w_ref, scale_ref, shift_ref,
                       o_ref, xp_ref, w3_ref, b3_ref)


def conv3x3_bn_relu(x, w, scale, shift, w3=None, b3=None,
                    out_dtype=jnp.bfloat16, tile_h=32,
                    vmem_limit=64 * 1024 * 1024):
    """Row-tiled 3x3 conv (pad=1) + folded BN + ReLU, optional fused 1x1 conv.

    x: (N, H, W, Cx) bf16;  w: (3, 3, Cw, Cout) f32 (HWIO);  scale/shift: (Cout,)
    w3: (Cout, C3) f32 or None;  b3: (C3,) f32 or None.
    Channel dims are zero-padded to multiples of 128 for lane-dense stores and
    full-width MXU matmuls (padded output channels are exactly zero).
    """
    N, H, W, Cx = x.shape
    _, _, Cw, Cout = w.shape
    cin_p = _round_up(max(Cx, Cw), _LANE)
    cout_p = _round_up(Cout, _LANE)

    if Cx < cin_p:
        x = jnp.pad(x, ((0, 0), (0, 0), (0, 0), (0, cin_p - Cx)))
    w = jnp.pad(w, ((0, 0), (0, 0), (0, cin_p - Cw), (0, cout_p - Cout)))
    scale = jnp.pad(scale, (0, cout_p - Cout)).astype(jnp.float32).reshape(1, -1)
    shift = jnp.pad(shift, (0, cout_p - Cout)).astype(jnp.float32).reshape(1, -1)
    # fold kw into the contraction dim: (3, 3*cin_p, cout_p), kw-major rows
    wk = w.reshape(3, 3 * cin_p, cout_p).astype(jnp.bfloat16)

    th = _pick_tile(H, tile_h)
    T = H // th
    dt = x.dtype

    # 1-row top/bottom halos per row tile (zeros at the image border)
    zrow = jnp.zeros((N, 1, W, cin_p), dt)
    xtop = jnp.concatenate([zrow, x[:, th - 1:H - 1:th]], axis=1)  # (N,T,W,Cp)
    xbot = jnp.concatenate([x[:, th:H:th], zrow], axis=1)          # (N,T,W,Cp)

    fuse = w3 is not None
    if fuse:
        Cin3, C3 = w3.shape
        c3_p = _round_up(C3, _LANE)
        w3p = jnp.pad(w3, ((0, cout_p - Cin3), (0, c3_p - C3))).astype(jnp.bfloat16)
        b3p = jnp.pad(b3, (0, c3_p - C3)).astype(jnp.float32).reshape(1, -1)
        c_out = c3_p
    else:
        c_out = cout_p

    in_specs = [
        pl.BlockSpec((1, 1, W, cin_p), lambda n, i: (n, i, 0, 0)),     # top halo
        pl.BlockSpec((1, th, W, cin_p), lambda n, i: (n, i, 0, 0)),    # body rows
        pl.BlockSpec((1, 1, W, cin_p), lambda n, i: (n, i, 0, 0)),     # bottom halo
        pl.BlockSpec((3, 3 * cin_p, cout_p), lambda n, i: (0, 0, 0)),  # weights
        pl.BlockSpec((1, cout_p), lambda n, i: (0, 0)),                # BN scale
        pl.BlockSpec((1, cout_p), lambda n, i: (0, 0)),                # BN shift
    ]
    args = [xtop, x, xbot, wk, scale, shift]
    if fuse:
        in_specs += [pl.BlockSpec((cout_p, c_out), lambda n, i: (0, 0)),
                     pl.BlockSpec((1, c_out), lambda n, i: (0, 0))]
        args += [w3p, b3p]

    return pl.pallas_call(
        _conv_kernel_fused if fuse else _conv_kernel_plain,
        out_shape=jax.ShapeDtypeStruct((N, H, W, c_out), out_dtype),
        grid=(N, T),
        in_specs=in_specs,
        out_specs=pl.BlockSpec((1, th, W, c_out), lambda n, i: (n, i, 0, 0)),
        scratch_shapes=[pltpu.VMEM((th + 2, W + 2 * _PAD, cin_p), dt)],
        compiler_params=pltpu.CompilerParams(
            dimension_semantics=("parallel", "parallel"),
            vmem_limit_bytes=vmem_limit),
    )(*args)


# --------------------------------------------------------------------------
# bilinear upsample (align_corners=True) -> NCHW output, lane-dense on Wo
# --------------------------------------------------------------------------
def _upsample_kernel(x_ref, rh_ref, rwt_ref, o_ref, rows_ref):
    """x_ref: (1, tc, H, W) bf16; rh_ref: (tho, H) bf16; rwt_ref: (W, Wo) bf16;
    o_ref: (1, tc, tho, Wo) f32; rows_ref: (tc*tho, W) bf16 scratch."""
    tc = x_ref.shape[1]
    tho = rh_ref.shape[0]
    # stage 1 (H interpolation): tc small matmuls, results parked in scratch
    for c in range(tc):
        r = jnp.dot(rh_ref[...], x_ref[0, c], preferred_element_type=jnp.float32)
        rows_ref[c * tho:(c + 1) * tho, :] = r.astype(rows_ref.dtype)
    # stage 2 (W interpolation): one big lane-dense matmul over all channels
    big = jnp.dot(rows_ref[...], rwt_ref[...],
                  preferred_element_type=jnp.float32)   # (tc*tho, Wo)
    for c in range(tc):
        o_ref[0, c] = big[c * tho:(c + 1) * tho, :]


def bilinear_upsample_nchw(x_nchw, rh, rwt, tile_ho=128, tile_c=8,
                           vmem_limit=64 * 1024 * 1024):
    N, C, H, W = x_nchw.shape
    Ho, Wo = rh.shape[0], rwt.shape[1]
    tho = _pick_tile(Ho, tile_ho, multiple=8)
    tc = _pick_tile(C, tile_c)
    return pl.pallas_call(
        _upsample_kernel,
        out_shape=jax.ShapeDtypeStruct((N, C, Ho, Wo), jnp.float32),
        grid=(N, C // tc, Ho // tho),
        in_specs=[
            pl.BlockSpec((1, tc, H, W), lambda n, ci, hi: (n, ci, 0, 0)),
            pl.BlockSpec((tho, H), lambda n, ci, hi: (hi, 0)),
            pl.BlockSpec((W, Wo), lambda n, ci, hi: (0, 0)),
        ],
        out_specs=pl.BlockSpec((1, tc, tho, Wo),
                               lambda n, ci, hi: (n, ci, hi, 0)),
        scratch_shapes=[pltpu.VMEM((tc * tho, W), jnp.bfloat16)],
        compiler_params=pltpu.CompilerParams(
            dimension_semantics=("parallel", "parallel", "parallel"),
            vmem_limit_bytes=vmem_limit),
    )(x_nchw, rh, rwt)


# --------------------------------------------------------------------------
# full decoder forward (Pallas path)
# --------------------------------------------------------------------------
def decoder_forward(x_nchw, params, output_size,
                    tile_h=None, tile_ho=128, tile_c=8):
    vmem_limit, default_th = _tpu_defaults()
    if tile_h is None:
        tile_h = default_th

    # NCHW -> NHWC, bf16 activations (f32 MXU accumulation inside the kernels)
    x = jnp.transpose(x_nchw, (0, 2, 3, 1)).astype(jnp.bfloat16)
    H, W = x.shape[1], x.shape[2]

    s1, t1 = fold_bn(params["b1"], params["g1"], params["be1"],
                     params["m1"], params["v1"])
    s2, t2 = fold_bn(params["b2"], params["g2"], params["be2"],
                     params["m2"], params["v2"])

    x = conv3x3_bn_relu(x, params["w1"], s1, t1,
                        out_dtype=jnp.bfloat16, tile_h=tile_h,
                        vmem_limit=vmem_limit)
    # second conv3x3 + BN + ReLU with the 1x1 conv fused into its epilogue;
    # output stays bf16 so the memory-bound upsample reads half the bytes.
    x = conv3x3_bn_relu(x, params["w2"], s2, t2,
                        w3=params["w3"], b3=params["b3"],
                        out_dtype=jnp.bfloat16, tile_h=tile_h,
                        vmem_limit=vmem_limit)

    C3 = params["w3"].shape[-1]
    x = x[..., :C3]                        # drop the lane-padding channels
    x = jnp.transpose(x, (0, 3, 1, 2))     # small pre-upsample NCHW tensor

    rh = interp_matrix(output_size[0], H).astype(jnp.bfloat16)
    rwt = interp_matrix(output_size[1], W).T.astype(jnp.bfloat16)
    return bilinear_upsample_nchw(x, rh, rwt, tile_ho=tile_ho, tile_c=tile_c,
                                  vmem_limit=vmem_limit)


# --------------------------------------------------------------------------
# pure-JAX reference (mirrors the bf16 quantization points of the Pallas path)
# --------------------------------------------------------------------------
def decoder_reference(x_nchw, params, output_size):
    x = jnp.transpose(x_nchw, (0, 2, 3, 1)).astype(jnp.bfloat16)
    dn = ("NHWC", "HWIO", "NHWC")
    s1, t1 = fold_bn(params["b1"], params["g1"], params["be1"],
                     params["m1"], params["v1"])
    s2, t2 = fold_bn(params["b2"], params["g2"], params["be2"],
                     params["m2"], params["v2"])
    w1 = params["w1"].astype(jnp.bfloat16)
    w2 = params["w2"].astype(jnp.bfloat16)
    w3 = params["w3"].astype(jnp.bfloat16)

    y = jax.lax.conv_general_dilated(x, w1, (1, 1), "SAME",
                                     dimension_numbers=dn,
                                     preferred_element_type=jnp.float32)
    a = jnp.maximum(y * s1 + t1, 0.0).astype(jnp.bfloat16)
    y = jax.lax.conv_general_dilated(a, w2, (1, 1), "SAME",
                                     dimension_numbers=dn,
                                     preferred_element_type=jnp.float32)
    a = jnp.maximum(y * s2 + t2, 0.0).astype(jnp.bfloat16)
    logits = (jnp.einsum("nhwi,io->nhwo", a, w3,
                         preferred_element_type=jnp.float32)
              + params["b3"]).astype(jnp.bfloat16)

    lg = jnp.transpose(logits, (0, 3, 1, 2))                        # NCHW bf16
    rh = interp_matrix(output_size[0], lg.shape[2]).astype(jnp.bfloat16)
    rwt = interp_matrix(output_size[1], lg.shape[3]).T.astype(jnp.bfloat16)
    t = jnp.einsum("oh,nchw->ncow", rh, lg,
                   preferred_element_type=jnp.float32).astype(jnp.bfloat16)
    return jnp.einsum("ncow,wp->ncop", t, rwt,
                      preferred_element_type=jnp.float32)


# --------------------------------------------------------------------------
if __name__ == "__main__":
    key = jax.random.PRNGKey(0)
    N, Cin, H, W = 2, 4, 16, 16
    Cout = 8
    output_size = (32, 32)   # small stand-in for (1024, 1024)

    ks = jax.random.split(key, 12)
    params = {
        # conv1: 3x3, Cin->Cout (HWIO layout)
        "w1": 0.1 * jax.random.normal(ks[0], (3, 3, Cin, Cout), jnp.float32),
        "b1": 0.05 * jax.random.normal(ks[1], (Cout,), jnp.float32),
        "g1": 1.0 + 0.1 * jax.random.normal(ks[2], (Cout,), jnp.float32),
        "be1": 0.1 * jax.random.normal(ks[3], (Cout,), jnp.float32),
        "m1": 0.05 * jax.random.normal(ks[4], (Cout,), jnp.float32),
        "v1": 1.0 + 0.1 * jnp.abs(jax.random.normal(ks[5], (Cout,), jnp.float32)),
        # conv2: 3x3, Cout->Cout
        "w2": 0.1 * jax.random.normal(ks[6], (3, 3, Cout, Cout), jnp.float32),
        "b2": 0.05 * jax.random.normal(ks[7], (Cout,), jnp.float32),
        "g2": 1.0 + 0.1 * jax.random.normal(ks[8], (Cout,), jnp.float32),
        "be2": 0.1 * jax.random.normal(ks[9], (Cout,), jnp.float32),
        "m2": 0.05 * jax.random.normal(ks[10], (Cout,), jnp.float32),
        "v2": 1.0 + 0.1 * jnp.abs(jax.random.normal(ks[11], (Cout,), jnp.float32)),
        # conv3: 1x1, Cout->Cout (stored as (in, out))
        "w3": 0.1 * jax.random.normal(jax.random.fold_in(key, 100),
                                      (Cout, Cout), jnp.float32),
        "b3": 0.05 * jax.random.normal(jax.random.fold_in(key, 101),
                                       (Cout,), jnp.float32),
    }

    x = jax.random.normal(jax.random.fold_in(key, 200),
                          (N, Cin, H, W), jnp.float32)

    # small tiles so the row-halo / channel / Ho tiling paths are exercised
    fwd = jax.jit(functools.partial(decoder_forward, output_size=output_size,
                                    tile_h=8, tile_ho=16, tile_c=4))
    out = jax.block_until_ready(fwd(x, params))

    ref = jax.block_until_ready(decoder_reference(x, params, output_size))
    assert out.shape == (N, Cout, output_size[0], output_size[1])
    err = float(jnp.max(jnp.abs(out - ref)))
    assert err < 5e-3, f"max abs error {err}"

    print("KERNEL_OK")
</pallas_src>

<mosaic_0001>
module attributes {stable_mosaic.version = 11 : i64} {
  func.func @_conv_kernel_plain(%arg0: i32, %arg1: i32, %arg2: memref<1x1x16x128xbf16, #tpu.memory_space<vmem>>, %arg3: memref<1x8x16x128xbf16, #tpu.memory_space<vmem>>, %arg4: memref<1x1x16x128xbf16, #tpu.memory_space<vmem>>, %arg5: memref<3x384x128xbf16, #tpu.memory_space<vmem>>, %arg6: memref<1x128xf32, #tpu.memory_space<vmem>>, %arg7: memref<1x128xf32, #tpu.memory_space<vmem>>, %arg8: memref<1x8x16x128xbf16, #tpu.memory_space<vmem>>, %arg9: memref<10x32x128xbf16, #tpu.memory_space<vmem>>) attributes {dimension_semantics = [#tpu.dimension_semantics<parallel>, #tpu.dimension_semantics<parallel>], iteration_bounds = array<i64: 2, 2>, scalar_prefetch = 0 : i64, scratch_operands = 1 : i64, tpu.core_type = #tpu.core_type<tc>, window_params = [{transform_indices = @transform_0, window_bounds = array<i64: 1, 1, 16, 128>}, {transform_indices = @transform_1, window_bounds = array<i64: 1, 8, 16, 128>}, {transform_indices = @transform_2, window_bounds = array<i64: 1, 1, 16, 128>}, {pipeline_mode = #tpu.pipeline_mode<synchronous>, transform_indices = @transform_3, window_bounds = array<i64: 3, 384, 128>}, {pipeline_mode = #tpu.pipeline_mode<synchronous>, transform_indices = @transform_4, window_bounds = array<i64: 1, 128>}, {pipeline_mode = #tpu.pipeline_mode<synchronous>, transform_indices = @transform_5, window_bounds = array<i64: 1, 128>}, {transform_indices = @transform_6, window_bounds = array<i64: 1, 8, 16, 128>}]} {
    %cst = arith.constant 0.000000e+00 : bf16
    %0 = vector.broadcast %cst : bf16 to vector<10x1x128xbf16>
    %c0 = arith.constant 0 : index
    %c7 = arith.constant 7 : index
    %c0_0 = arith.constant 0 : index
    %1 = vector.load %arg9[%c0, %c7, %c0_0] : memref<10x32x128xbf16, #tpu.memory_space<vmem>>, vector<10x1x128xbf16>
    tpu.vector_store %arg9[%c0, %c7, %c0_0], %0 {strides = array<i32>} : memref<10x32x128xbf16, #tpu.memory_space<vmem>>, vector<10x1x128xbf16>,
    %c0_1 = arith.constant 0 : index
    %c24 = arith.constant 24 : index
    %c0_2 = arith.constant 0 : index
    %2 = vector.load %arg9[%c0_1, %c24, %c0_2] : memref<10x32x128xbf16, #tpu.memory_space<vmem>>, vector<10x1x128xbf16>
    tpu.vector_store %arg9[%c0_1, %c24, %c0_2], %0 {strides = array<i32>} : memref<10x32x128xbf16, #tpu.memory_space<vmem>>, vector<10x1x128xbf16>,
    %c0_3 = arith.constant 0 : index
    %c0_4 = arith.constant 0 : index
    %c0_5 = arith.constant 0 : index
    %c0_6 = arith.constant 0 : index
    %3 = vector.load %arg2[%c0_3, %c0_4, %c0_5, %c0_6] : memref<1x1x16x128xbf16, #tpu.memory_space<vmem>>, vector<1x1x16x128xbf16>
    %4 = vector.shape_cast %3 : vector<1x1x16x128xbf16> to vector<1x16x128xbf16>
    %c0_7 = arith.constant 0 : index
    %c8 = arith.constant 8 : index
    %c0_8 = arith.constant 0 : index
    %5 = vector.load %arg9[%c0_7, %c8, %c0_8] : memref<10x32x128xbf16, #tpu.memory_space<vmem>>, vector<1x16x128xbf16>
    tpu.vector_store %arg9[%c0_7, %c8, %c0_8], %4 {strides = array<i32>} : memref<10x32x128xbf16, #tpu.memory_space<vmem>>, vector<1x16x128xbf16>,
    %c0_9 = arith.constant 0 : index
    %c0_10 = arith.constant 0 : index
    %c0_11 = arith.constant 0 : index
    %c0_12 = arith.constant 0 : index
    %6 = vector.load %arg3[%c0_9, %c0_10, %c0_11, %c0_12] : memref<1x8x16x128xbf16, #tpu.memory_space<vmem>>, vector<1x8x16x128xbf16>
    %7 = vector.shape_cast %6 : vector<1x8x16x128xbf16> to vector<8x16x128xbf16>
    %c1 = arith.constant 1 : index
    %c8_13 = arith.constant 8 : index
    %c0_14 = arith.constant 0 : index
    %8 = vector.load %arg9[%c1, %c8_13, %c0_14] : memref<10x32x128xbf16, #tpu.memory_space<vmem>>, vector<8x16x128xbf16>
    tpu.vector_store %arg9[%c1, %c8_13, %c0_14], %7 {strides = array<i32>} : memref<10x32x128xbf16, #tpu.memory_space<vmem>>, vector<8x16x128xbf16>,
    %c0_15 = arith.constant 0 : index
    %c0_16 = arith.constant 0 : index
    %c0_17 = arith.constant 0 : index
    %c0_18 = arith.constant 0 : index
    %9 = vector.load %arg4[%c0_15, %c0_16, %c0_17, %c0_18] : memref<1x1x16x128xbf16, #tpu.memory_space<vmem>>, vector<1x1x16x128xbf16>
    %10 = vector.shape_cast %9 : vector<1x1x16x128xbf16> to vector<1x16x128xbf16>
    %c9 = arith.constant 9 : index
    %c8_19 = arith.constant 8 : index
    %c0_20 = arith.constant 0 : index
    %11 = vector.load %arg9[%c9, %c8_19, %c0_20] : memref<10x32x128xbf16, #tpu.memory_space<vmem>>, vector<1x16x128xbf16>
    tpu.vector_store %arg9[%c9, %c8_19, %c0_20], %10 {strides = array<i32>} : memref<10x32x128xbf16, #tpu.memory_space<vmem>>, vector<1x16x128xbf16>,
    %c0_21 = arith.constant 0 : index
    %c0_22 = arith.constant 0 : index
    %c0_23 = arith.constant 0 : index
    %12 = vector.load %arg9[%c0_21, %c0_22, %c0_23] : memref<10x32x128xbf16, #tpu.memory_space<vmem>>, vector<10x32x128xbf16>
    %cst_24 = arith.constant 0.000000e+00 : f32
    %13 = vector.broadcast %cst_24 : f32 to vector<8x16x128xf32>
    %14 = vector.extract_strided_slice %12 {offsets = [0, 0, 0], sizes = [8, 32, 128], strides = [1, 1, 1]} : vector<10x32x128xbf16> to vector<8x32x128xbf16>
    %15 = vector.extract_strided_slice %14 {offsets = [0, 7, 0], sizes = [8, 16, 128], strides = [1, 1, 1]} : vector<8x32x128xbf16> to vector<8x16x128xbf16>
    %16 = vector.extract_strided_slice %14 {offsets = [0, 8, 0], sizes = [8, 16, 128], strides = [1, 1, 1]} : vector<8x32x128xbf16> to vector<8x16x128xbf16>
    %17 = vector.extract_strided_slice %14 {offsets = [0, 9, 0], sizes = [8, 16, 128], strides = [1, 1, 1]} : vector<8x32x128xbf16> to vector<8x16x128xbf16>
    %18 = tpu.concatenate %15, %16, %17 in 2 : vector<8x16x128xbf16>, vector<8x16x128xbf16>, vector<8x16x128xbf16> -> vector<8x16x384xbf16>
    %c0_25 = arith.constant 0 : index
    %c0_26 = arith.constant 0 : index
    %c0_27 = arith.constant 0 : index
    %19 = vector.load %arg5[%c0_25, %c0_26, %c0_27] : memref<3x384x128xbf16, #tpu.memory_space<vmem>>, vector<1x384x128xbf16>
    %20 = vector.shape_cast %19 : vector<1x384x128xbf16> to vector<384x128xbf16>
    "tpu.trace_start"() <{level = 10 : i32, message = "hwi,io->hwo"}> : () -> ()
    %cst_28 = arith.constant dense<0.000000e+00> : vector<8x16x128xf32>
    %21 = tpu.matmul %18, %20, %cst_28 {dimension_numbers = #tpu.dot_dimension_numbers<[2], [0], [0, 1], [1], [0, 0, 0, 1, 1, 1], [], []>} : vector<8x16x384xbf16>, vector<384x128xbf16>, vector<8x16x128xf32> -> vector<8x16x128xf32>
    "tpu.trace_stop"() : () -> ()
    %22 = arith.addf %13, %21 : vector<8x16x128xf32>
    %23 = vector.extract_strided_slice %12 {offsets = [1, 0, 0], sizes = [8, 32, 128], strides = [1, 1, 1]} : vector<10x32x128xbf16> to vector<8x32x128xbf16>
    %24 = vector.extract_strided_slice %23 {offsets = [0, 7, 0], sizes = [8, 16, 128], strides = [1, 1, 1]} : vector<8x32x128xbf16> to vector<8x16x128xbf16>
    %25 = vector.extract_strided_slice %23 {offsets = [0, 8, 0], sizes = [8, 16, 128], strides = [1, 1, 1]} : vector<8x32x128xbf16> to vector<8x16x128xbf16>
    %26 = vector.extract_strided_slice %23 {offsets = [0, 9, 0], sizes = [8, 16, 128], strides = [1, 1, 1]} : vector<8x32x128xbf16> to vector<8x16x128xbf16>
    %27 = tpu.concatenate %24, %25, %26 in 2 : vector<8x16x128xbf16>, vector<8x16x128xbf16>, vector<8x16x128xbf16> -> vector<8x16x384xbf16>
    %c1_29 = arith.constant 1 : index
    %c0_30 = arith.constant 0 : index
    %c0_31 = arith.constant 0 : index
    %28 = vector.load %arg5[%c1_29, %c0_30, %c0_31] : memref<3x384x128xbf16, #tpu.memory_space<vmem>>, vector<1x384x128xbf16>
    %29 = vector.shape_cast %28 : vector<1x384x128xbf16> to vector<384x128xbf16>
    "tpu.trace_start"() <{level = 10 : i32, message = "hwi,io->hwo"}> : () -> ()
    %cst_32 = arith.constant dense<0.000000e+00> : vector<8x16x128xf32>
    %30 = tpu.matmul %27, %29, %cst_32 {dimension_numbers = #tpu.dot_dimension_numbers<[2], [0], [0, 1], [1], [0, 0, 0, 1, 1, 1], [], []>} : vector<8x16x384xbf16>, vector<384x128xbf16>, vector<8x16x128xf32> -> vector<8x16x128xf32>
    "tpu.trace_stop"() : () -> ()
    %31 = arith.addf %22, %30 : vector<8x16x128xf32>
    %32 = vector.extract_strided_slice %12 {offsets = [2, 0, 0], sizes = [8, 32, 128], strides = [1, 1, 1]} : vector<10x32x128xbf16> to vector<8x32x128xbf16>
    %33 = vector.extract_strided_slice %32 {offsets = [0, 7, 0], sizes = [8, 16, 128], strides = [1, 1, 1]} : vector<8x32x128xbf16> to vector<8x16x128xbf16>
    %34 = vector.extract_strided_slice %32 {offsets = [0, 8, 0], sizes = [8, 16, 128], strides = [1, 1, 1]} : vector<8x32x128xbf16> to vector<8x16x128xbf16>
    %35 = vector.extract_strided_slice %32 {offsets = [0, 9, 0], sizes = [8, 16, 128], strides = [1, 1, 1]} : vector<8x32x128xbf16> to vector<8x16x128xbf16>
    %36 = tpu.concatenate %33, %34, %35 in 2 : vector<8x16x128xbf16>, vector<8x16x128xbf16>, vector<8x16x128xbf16> -> vector<8x16x384xbf16>
    %c2 = arith.constant 2 : index
    %c0_33 = arith.constant 0 : index
    %c0_34 = arith.constant 0 : index
    %37 = vector.load %arg5[%c2, %c0_33, %c0_34] : memref<3x384x128xbf16, #tpu.memory_space<vmem>>, vector<1x384x128xbf16>
    %38 = vector.shape_cast %37 : vector<1x384x128xbf16> to vector<384x128xbf16>
    "tpu.trace_start"() <{level = 10 : i32, message = "hwi,io->hwo"}> : () -> ()
    %cst_35 = arith.constant dense<0.000000e+00> : vector<8x16x128xf32>
    %39 = tpu.matmul %36, %38, %cst_35 {dimension_numbers = #tpu.dot_dimension_numbers<[2], [0], [0, 1], [1], [0, 0, 0, 1, 1, 1], [], []>} : vector<8x16x384xbf16>, vector<384x128xbf16>, vector<8x16x128xf32> -> vector<8x16x128xf32>
    "tpu.trace_stop"() : () -> ()
    %40 = arith.addf %31, %39 : vector<8x16x128xf32>
    %c0_36 = arith.constant 0 : index
    %c0_37 = arith.constant 0 : index
    %41 = vector.load %arg6[%c0_36, %c0_37] : memref<1x128xf32, #tpu.memory_space<vmem>>, vector<1x128xf32>
    %42 = vector.shape_cast %41 : vector<1x128xf32> to vector<128xf32>
    %43 = vector.shape_cast %42 : vector<128xf32> to vector<1x1x128xf32>
    %44 = vector.broadcast %43 : vector<1x1x128xf32> to vector<8x16x128xf32>
    %45 = arith.mulf %40, %44 : vector<8x16x128xf32>
    %c0_38 = arith.constant 0 : index
    %c0_39 = arith.constant 0 : index
    %46 = vector.load %arg7[%c0_38, %c0_39] : memref<1x128xf32, #tpu.memory_space<vmem>>, vector<1x128xf32>
    %47 = vector.shape_cast %46 : vector<1x128xf32> to vector<128xf32>
    %48 = vector.shape_cast %47 : vector<128xf32> to vector<1x1x128xf32>
    %49 = vector.broadcast %48 : vector<1x1x128xf32> to vector<8x16x128xf32>
    %50 = arith.addf %45, %49 : vector<8x16x128xf32>
    %cst_40 = arith.constant 0.000000e+00 : f32
    %51 = vector.broadcast %cst_40 : f32 to vector<8x16x128xf32>
    %52 = arith.maximumf %50, %51 : vector<8x16x128xf32>
    %53 = arith.truncf %52 : vector<8x16x128xf32> to vector<8x16x128xbf16>
    %c0_41 = arith.constant 0 : index
    %c0_42 = arith.constant 0 : index
    %c0_43 = arith.constant 0 : index
    %c0_44 = arith.constant 0 : index
    %54 = vector.load %arg8[%c0_41, %c0_42, %c0_43, %c0_44] : memref<1x8x16x128xbf16, #tpu.memory_space<vmem>>, vector<1x8x16x128xbf16>
    %55 = vector.shape_cast %54 : vector<1x8x16x128xbf16> to vector<8x16x128xbf16>
    %56 = vector.shape_cast %53 : vector<8x16x128xbf16> to vector<1x8x16x128xbf16>
    tpu.vector_store %arg8[%c0_41, %c0_42, %c0_43, %c0_44], %56 {strides = array<i32>} : memref<1x8x16x128xbf16, #tpu.memory_space<vmem>>, vector<1x8x16x128xbf16>,
    return
  }
  func.func @transform_0(%arg0: i32, %arg1: i32) -> (i32, i32, i32, i32) {
    %c0_i32 = arith.constant 0 : i32
    %c0_i32_0 = arith.constant 0 : i32
    %c0_i32_1 = arith.constant 0 : i32
    return %arg0, %arg1, %c0_i32, %c0_i32_0 : i32, i32, i32, i32
  }
  func.func @transform_1(%arg0: i32, %arg1: i32) -> (i32, i32, i32, i32) {
    %c0_i32 = arith.constant 0 : i32
    %c0_i32_0 = arith.constant 0 : i32
    %c0_i32_1 = arith.constant 0 : i32
    return %arg0, %arg1, %c0_i32, %c0_i32_0 : i32, i32, i32, i32
  }
  func.func @transform_2(%arg0: i32, %arg1: i32) -> (i32, i32, i32, i32) {
    %c0_i32 = arith.constant 0 : i32
    %c0_i32_0 = arith.constant 0 : i32
    %c0_i32_1 = arith.constant 0 : i32
    return %arg0, %arg1, %c0_i32, %c0_i32_0 : i32, i32, i32, i32
  }
  func.func @transform_3(%arg0: i32, %arg1: i32) -> (i32, i32, i32) {
    %c0_i32 = arith.constant 0 : i32
    %c0_i32_0 = arith.constant 0 : i32
    %c0_i32_1 = arith.constant 0 : i32
    %c0_i32_2 = arith.constant 0 : i32
    return %c0_i32, %c0_i32_0, %c0_i32_1 : i32, i32, i32
  }
  func.func @transform_4(%arg0: i32, %arg1: i32) -> (i32, i32) {
    %c0_i32 = arith.constant 0 : i32
    %c0_i32_0 = arith.constant 0 : i32
    %c0_i32_1 = arith.constant 0 : i32
    return %c0_i32, %c0_i32_0 : i32, i32
  }
  func.func @transform_5(%arg0: i32, %arg1: i32) -> (i32, i32) {
    %c0_i32 = arith.constant 0 : i32
    %c0_i32_0 = arith.constant 0 : i32
    %c0_i32_1 = arith.constant 0 : i32
    return %c0_i32, %c0_i32_0 : i32, i32
  }
  func.func @transform_6(%arg0: i32, %arg1: i32) -> (i32, i32, i32, i32) {
    %c0_i32 = arith.constant 0 : i32
    %c0_i32_0 = arith.constant 0 : i32
    %c0_i32_1 = arith.constant 0 : i32
    return %arg0, %arg1, %c0_i32, %c0_i32_0 : i32, i32, i32, i32
  }
}

module attributes {stable_mosaic.version = 11 : i64} {
  func.func @_conv_kernel_fused(%arg0: i32, %arg1: i32, %arg2: memref<1x1x16x128xbf16, #tpu.memory_space<vmem>>, %arg3: memref<1x8x16x128xbf16, #tpu.memory_space<vmem>>, %arg4: memref<1x1x16x128xbf16, #tpu.memory_space<vmem>>, %arg5: memref<3x384x128xbf16, #tpu.memory_space<vmem>>, %arg6: memref<1x128xf32, #tpu.memory_space<vmem>>, %arg7: memref<1x128xf32, #tpu.memory_space<vmem>>, %arg8: memref<128x128xbf16, #tpu.memory_space<vmem>>, %arg9: memref<1x128xf32, #tpu.memory_space<vmem>>, %arg10: memref<1x8x16x128xbf16, #tpu.memory_space<vmem>>, %arg11: memref<10x32x128xbf16, #tpu.memory_space<vmem>>) attributes {dimension_semantics = [#tpu.dimension_semantics<parallel>, #tpu.dimension_semantics<parallel>], iteration_bounds = array<i64: 2, 2>, scalar_prefetch = 0 : i64, scratch_operands = 1 : i64, tpu.core_type = #tpu.core_type<tc>, window_params = [{transform_indices = @transform_0, window_bounds = array<i64: 1, 1, 16, 128>}, {transform_indices = @transform_1, window_bounds = array<i64: 1, 8, 16, 128>}, {transform_indices = @transform_2, window_bounds = array<i64: 1, 1, 16, 128>}, {pipeline_mode = #tpu.pipeline_mode<synchronous>, transform_indices = @transform_3, window_bounds = array<i64: 3, 384, 128>}, {pipeline_mode = #tpu.pipeline_mode<synchronous>, transform_indices = @transform_4, window_bounds = array<i64: 1, 128>}, {pipeline_mode = #tpu.pipeline_mode<synchronous>, transform_indices = @transform_5, window_bounds = array<i64: 1, 128>}, {pipeline_mode = #tpu.pipeline_mode<synchronous>, transform_indices = @transform_6, window_bounds = array<i64: 128, 128>}, {pipeline_mode = #tpu.pipeline_mode<synchronous>, transform_indices = @transform_7, window_bounds = array<i64: 1, 128>}, {transform_indices = @transform_8, window_bounds = array<i64: 1, 8, 16, 128>}]} {
    %cst = arith.constant 0.000000e+00 : bf16
    %0 = vector.broadcast %cst : bf16 to vector<10x1x128xbf16>
    %c0 = arith.constant 0 : index
    %c7 = arith.constant 7 : index
    %c0_0 = arith.constant 0 : index
    %1 = vector.load %arg11[%c0, %c7, %c0_0] : memref<10x32x128xbf16, #tpu.memory_space<vmem>>, vector<10x1x128xbf16>
    tpu.vector_store %arg11[%c0, %c7, %c0_0], %0 {strides = array<i32>} : memref<10x32x128xbf16, #tpu.memory_space<vmem>>, vector<10x1x128xbf16>,
    %c0_1 = arith.constant 0 : index
    %c24 = arith.constant 24 : index
    %c0_2 = arith.constant 0 : index
    %2 = vector.load %arg11[%c0_1, %c24, %c0_2] : memref<10x32x128xbf16, #tpu.memory_space<vmem>>, vector<10x1x128xbf16>
    tpu.vector_store %arg11[%c0_1, %c24, %c0_2], %0 {strides = array<i32>} : memref<10x32x128xbf16, #tpu.memory_space<vmem>>, vector<10x1x128xbf16>,
    %c0_3 = arith.constant 0 : index
    %c0_4 = arith.constant 0 : index
    %c0_5 = arith.constant 0 : index
    %c0_6 = arith.constant 0 : index
    %3 = vector.load %arg2[%c0_3, %c0_4, %c0_5, %c0_6] : memref<1x1x16x128xbf16, #tpu.memory_space<vmem>>, vector<1x1x16x128xbf16>
    %4 = vector.shape_cast %3 : vector<1x1x16x128xbf16> to vector<1x16x128xbf16>
    %c0_7 = arith.constant 0 : index
    %c8 = arith.constant 8 : index
    %c0_8 = arith.constant 0 : index
    %5 = vector.load %arg11[%c0_7, %c8, %c0_8] : memref<10x32x128xbf16, #tpu.memory_space<vmem>>, vector<1x16x128xbf16>
    tpu.vector_store %arg11[%c0_7, %c8, %c0_8], %4 {strides = array<i32>} : memref<10x32x128xbf16, #tpu.memory_space<vmem>>, vector<1x16x128xbf16>,
    %c0_9 = arith.constant 0 : index
    %c0_10 = arith.constant 0 : index
    %c0_11 = arith.constant 0 : index
    %c0_12 = arith.constant 0 : index
    %6 = vector.load %arg3[%c0_9, %c0_10, %c0_11, %c0_12] : memref<1x8x16x128xbf16, #tpu.memory_space<vmem>>, vector<1x8x16x128xbf16>
    %7 = vector.shape_cast %6 : vector<1x8x16x128xbf16> to vector<8x16x128xbf16>
    %c1 = arith.constant 1 : index
    %c8_13 = arith.constant 8 : index
    %c0_14 = arith.constant 0 : index
    %8 = vector.load %arg11[%c1, %c8_13, %c0_14] : memref<10x32x128xbf16, #tpu.memory_space<vmem>>, vector<8x16x128xbf16>
    tpu.vector_store %arg11[%c1, %c8_13, %c0_14], %7 {strides = array<i32>} : memref<10x32x128xbf16, #tpu.memory_space<vmem>>, vector<8x16x128xbf16>,
    %c0_15 = arith.constant 0 : index
    %c0_16 = arith.constant 0 : index
    %c0_17 = arith.constant 0 : index
    %c0_18 = arith.constant 0 : index
    %9 = vector.load %arg4[%c0_15, %c0_16, %c0_17, %c0_18] : memref<1x1x16x128xbf16, #tpu.memory_space<vmem>>, vector<1x1x16x128xbf16>
    %10 = vector.shape_cast %9 : vector<1x1x16x128xbf16> to vector<1x16x128xbf16>
    %c9 = arith.constant 9 : index
    %c8_19 = arith.constant 8 : index
    %c0_20 = arith.constant 0 : index
    %11 = vector.load %arg11[%c9, %c8_19, %c0_20] : memref<10x32x128xbf16, #tpu.memory_space<vmem>>, vector<1x16x128xbf16>
    tpu.vector_store %arg11[%c9, %c8_19, %c0_20], %10 {strides = array<i32>} : memref<10x32x128xbf16, #tpu.memory_space<vmem>>, vector<1x16x128xbf16>,
    %c0_21 = arith.constant 0 : index
    %c0_22 = arith.constant 0 : index
    %c0_23 = arith.constant 0 : index
    %12 = vector.load %arg11[%c0_21, %c0_22, %c0_23] : memref<10x32x128xbf16, #tpu.memory_space<vmem>>, vector<10x32x128xbf16>
    %cst_24 = arith.constant 0.000000e+00 : f32
    %13 = vector.broadcast %cst_24 : f32 to vector<8x16x128xf32>
    %14 = vector.extract_strided_slice %12 {offsets = [0, 0, 0], sizes = [8, 32, 128], strides = [1, 1, 1]} : vector<10x32x128xbf16> to vector<8x32x128xbf16>
    %15 = vector.extract_strided_slice %14 {offsets = [0, 7, 0], sizes = [8, 16, 128], strides = [1, 1, 1]} : vector<8x32x128xbf16> to vector<8x16x128xbf16>
    %16 = vector.extract_strided_slice %14 {offsets = [0, 8, 0], sizes = [8, 16, 128], strides = [1, 1, 1]} : vector<8x32x128xbf16> to vector<8x16x128xbf16>
    %17 = vector.extract_strided_slice %14 {offsets = [0, 9, 0], sizes = [8, 16, 128], strides = [1, 1, 1]} : vector<8x32x128xbf16> to vector<8x16x128xbf16>
    %18 = tpu.concatenate %15, %16, %17 in 2 : vector<8x16x128xbf16>, vector<8x16x128xbf16>, vector<8x16x128xbf16> -> vector<8x16x384xbf16>
    %c0_25 = arith.constant 0 : index
    %c0_26 = arith.constant 0 : index
    %c0_27 = arith.constant 0 : index
    %19 = vector.load %arg5[%c0_25, %c0_26, %c0_27] : memref<3x384x128xbf16, #tpu.memory_space<vmem>>, vector<1x384x128xbf16>
    %20 = vector.shape_cast %19 : vector<1x384x128xbf16> to vector<384x128xbf16>
    "tpu.trace_start"() <{level = 10 : i32, message = "hwi,io->hwo"}> : () -> ()
    %cst_28 = arith.constant dense<0.000000e+00> : vector<8x16x128xf32>
    %21 = tpu.matmul %18, %20, %cst_28 {dimension_numbers = #tpu.dot_dimension_numbers<[2], [0], [0, 1], [1], [0, 0, 0, 1, 1, 1], [], []>} : vector<8x16x384xbf16>, vector<384x128xbf16>, vector<8x16x128xf32> -> vector<8x16x128xf32>
    "tpu.trace_stop"() : () -> ()
    %22 = arith.addf %13, %21 : vector<8x16x128xf32>
    %23 = vector.extract_strided_slice %12 {offsets = [1, 0, 0], sizes = [8, 32, 128], strides = [1, 1, 1]} : vector<10x32x128xbf16> to vector<8x32x128xbf16>
    %24 = vector.extract_strided_slice %23 {offsets = [0, 7, 0], sizes = [8, 16, 128], strides = [1, 1, 1]} : vector<8x32x128xbf16> to vector<8x16x128xbf16>
    %25 = vector.extract_strided_slice %23 {offsets = [0, 8, 0], sizes = [8, 16, 128], strides = [1, 1, 1]} : vector<8x32x128xbf16> to vector<8x16x128xbf16>
    %26 = vector.extract_strided_slice %23 {offsets = [0, 9, 0], sizes = [8, 16, 128], strides = [1, 1, 1]} : vector<8x32x128xbf16> to vector<8x16x128xbf16>
    %27 = tpu.concatenate %24, %25, %26 in 2 : vector<8x16x128xbf16>, vector<8x16x128xbf16>, vector<8x16x128xbf16> -> vector<8x16x384xbf16>
    %c1_29 = arith.constant 1 : index
    %c0_30 = arith.constant 0 : index
    %c0_31 = arith.constant 0 : index
    %28 = vector.load %arg5[%c1_29, %c0_30, %c0_31] : memref<3x384x128xbf16, #tpu.memory_space<vmem>>, vector<1x384x128xbf16>
    %29 = vector.shape_cast %28 : vector<1x384x128xbf16> to vector<384x128xbf16>
    "tpu.trace_start"() <{level = 10 : i32, message = "hwi,io->hwo"}> : () -> ()
    %cst_32 = arith.constant dense<0.000000e+00> : vector<8x16x128xf32>
    %30 = tpu.matmul %27, %29, %cst_32 {dimension_numbers = #tpu.dot_dimension_numbers<[2], [0], [0, 1], [1], [0, 0, 0, 1, 1, 1], [], []>} : vector<8x16x384xbf16>, vector<384x128xbf16>, vector<8x16x128xf32> -> vector<8x16x128xf32>
    "tpu.trace_stop"() : () -> ()
    %31 = arith.addf %22, %30 : vector<8x16x128xf32>
    %32 = vector.extract_strided_slice %12 {offsets = [2, 0, 0], sizes = [8, 32, 128], strides = [1, 1, 1]} : vector<10x32x128xbf16> to vector<8x32x128xbf16>
    %33 = vector.extract_strided_slice %32 {offsets = [0, 7, 0], sizes = [8, 16, 128], strides = [1, 1, 1]} : vector<8x32x128xbf16> to vector<8x16x128xbf16>
    %34 = vector.extract_strided_slice %32 {offsets = [0, 8, 0], sizes = [8, 16, 128], strides = [1, 1, 1]} : vector<8x32x128xbf16> to vector<8x16x128xbf16>
    %35 = vector.extract_strided_slice %32 {offsets = [0, 9, 0], sizes = [8, 16, 128], strides = [1, 1, 1]} : vector<8x32x128xbf16> to vector<8x16x128xbf16>
    %36 = tpu.concatenate %33, %34, %35 in 2 : vector<8x16x128xbf16>, vector<8x16x128xbf16>, vector<8x16x128xbf16> -> vector<8x16x384xbf16>
    %c2 = arith.constant 2 : index
    %c0_33 = arith.constant 0 : index
    %c0_34 = arith.constant 0 : index
    %37 = vector.load %arg5[%c2, %c0_33, %c0_34] : memref<3x384x128xbf16, #tpu.memory_space<vmem>>, vector<1x384x128xbf16>
    %38 = vector.shape_cast %37 : vector<1x384x128xbf16> to vector<384x128xbf16>
    "tpu.trace_start"() <{level = 10 : i32, message = "hwi,io->hwo"}> : () -> ()
    %cst_35 = arith.constant dense<0.000000e+00> : vector<8x16x128xf32>
    %39 = tpu.matmul %36, %38, %cst_35 {dimension_numbers = #tpu.dot_dimension_numbers<[2], [0], [0, 1], [1], [0, 0, 0, 1, 1, 1], [], []>} : vector<8x16x384xbf16>, vector<384x128xbf16>, vector<8x16x128xf32> -> vector<8x16x128xf32>
    "tpu.trace_stop"() : () -> ()
    %40 = arith.addf %31, %39 : vector<8x16x128xf32>
    %c0_36 = arith.constant 0 : index
    %c0_37 = arith.constant 0 : index
    %41 = vector.load %arg6[%c0_36, %c0_37] : memref<1x128xf32, #tpu.memory_space<vmem>>, vector<1x128xf32>
    %42 = vector.shape_cast %41 : vector<1x128xf32> to vector<128xf32>
    %43 = vector.shape_cast %42 : vector<128xf32> to vector<1x1x128xf32>
    %44 = vector.broadcast %43 : vector<1x1x128xf32> to vector<8x16x128xf32>
    %45 = arith.mulf %40, %44 : vector<8x16x128xf32>
    %c0_38 = arith.constant 0 : index
    %c0_39 = arith.constant 0 : index
    %46 = vector.load %arg7[%c0_38, %c0_39] : memref<1x128xf32, #tpu.memory_space<vmem>>, vector<1x128xf32>
    %47 = vector.shape_cast %46 : vector<1x128xf32> to vector<128xf32>
    %48 = vector.shape_cast %47 : vector<128xf32> to vector<1x1x128xf32>
    %49 = vector.broadcast %48 : vector<1x1x128xf32> to vector<8x16x128xf32>
    %50 = arith.addf %45, %49 : vector<8x16x128xf32>
    %cst_40 = arith.constant 0.000000e+00 : f32
    %51 = vector.broadcast %cst_40 : f32 to vector<8x16x128xf32>
    %52 = arith.maximumf %50, %51 : vector<8x16x128xf32>
    %53 = arith.truncf %52 : vector<8x16x128xf32> to vector<8x16x128xbf16>
    %c0_41 = arith.constant 0 : index
    %c0_42 = arith.constant 0 : index
    %54 = vector.load %arg8[%c0_41, %c0_42] : memref<128x128xbf16, #tpu.memory_space<vmem>>, vector<128x128xbf16>
    "tpu.trace_start"() <{level = 10 : i32, message = "hwi,io->hwo"}> : () -> ()
    %cst_43 = arith.constant dense<0.000000e+00> : vector<8x16x128xf32>
    %55 = tpu.matmul %53, %54, %cst_43 {dimension_numbers = #tpu.dot_dimension_numbers<[2], [0], [0, 1], [1], [0, 0, 0, 1, 1, 1], [], []>} : vector<8x16x128xbf16>, vector<128x128xbf16>, vector<8x16x128xf32> -> vector<8x16x128xf32>
    "tpu.trace_stop"() : () -> ()
    %c0_44 = arith.constant 0 : index
    %c0_45 = arith.constant 0 : index
    %56 = vector.load %arg9[%c0_44, %c0_45] : memref<1x128xf32, #tpu.memory_space<vmem>>, vector<1x128xf32>
    %57 = vector.shape_cast %56 : vector<1x128xf32> to vector<128xf32>
    %58 = vector.shape_cast %57 : vector<128xf32> to vector<1x1x128xf32>
    %59 = vector.broadcast %58 : vector<1x1x128xf32> to vector<8x16x128xf32>
    %60 = arith.addf %55, %59 : vector<8x16x128xf32>
    %61 = arith.truncf %60 : vector<8x16x128xf32> to vector<8x16x128xbf16>
    %c0_46 = arith.constant 0 : index
    %c0_47 = arith.constant 0 : index
    %c0_48 = arith.constant 0 : index
    %c0_49 = arith.constant 0 : index
    %62 = vector.load %arg10[%c0_46, %c0_47, %c0_48, %c0_49] : memref<1x8x16x128xbf16, #tpu.memory_space<vmem>>, vector<1x8x16x128xbf16>
    %63 = vector.shape_cast %62 : vector<1x8x16x128xbf16> to vector<8x16x128xbf16>
    %64 = vector.shape_cast %61 : vector<8x16x128xbf16> to vector<1x8x16x128xbf16>
    tpu.vector_store %arg10[%c0_46, %c0_47, %c0_48, %c0_49], %64 {strides = array<i32>} : memref<1x8x16x128xbf16, #tpu.memory_space<vmem>>, vector<1x8x16x128xbf16>,
    return
  }
  func.func @transform_0(%arg0: i32, %arg1: i32) -> (i32, i32, i32, i32) {
    %c0_i32 = arith.constant 0 : i32
    %c0_i32_0 = arith.constant 0 : i32
    %c0_i32_1 = arith.constant 0 : i32
    return %arg0, %arg1, %c0_i32, %c0_i32_0 : i32, i32, i32, i32
  }
  func.func @transform_1(%arg0: i32, %arg1: i32) -> (i32, i32, i32, i32) {
    %c0_i32 = arith.constant 0 : i32
    %c0_i32_0 = arith.constant 0 : i32
    %c0_i32_1 = arith.constant 0 : i32
    return %arg0, %arg1, %c0_i32, %c0_i32_0 : i32, i32, i32, i32
  }
  func.func @transform_2(%arg0: i32, %arg1: i32) -> (i32, i32, i32, i32) {
    %c0_i32 = arith.constant 0 : i32
    %c0_i32_0 = arith.constant 0 : i32
    %c0_i32_1 = arith.constant 0 : i32
    return %arg0, %arg1, %c0_i32, %c0_i32_0 : i32, i32, i32, i32
  }
  func.func @transform_3(%arg0: i32, %arg1: i32) -> (i32, i32, i32) {
    %c0_i32 = arith.constant 0 : i32
    %c0_i32_0 = arith.constant 0 : i32
    %c0_i32_1 = arith.constant 0 : i32
    %c0_i32_2 = arith.constant 0 : i32
    return %c0_i32, %c0_i32_0, %c0_i32_1 : i32, i32, i32
  }
  func.func @transform_4(%arg0: i32, %arg1: i32) -> (i32, i32) {
    %c0_i32 = arith.constant 0 : i32
    %c0_i32_0 = arith.constant 0 : i32
    %c0_i32_1 = arith.constant 0 : i32
    return %c0_i32, %c0_i32_0 : i32, i32
  }
  func.func @transform_5(%arg0: i32, %arg1: i32) -> (i32, i32) {
    %c0_i32 = arith.constant 0 : i32
    %c0_i32_0 = arith.constant 0 : i32
    %c0_i32_1 = arith.constant 0 : i32
    return %c0_i32, %c0_i32_0 : i32, i32
  }
  func.func @transform_6(%arg0: i32, %arg1: i32) -> (i32, i32) {
    %c0_i32 = arith.constant 0 : i32
    %c0_i32_0 = arith.constant 0 : i32
    %c0_i32_1 = arith.constant 0 : i32
    return %c0_i32, %c0_i32_0 : i32, i32
  }
  func.func @transform_7(%arg0: i32, %arg1: i32) -> (i32, i32) {
    %c0_i32 = arith.constant 0 : i32
    %c0_i32_0 = arith.constant 0 : i32
    %c0_i32_1 = arith.constant 0 : i32
    return %c0_i32, %c0_i32_0 : i32, i32
  }
  func.func @transform_8(%arg0: i32, %arg1: i32) -> (i32, i32, i32, i32) {
    %c0_i32 = arith.constant 0 : i32
    %c0_i32_0 = arith.constant 0 : i32
    %c0_i32_1 = arith.constant 0 : i32
    return %arg0, %arg1, %c0_i32, %c0_i32_0 : i32, i32, i32, i32
  }
}

module attributes {stable_mosaic.version = 11 : i64} {
  func.func @_upsample_kernel(%arg0: i32, %arg1: i32, %arg2: i32, %arg3: memref<1x4x16x16xbf16, #tpu.memory_space<vmem>>, %arg4: memref<16x16xbf16, #tpu.memory_space<vmem>>, %arg5: memref<16x32xbf16, #tpu.memory_space<vmem>>, %arg6: memref<1x4x16x32xf32, #tpu.memory_space<vmem>>, %arg7: memref<64x16xbf16, #tpu.memory_space<vmem>>) attributes {dimension_semantics = [#tpu.dimension_semantics<parallel>, #tpu.dimension_semantics<parallel>, #tpu.dimension_semantics<parallel>], iteration_bounds = array<i64: 2, 2, 2>, scalar_prefetch = 0 : i64, scratch_operands = 1 : i64, tpu.core_type = #tpu.core_type<tc>, window_params = [{transform_indices = @transform_0, window_bounds = array<i64: 1, 4, 16, 16>}, {transform_indices = @transform_1, window_bounds = array<i64: 16, 16>}, {pipeline_mode = #tpu.pipeline_mode<synchronous>, transform_indices = @transform_2, window_bounds = array<i64: 16, 32>}, {transform_indices = @transform_3, window_bounds = array<i64: 1, 4, 16, 32>}]} {
    %c0 = arith.constant 0 : index
    %c0_0 = arith.constant 0 : index
    %0 = vector.load %arg4[%c0, %c0_0] : memref<16x16xbf16, #tpu.memory_space<vmem>>, vector<16x16xbf16>
    %c0_1 = arith.constant 0 : index
    %c0_2 = arith.constant 0 : index
    %c0_3 = arith.constant 0 : index
    %c0_4 = arith.constant 0 : index
    %1 = vector.load %arg3[%c0_1, %c0_2, %c0_3, %c0_4] : memref<1x4x16x16xbf16, #tpu.memory_space<vmem>>, vector<1x1x16x16xbf16>
    %2 = vector.shape_cast %1 : vector<1x1x16x16xbf16> to vector<16x16xbf16>
    %cst = arith.constant dense<0.000000e+00> : vector<16x16xf32>
    %3 = tpu.matmul %0, %2, %cst {dimension_numbers = #tpu.dot_dimension_numbers<[1], [0], [0], [1], [0, 0, 1, 1], [], []>} : vector<16x16xbf16>, vector<16x16xbf16>, vector<16x16xf32> -> vector<16x16xf32>
    %4 = arith.truncf %3 : vector<16x16xf32> to vector<16x16xbf16>
    %c0_5 = arith.constant 0 : index
    %c0_6 = arith.constant 0 : index
    %5 = vector.load %arg7[%c0_5, %c0_6] : memref<64x16xbf16, #tpu.memory_space<vmem>>, vector<16x16xbf16>
    tpu.vector_store %arg7[%c0_5, %c0_6], %4 {strides = array<i32>} : memref<64x16xbf16, #tpu.memory_space<vmem>>, vector<16x16xbf16>,
    %c0_7 = arith.constant 0 : index
    %c0_8 = arith.constant 0 : index
    %6 = vector.load %arg4[%c0_7, %c0_8] : memref<16x16xbf16, #tpu.memory_space<vmem>>, vector<16x16xbf16>
    %c0_9 = arith.constant 0 : index
    %c1 = arith.constant 1 : index
    %c0_10 = arith.constant 0 : index
    %c0_11 = arith.constant 0 : index
    %7 = vector.load %arg3[%c0_9, %c1, %c0_10, %c0_11] : memref<1x4x16x16xbf16, #tpu.memory_space<vmem>>, vector<1x1x16x16xbf16>
    %8 = vector.shape_cast %7 : vector<1x1x16x16xbf16> to vector<16x16xbf16>
    %cst_12 = arith.constant dense<0.000000e+00> : vector<16x16xf32>
    %9 = tpu.matmul %6, %8, %cst_12 {dimension_numbers = #tpu.dot_dimension_numbers<[1], [0], [0], [1], [0, 0, 1, 1], [], []>} : vector<16x16xbf16>, vector<16x16xbf16>, vector<16x16xf32> -> vector<16x16xf32>
    %10 = arith.truncf %9 : vector<16x16xf32> to vector<16x16xbf16>
    %c16 = arith.constant 16 : index
    %c0_13 = arith.constant 0 : index
    %11 = vector.load %arg7[%c16, %c0_13] : memref<64x16xbf16, #tpu.memory_space<vmem>>, vector<16x16xbf16>
    tpu.vector_store %arg7[%c16, %c0_13], %10 {strides = array<i32>} : memref<64x16xbf16, #tpu.memory_space<vmem>>, vector<16x16xbf16>,
    %c0_14 = arith.constant 0 : index
    %c0_15 = arith.constant 0 : index
    %12 = vector.load %arg4[%c0_14, %c0_15] : memref<16x16xbf16, #tpu.memory_space<vmem>>, vector<16x16xbf16>
    %c0_16 = arith.constant 0 : index
    %c2 = arith.constant 2 : index
    %c0_17 = arith.constant 0 : index
    %c0_18 = arith.constant 0 : index
    %13 = vector.load %arg3[%c0_16, %c2, %c0_17, %c0_18] : memref<1x4x16x16xbf16, #tpu.memory_space<vmem>>, vector<1x1x16x16xbf16>
    %14 = vector.shape_cast %13 : vector<1x1x16x16xbf16> to vector<16x16xbf16>
    %cst_19 = arith.constant dense<0.000000e+00> : vector<16x16xf32>
    %15 = tpu.matmul %12, %14, %cst_19 {dimension_numbers = #tpu.dot_dimension_numbers<[1], [0], [0], [1], [0, 0, 1, 1], [], []>} : vector<16x16xbf16>, vector<16x16xbf16>, vector<16x16xf32> -> vector<16x16xf32>
    %16 = arith.truncf %15 : vector<16x16xf32> to vector<16x16xbf16>
    %c32 = arith.constant 32 : index
    %c0_20 = arith.constant 0 : index
    %17 = vector.load %arg7[%c32, %c0_20] : memref<64x16xbf16, #tpu.memory_space<vmem>>, vector<16x16xbf16>
    tpu.vector_store %arg7[%c32, %c0_20], %16 {strides = array<i32>} : memref<64x16xbf16, #tpu.memory_space<vmem>>, vector<16x16xbf16>,
    %c0_21 = arith.constant 0 : index
    %c0_22 = arith.constant 0 : index
    %18 = vector.load %arg4[%c0_21, %c0_22] : memref<16x16xbf16, #tpu.memory_space<vmem>>, vector<16x16xbf16>
    %c0_23 = arith.constant 0 : index
    %c3 = arith.constant 3 : index
    %c0_24 = arith.constant 0 : index
    %c0_25 = arith.constant 0 : index
    %19 = vector.load %arg3[%c0_23, %c3, %c0_24, %c0_25] : memref<1x4x16x16xbf16, #tpu.memory_space<vmem>>, vector<1x1x16x16xbf16>
    %20 = vector.shape_cast %19 : vector<1x1x16x16xbf16> to vector<16x16xbf16>
    %cst_26 = arith.constant dense<0.000000e+00> : vector<16x16xf32>
    %21 = tpu.matmul %18, %20, %cst_26 {dimension_numbers = #tpu.dot_dimension_numbers<[1], [0], [0], [1], [0, 0, 1, 1], [], []>} : vector<16x16xbf16>, vector<16x16xbf16>, vector<16x16xf32> -> vector<16x16xf32>
    %22 = arith.truncf %21 : vector<16x16xf32> to vector<16x16xbf16>
    %c48 = arith.constant 48 : index
    %c0_27 = arith.constant 0 : index
    %23 = vector.load %arg7[%c48, %c0_27] : memref<64x16xbf16, #tpu.memory_space<vmem>>, vector<16x16xbf16>
    tpu.vector_store %arg7[%c48, %c0_27], %22 {strides = array<i32>} : memref<64x16xbf16, #tpu.memory_space<vmem>>, vector<16x16xbf16>,
    %c0_28 = arith.constant 0 : index
    %c0_29 = arith.constant 0 : index
    %24 = vector.load %arg7[%c0_28, %c0_29] : memref<64x16xbf16, #tpu.memory_space<vmem>>, vector<64x16xbf16>
    %c0_30 = arith.constant 0 : index
    %c0_31 = arith.constant 0 : index
    %25 = vector.load %arg5[%c0_30, %c0_31] : memref<16x32xbf16, #tpu.memory_space<vmem>>, vector<16x32xbf16>
    %cst_32 = arith.constant dense<0.000000e+00> : vector<64x32xf32>
    %26 = tpu.matmul %24, %25, %cst_32 {dimension_numbers = #tpu.dot_dimension_numbers<[1], [0], [0], [1], [0, 0, 1, 1], [], []>} : vector<64x16xbf16>, vector<16x32xbf16>, vector<64x32xf32> -> vector<64x32xf32>
    %27 = vector.extract_strided_slice %26 {offsets = [0, 0], sizes = [16, 32], strides = [1, 1]} : vector<64x32xf32> to vector<16x32xf32>
    %c0_33 = arith.constant 0 : index
    %c0_34 = arith.constant 0 : index
    %c0_35 = arith.constant 0 : index
    %c0_36 = arith.constant 0 : index
    %28 = vector.load %arg6[%c0_33, %c0_34, %c0_35, %c0_36] : memref<1x4x16x32xf32, #tpu.memory_space<vmem>>, vector<1x1x16x32xf32>
    %29 = vector.shape_cast %28 : vector<1x1x16x32xf32> to vector<16x32xf32>
    %30 = vector.shape_cast %27 : vector<16x32xf32> to vector<1x1x16x32xf32>
    tpu.vector_store %arg6[%c0_33, %c0_34, %c0_35, %c0_36], %30 {strides = array<i32>} : memref<1x4x16x32xf32, #tpu.memory_space<vmem>>, vector<1x1x16x32xf32>,
    %31 = vector.extract_strided_slice %26 {offsets = [16, 0], sizes = [16, 32], strides = [1, 1]} : vector<64x32xf32> to vector<16x32xf32>
    %c0_37 = arith.constant 0 : index
    %c1_38 = arith.constant 1 : index
    %c0_39 = arith.constant 0 : index
    %c0_40 = arith.constant 0 : index
    %32 = vector.load %arg6[%c0_37, %c1_38, %c0_39, %c0_40] : memref<1x4x16x32xf32, #tpu.memory_space<vmem>>, vector<1x1x16x32xf32>
    %33 = vector.shape_cast %32 : vector<1x1x16x32xf32> to vector<16x32xf32>
    %34 = vector.shape_cast %31 : vector<16x32xf32> to vector<1x1x16x32xf32>
    tpu.vector_store %arg6[%c0_37, %c1_38, %c0_39, %c0_40], %34 {strides = array<i32>} : memref<1x4x16x32xf32, #tpu.memory_space<vmem>>, vector<1x1x16x32xf32>,
    %35 = vector.extract_strided_slice %26 {offsets = [32, 0], sizes = [16, 32], strides = [1, 1]} : vector<64x32xf32> to vector<16x32xf32>
    %c0_41 = arith.constant 0 : index
    %c2_42 = arith.constant 2 : index
    %c0_43 = arith.constant 0 : index
    %c0_44 = arith.constant 0 : index
    %36 = vector.load %arg6[%c0_41, %c2_42, %c0_43, %c0_44] : memref<1x4x16x32xf32, #tpu.memory_space<vmem>>, vector<1x1x16x32xf32>
    %37 = vector.shape_cast %36 : vector<1x1x16x32xf32> to vector<16x32xf32>
    %38 = vector.shape_cast %35 : vector<16x32xf32> to vector<1x1x16x32xf32>
    tpu.vector_store %arg6[%c0_41, %c2_42, %c0_43, %c0_44], %38 {strides = array<i32>} : memref<1x4x16x32xf32, #tpu.memory_space<vmem>>, vector<1x1x16x32xf32>,
    %39 = vector.extract_strided_slice %26 {offsets = [48, 0], sizes = [16, 32], strides = [1, 1]} : vector<64x32xf32> to vector<16x32xf32>
    %c0_45 = arith.constant 0 : index
    %c3_46 = arith.constant 3 : index
    %c0_47 = arith.constant 0 : index
    %c0_48 = arith.constant 0 : index
    %40 = vector.load %arg6[%c0_45, %c3_46, %c0_47, %c0_48] : memref<1x4x16x32xf32, #tpu.memory_space<vmem>>, vector<1x1x16x32xf32>
    %41 = vector.shape_cast %40 : vector<1x1x16x32xf32> to vector<16x32xf32>
    %42 = vector.shape_cast %39 : vector<16x32xf32> to vector<1x1x16x32xf32>
    tpu.vector_store %arg6[%c0_45, %c3_46, %c0_47, %c0_48], %42 {strides = array<i32>} : memref<1x4x16x32xf32, #tpu.memory_space<vmem>>, vector<1x1x16x32xf32>,
    return
  }
  func.func @transform_0(%arg0: i32, %arg1: i32, %arg2: i32) -> (i32, i32, i32, i32) {
    %c0_i32 = arith.constant 0 : i32
    %c0_i32_0 = arith.constant 0 : i32
    %c0_i32_1 = arith.constant 0 : i32
    return %arg0, %arg1, %c0_i32, %c0_i32_0 : i32, i32, i32, i32
  }
  func.func @transform_1(%arg0: i32, %arg1: i32, %arg2: i32) -> (i32, i32) {
    %c0_i32 = arith.constant 0 : i32
    %c0_i32_0 = arith.constant 0 : i32
    return %arg2, %c0_i32 : i32, i32
  }
  func.func @transform_2(%arg0: i32, %arg1: i32, %arg2: i32) -> (i32, i32) {
    %c0_i32 = arith.constant 0 : i32
    %c0_i32_0 = arith.constant 0 : i32
    %c0_i32_1 = arith.constant 0 : i32
    return %c0_i32, %c0_i32_0 : i32, i32
  }
  func.func @transform_3(%arg0: i32, %arg1: i32, %arg2: i32) -> (i32, i32, i32, i32) {
    %c0_i32 = arith.constant 0 : i32
    %c0_i32_0 = arith.constant 0 : i32
    return %arg0, %arg1, %arg2, %c0_i32 : i32, i32, i32, i32
  }
}

</mosaic_0001>

<llo_original>
// kernel: decoder_forward.5
$region0: #{decoder_forward.5}
  #allocation0 [shape = 'u32[]', space=smem, size = 0x4, offset = 0x4, fixed_abs, tag = 'smem constant byte address 0x4 - core index']
  #allocation1 [shape = 'u32[72,128]{1,0:T(1,128)}', space=vmem, size = 0x9000, scoped, tag = 'internal scratch']
  #allocation2 [shape = 'bf16[64,16]{1,0:T(8,128)(2,1)}', space=vmem, size = 0x4000, scoped, tag = 'scratch operand']
  #allocation5 [shape = 's32[]', space=sflag, size = 0x4, offset = 0, fixed_abs, tag = 'sflag constant byte address 0x0 - dummy sync flag']
  %s0 = inlined_call_operand.vmem [shape: bf16[2,8,16,16], index: 0, kind: input, shape index: {}]
  %s1 = inlined_call_operand.vmem [shape: bf16[32,16], index: 1, kind: input, shape index: {}]
  %s2 = inlined_call_operand.vmem [shape: bf16[16,32], index: 2, kind: input, shape index: {}]
  %s3 = inlined_call_operand.hbm [shape: f32[2,8,32,32], index: 3, kind: output, shape index: {}]
  %s4 = sld [smem:[#allocation0]]
  $region45: #{decoder_forward.5} parent=0
    _
  %s6 = ssub.s32 1, %s4
  %s7 = scalar_select 0, %s6, %s4
  $region1: #{decoder_forward.5} parent=0
    #allocation3 [shape = 'u8[65536]{0}', space=vmem, size = 0x10000, scoped, tag = 'output window, operand 0']
    #allocation4 [shape = 's32[2]{0}', space=sflag, size = 0x8, scoped, tag = 'scoped memory for decoder_forward.5']
    %8 = vsyncpa [#allocation4], 0
    %s9 = scalar_lea.sflag [#allocation4], 1
    %10 = vsyncpa %s9, 0
    loop: start=0, step=1, limit=10
    $region2: #{decoder_forward.5} parent=1 // loop_pre_header
      _
    $region3: #{decoder_forward.5} parent=1 // loop_header
      %s12 = sphi 0, %s16
      %p13 = scmp.ge.s32.totalorder %s12, 10
      %s19 = sphi 0, %s38
      %s20 = sphi 0, %s34
      %s21 = sphi 0, %s30
      %s22 = sphi 0, %s19
      %s23 = sphi 0, %s20
      %s24 = sphi 0, %s21
      %s25 = sphi 0, %s22
      %s26 = sphi 0, %s23
      %s27 = sphi 0, %s24
      %s43 = sphi 0, %s45
      %s46 = sphi 0, %s43
      %s47 = sphi 0, %s46
      %s63 = sphi 0, %s47
      %s69 = sphi 0, %s71
      %s72 = sphi 0, %s69
      %s73 = sphi 0, %s72
      %s89 = sphi 0, %s73
      %s93 = sphi 0, %s93
      %s95 = sphi 0, %s93
      %s96 = sphi 0, %s95
      %s110 = sphi 0, %s96
      %s120 = sphi 0, %s122
      %s123 = sphi 0, %s120
      %s124 = sphi 0, %s123
      %s140 = sphi 0, %s124
    $region4: #{decoder_forward.5} parent=1 // loop_header_branch
      %15 = sbr.rel (%p13) target = $region8
    $region5: #{decoder_forward.5} parent=1 // loop_body
      %s17 = ssub.s32 %s12, 1
      %s18 = ssub.s32 %s12, 2
      %s28 = sadd.s32 1, %s21
      %p29 = scmp.ge.s32.totalorder %s28, 2
      %s30 = scalar_select %p29, 0, %s28
      %s31 = sadd.s32 1, %s20
      %s32 = scalar_select %p29, %s31, %s20
      %p33 = scmp.ge.s32.totalorder %s32, 2
      %s34 = scalar_select %p33, 0, %s32
      %s35 = sadd.s32 1, %s19
      %s36 = scalar_select %p33, %s35, %s19
      %p37 = scmp.ge.s32.totalorder %s36, 2
      %s38 = scalar_select %p37, 0, %s36
      %s39 = ssub.s32 %s19, %s38
      %s40 = ssub.s32 %s20, %s34
      %s41 = sor.u32 %s39, %s40
      %p42 = scmp.eq.s32.totalorder %s41, 0
      %s44 = sadd.s32 %s43, 1
      %s45 = scalar_select %p42, %s43, %s44
      %p48 = pneg %p42
      %p49 = scmp.eq.s32.totalorder %s12, 7
      %p50 = por %p48, %p49
      %p51 = scmp.ne.s32.totalorder %s43, %s46
      %p52 = scmp.eq.s32.totalorder %s12, 0
      %p53 = por %p51, %p52
      %p54 = scmp.ne.s32.totalorder %s43, %s46
      %p55 = scmp.eq.s32.totalorder %s17, 7
      %p56 = por %p54, %p55
      %p57 = scmp.ne.s32.totalorder %s46, %s47
      %p58 = scmp.eq.s32.totalorder %s17, 0
      %p59 = por %p57, %p58
      %p60 = scmp.ne.s32.totalorder %s46, %s47
      %p61 = scmp.eq.s32.totalorder %s18, 7
      %p62 = por %p60, %p61
      %p64 = scmp.ne.s32.totalorder %s47, %s63
      %p65 = scmp.eq.s32.totalorder %s18, 0
      %p66 = por %p64, %p65
      %s67 = ssub.s32 %s21, %s30
      %p68 = scmp.eq.s32.totalorder %s67, 0
      %s70 = sadd.s32 %s69, 1
      %s71 = scalar_select %p68, %s69, %s70
      %p74 = pneg %p68
      %p75 = scmp.eq.s32.totalorder %s12, 7
      %p76 = por %p74, %p75
      %p77 = scmp.ne.s32.totalorder %s69, %s72
      %p78 = scmp.eq.s32.totalorder %s12, 0
      %p79 = por %p77, %p78
      %p80 = scmp.ne.s32.totalorder %s69, %s72
      %p81 = scmp.eq.s32.totalorder %s17, 7
      %p82 = por %p80, %p81
      %p83 = scmp.ne.s32.totalorder %s72, %s73
      %p84 = scmp.eq.s32.totalorder %s17, 0
      %p85 = por %p83, %p84
      %p86 = scmp.ne.s32.totalorder %s72, %s73
      %p87 = scmp.eq.s32.totalorder %s18, 7
      %p88 = por %p86, %p87
      %p90 = scmp.ne.s32.totalorder %s73, %s89
      %p91 = scmp.eq.s32.totalorder %s18, 0
      %p92 = por %p90, %p91
      %s94 = sadd.s32 %s93, 1
      %p97 = scmp.eq.s32.totalorder %s12, 7
      %p98 = scmp.ne.s32.totalorder %s93, %s95
      %p99 = scmp.eq.s32.totalorder %s12, 0
      %p100 = por %p98, %p99
      %p101 = scmp.ne.s32.totalorder %s93, %s95
      %p102 = scmp.eq.s32.totalorder %s17, 7
      %p103 = por %p101, %p102
      %p104 = scmp.ne.s32.totalorder %s95, %s96
      %p105 = scmp.eq.s32.totalorder %s17, 0
      %p106 = por %p104, %p105
      %p107 = scmp.ne.s32.totalorder %s95, %s96
      %p108 = scmp.eq.s32.totalorder %s18, 7
      %p109 = por %p107, %p108
      %p111 = scmp.ne.s32.totalorder %s96, %s110
      %p112 = scmp.eq.s32.totalorder %s18, 0
      %p113 = por %p111, %p112
      %s114 = ssub.s32 %s19, %s38
      %s115 = ssub.s32 %s20, %s34
      %s116 = sor.u32 %s114, %s115
      %s117 = ssub.s32 %s21, %s30
      %s118 = sor.u32 %s116, %s117
      %p119 = scmp.eq.s32.totalorder %s118, 0
      %s121 = sadd.s32 %s120, 1
      %s122 = scalar_select %p119, %s120, %s121
      %p125 = pneg %p119
      %p126 = scmp.eq.s32.totalorder %s12, 7
      %p127 = por %p125, %p126
      %p128 = scmp.ne.s32.totalorder %s120, %s123
      %p129 = scmp.eq.s32.totalorder %s12, 0
      %p130 = por %p128, %p129
      %p131 = scmp.ne.s32.totalorder %s120, %s123
      %p132 = scmp.eq.s32.totalorder %s17, 7
      %p133 = por %p131, %p132
      %p134 = scmp.ne.s32.totalorder %s123, %s124
      %p135 = scmp.eq.s32.totalorder %s17, 0
      %p136 = por %p134, %p135
      %p137 = scmp.ne.s32.totalorder %s123, %s124
      %p138 = scmp.eq.s32.totalorder %s18, 7
      %p139 = por %p137, %p138
      %p141 = scmp.ne.s32.totalorder %s124, %s140
      %p142 = scmp.eq.s32.totalorder %s18, 0
      %p143 = por %p141, %p142
      %p144 = scmp.le.s32.totalorder 1, %s12
      %p145 = scmp.lt.s32.totalorder %s12, 9
      %p146 = pnand %p144, %p145
      %p147 = pneg %p146
      // Predicated region
      $region9: #{decoder_forward.5} parent=5 // pred_check
        _
      $region10: #{decoder_forward.5} parent=5 // pred_check_branch
        %149 = sbr.rel (%p146) target = $region12
      $region11: #{decoder_forward.5} parent=5 // pred_region
        %s150 = ssub.s32 %s12, 1
        // Predicated region
        $region13: #{decoder_forward.5} parent=11 // pred_check
          %p151 = pneg %p106
        $region14: #{decoder_forward.5} parent=11 // pred_check_branch
          %153 = sbr.rel (%p151) target = $region16
        $region15: #{decoder_forward.5} parent=11 // pred_region
          _
        $region16: #{decoder_forward.5} parent=11 // pred_fallthru
          _
      $region12: #{decoder_forward.5} parent=5 // pred_fallthru
        _
      %p154 = scmp.lt.s32.totalorder %s12, 8
      // Predicated region
      $region17: #{decoder_forward.5} parent=5 // pred_check
        %p155 = pneg %p154
      $region18: #{decoder_forward.5} parent=5 // pred_check_branch
        %157 = sbr.rel (%p155) target = $region20
      $region19: #{decoder_forward.5} parent=5 // pred_region
        // Predicated region
        $region21: #{decoder_forward.5} parent=19 // pred_check
          %p158 = pneg %p53
        $region22: #{decoder_forward.5} parent=19 // pred_check_branch
          %160 = sbr.rel (%p158) target = $region24
        $region23: #{decoder_forward.5} parent=19 // pred_region
          %s161 = smul.u32 4, %s20
          %p162 = scmp.lt.s32.totalorder %s19, 1
          %s163 = scalar_select %p162, %s19, 1
          %p164 = scmp.lt.s32.totalorder %s161, 7
          %s165 = scalar_select %p164, %s161, 7
          %s166 = smul.addr %s165, 2
          %s167 = smul.addr %s163, 16
          %s168 = sadd.s32 %s166, %s167
          %s169 = smul.addr %s168, 4
          %s170 = scalar_lea.vmem %s0, %s169
          %s171 = smul.u32 4, %s20
        $region24: #{decoder_forward.5} parent=19 // pred_fallthru
          _
        // Predicated region
        $region25: #{decoder_forward.5} parent=19 // pred_check
          %p172 = pneg %p79
        $region26: #{decoder_forward.5} parent=19 // pred_check_branch
          %174 = sbr.rel (%p172) target = $region28
        $region27: #{decoder_forward.5} parent=19 // pred_region
          %s175 = smul.u32 2, %s21
          %p176 = scmp.lt.s32.totalorder %s175, 3
          %s177 = scalar_select %p176, %s175, 3
          %s178 = smul.addr %s177, 4
          %s179 = scalar_lea.vmem %s1, %s178
          %s180 = smul.u32 2, %s21
        $region28: #{decoder_forward.5} parent=19 // pred_fallthru
          _
      $region20: #{decoder_forward.5} parent=5 // pred_fallthru
        _
      %p181 = scmp.le.s32.totalorder 1, %s12
      %p182 = scmp.lt.s32.totalorder %s12, 9
      %p183 = pnand %p181, %p182
      %p184 = pneg %p183
      // Predicated region
      $region29: #{decoder_forward.5} parent=5 // pred_check
        _
      $region30: #{decoder_forward.5} parent=5 // pred_check_branch
        %186 = sbr.rel (%p183) target = $region32
      $region31: #{decoder_forward.5} parent=5 // pred_region
        %s187 = ssub.s32 %s12, 1
        %s188 = smul.u32 4, %s23
        %p189 = scmp.lt.s32.totalorder %s22, 1
        %s190 = scalar_select %p189, %s22, 1
        %p191 = scmp.lt.s32.totalorder %s188, 7
        %s192 = scalar_select %p191, %s188, 7
        %s193 = smul.addr %s192, 2
        %s194 = smul.addr %s190, 16
        %s195 = sadd.s32 %s193, %s194
        %s196 = smul.addr %s195, 4
        %s197 = scalar_lea.vmem %s0, %s196
        %p198 = pneg %p59
        %p199 = pneg %p56
        %s200 = smul.u32 2, %s24
        %p201 = scmp.lt.s32.totalorder %s200, 3
        %s202 = scalar_select %p201, %s200, 3
        %s203 = smul.addr %s202, 4
        %s204 = scalar_lea.vmem %s1, %s203
        %p205 = pneg %p85
        %p206 = pneg %p82
        %p207 = pneg %p106
        %p208 = pneg %p103
        %p209 = pneg %p136
        %p210 = pneg %p133
        %s211 = sand.u32 %s123, 1
        %s212 = scalar_lea.sflag [#allocation4], %s211
        %s213 = sand.u32 %s123, 1
        %s214 = smul.addr %s213, 64
        %s215 = scalar_lea.vmem [#allocation3], %s214
        %s216 = smul.u32 4, %s23
        %p217 = scmp.lt.s32.totalorder %s22, 1
        %s218 = scalar_select %p217, %s22, 1
        %p219 = scmp.lt.s32.totalorder %s216, 7
        %s220 = scalar_select %p219, %s216, 7
        %s221 = smul.addr %s220, 2
        %s222 = smul.addr %s218, 16
        %s223 = sadd.s32 %s221, %s222
        %s224 = smul.addr %s223, 4
        %s225 = scalar_lea.vmem %s0, %s224
        %s226 = smul.u32 4, %s23
        %s227 = smul.u32 2, %s24
        %p228 = scmp.lt.s32.totalorder %s227, 3
        %s229 = scalar_select %p228, %s227, 3
        %s230 = smul.addr %s229, 4
        %s231 = scalar_lea.vmem %s1, %s230
        %s232 = smul.u32 2, %s24
        %s233 = smul.u32 4, %s23
        %s234 = smul.u32 2, %s24
        %v236 = vld [vmem:[%s231] sm:$0xf]
        %v237 = vld [vmem:[%s231 + $0x4] sm:$0xf]
        %v238 = vld [vmem:[%s225] sm:$0xf]
        %v239 = vld [vmem:[%s225 + $0x4] sm:$0xf]
        %v242 = vunpack.c.l.b16 %v236
        %v243 = vunpack.c.l.b16 %v237
        %v244 = vpack.c.b16 %v243, %v242
        %v247 = vunpack.c.l.b16 %v238
        %v248 = vunpack.c.l.b16 %v239
        %v249 = vpack.c.b16 %v248, %v247
        %vm251 = vcmask 130048
        %v253 = vsel %vm251, %v244, 0
        %255 = vmatpush.bf16.msra.mxu0 0
        %256 = vmatpush.bf16.msra.mxu0 0
        %257 = vmatpush.bf16.msra.mxu0 0
        %258 = vmatpush.bf16.msra.mxu0 0
        %259 = vmatpush.bf16.msra.mxu0 0
        %260 = vmatpush.bf16.msra.mxu0 0
        %261 = vmatpush.bf16.msra.mxu0 0
        %262 = vmatpush.bf16.msra.mxu0 %v249
        %263 = vmatmul.bf16.gmra.mxu0 %v253
        %v264 = vpop.f32.mrf.mxu0
        %v265 = vadd.f32 0.0, %v264
        %v266 = vpop.f32.mrf.mxu0
        %v267 = vadd.f32 0.0, %v266
        %268 = vdwg.mxu0
        %v269 = vpack.c.bf16 %v265, %v265
        %v270 = vpack.c.bf16 %v267, %v267
        %vm271 = vcmask 125952
        %272 = vst.msk [vmem:[#allocation2] sm:$0xf] %vm271, %v269
        %273 = vst.msk [vmem:[#allocation2 + $0x4] sm:$0xf] %vm271, %v270
        %v274 = vld [vmem:[%s231] sm:$0xf]
        %v275 = vld [vmem:[%s231 + $0x4] sm:$0xf]
        %s276 = scalar_lea.vmem %s225, 8
        %v277 = vld [vmem:[%s276] sm:$0xf]
        %v278 = vld [vmem:[%s276 + $0x4] sm:$0xf]
        %v281 = vunpack.c.l.b16 %v274
        %v282 = vunpack.c.l.b16 %v275
        %v283 = vpack.c.b16 %v282, %v281
        %v286 = vunpack.c.l.b16 %v277
        %v287 = vunpack.c.l.b16 %v278
        %v288 = vpack.c.b16 %v287, %v286
        %v291 = vsel %vm251, %v283, 0
        %293 = vmatpush.bf16.msra.mxu0 0
        %294 = vmatpush.bf16.msra.mxu0 0
        %295 = vmatpush.bf16.msra.mxu0 0
        %296 = vmatpush.bf16.msra.mxu0 0
        %297 = vmatpush.bf16.msra.mxu0 0
        %298 = vmatpush.bf16.msra.mxu0 0
        %299 = vmatpush.bf16.msra.mxu0 0
        %300 = vmatpush.bf16.msra.mxu0 %v288
        %301 = vmatmul.bf16.gmra.mxu0 %v291
        %v302 = vpop.f32.mrf.mxu0
        %v303 = vadd.f32 0.0, %v302
        %v304 = vpop.f32.mrf.mxu0
        %v305 = vadd.f32 0.0, %v304
        %306 = vdwg.mxu0
        %v307 = vpack.c.bf16 %v303, %v303
        %v308 = vpack.c.bf16 %v305, %v305
        %309 = vst.msk [vmem:[#allocation2 + $0x8] sm:$0xf] %vm271, %v307
        %310 = vst.msk [vmem:[#allocation2 + $0xc] sm:$0xf] %vm271, %v308
        %v311 = vld [vmem:[%s231] sm:$0xf]
        %v312 = vld [vmem:[%s231 + $0x4] sm:$0xf]
        %s313 = scalar_lea.vmem %s225, 16
        %v314 = vld [vmem:[%s313] sm:$0xf]
        %v315 = vld [vmem:[%s313 + $0x4] sm:$0xf]
        %v318 = vunpack.c.l.b16 %v311
        %v319 = vunpack.c.l.b16 %v312
        %v320 = vpack.c.b16 %v319, %v318
        %v323 = vunpack.c.l.b16 %v314
        %v324 = vunpack.c.l.b16 %v315
        %v325 = vpack.c.b16 %v324, %v323
        %v328 = vsel %vm251, %v320, 0
        %330 = vmatpush.bf16.msra.mxu0 0
        %331 = vmatpush.bf16.msra.mxu0 0
        %332 = vmatpush.bf16.msra.mxu0 0
        %333 = vmatpush.bf16.msra.mxu0 0
        %334 = vmatpush.bf16.msra.mxu0 0
        %335 = vmatpush.bf16.msra.mxu0 0
        %336 = vmatpush.bf16.msra.mxu0 0
        %337 = vmatpush.bf16.msra.mxu0 %v325
        %338 = vmatmul.bf16.gmra.mxu0 %v328
        %v339 = vpop.f32.mrf.mxu0
        %v340 = vadd.f32 0.0, %v339
        %v341 = vpop.f32.mrf.mxu0
        %v342 = vadd.f32 0.0, %v341
        %343 = vdwg.mxu0
        %v344 = vpack.c.bf16 %v340, %v340
        %v345 = vpack.c.bf16 %v342, %v342
        %346 = vst.msk [vmem:[#allocation2 + $0x10] sm:$0xf] %vm271, %v344
        %347 = vst.msk [vmem:[#allocation2 + $0x14] sm:$0xf] %vm271, %v345
        %v348 = vld [vmem:[%s231] sm:$0xf]
        %v349 = vld [vmem:[%s231 + $0x4] sm:$0xf]
        %s350 = scalar_lea.vmem %s225, 24
        %v351 = vld [vmem:[%s350] sm:$0xf]
        %v352 = vld [vmem:[%s350 + $0x4] sm:$0xf]
        %v355 = vunpack.c.l.b16 %v348
        %v356 = vunpack.c.l.b16 %v349
        %v357 = vpack.c.b16 %v356, %v355
        %v360 = vunpack.c.l.b16 %v351
        %v361 = vunpack.c.l.b16 %v352
        %v362 = vpack.c.b16 %v361, %v360
        %v365 = vsel %vm251, %v357, 0
        %367 = vmatpush.bf16.msra.mxu0 0
        %368 = vmatpush.bf16.msra.mxu0 0
        %369 = vmatpush.bf16.msra.mxu0 0
        %370 = vmatpush.bf16.msra.mxu0 0
        %371 = vmatpush.bf16.msra.mxu0 0
        %372 = vmatpush.bf16.msra.mxu0 0
        %373 = vmatpush.bf16.msra.mxu0 0
        %374 = vmatpush.bf16.msra.mxu0 %v362
        %375 = vmatmul.bf16.gmra.mxu0 %v365
        %v376 = vpop.f32.mrf.mxu0
        %v377 = vadd.f32 0.0, %v376
        %v378 = vpop.f32.mrf.mxu0
        %v379 = vadd.f32 0.0, %v378
        %380 = vdwg.mxu0
        %v381 = vpack.c.bf16 %v377, %v377
        %v382 = vpack.c.bf16 %v379, %v379
        %383 = vst.msk [vmem:[#allocation2 + $0x18] sm:$0xf] %vm271, %v381
        %384 = vst.msk [vmem:[#allocation2 + $0x1c] sm:$0xf] %vm271, %v382
        %v385 = vld [vmem:[#allocation2] sm:$0xf]
        %v386 = vld [vmem:[#allocation2 + $0x4] sm:$0xf]
        %v387 = vld [vmem:[#allocation2 + $0x8] sm:$0xf]
        %v388 = vld [vmem:[#allocation2 + $0xc] sm:$0xf]
        %v389 = vld [vmem:[#allocation2 + $0x10] sm:$0xf]
        %v390 = vld [vmem:[#allocation2 + $0x14] sm:$0xf]
        %v391 = vld [vmem:[#allocation2 + $0x18] sm:$0xf]
        %v392 = vld [vmem:[#allocation2 + $0x1c] sm:$0xf]
        %v393 = vld [vmem:[%s2] sm:$0xf]
        %v394 = vld [vmem:[%s2 + $0x4] sm:$0xf]
        %v403 = vunpack.c.l.b16 %v385
        %v404 = vunpack.c.l.b16 %v386
        %v405 = vunpack.c.l.b16 %v387
        %v406 = vunpack.c.l.b16 %v388
        %v407 = vunpack.c.l.b16 %v389
        %v408 = vunpack.c.l.b16 %v390
        %v409 = vunpack.c.l.b16 %v391
        %v410 = vunpack.c.l.b16 %v392
        %v411 = vpack.c.b16 %v404, %v403
        %v412 = vpack.c.b16 %v406, %v405
        %v413 = vpack.c.b16 %v408, %v407
        %v414 = vpack.c.b16 %v410, %v409
        %v417 = vunpack.c.l.b16 %v393
        %v418 = vunpack.c.l.b16 %v394
        %v419 = vpack.c.b16 %v418, %v417
        %v422 = vsel %vm251, %v411, 0
        %v425 = vsel %vm251, %v412, 0
        %v428 = vsel %vm251, %v413, 0
        %v431 = vsel %vm251, %v414, 0
        %433 = vmatpush.bf16.msra.mxu0 0
        %434 = vmatpush.bf16.msra.mxu0 0
        %435 = vmatpush.bf16.msra.mxu0 0
        %436 = vmatpush.bf16.msra.mxu0 0
        %437 = vmatpush.bf16.msra.mxu0 0
        %438 = vmatpush.bf16.msra.mxu0 0
        %439 = vmatpush.bf16.msra.mxu0 0
        %440 = vmatpush.bf16.msra.mxu0 %v419
        %441 = vmatmul.bf16.gmra.mxu0 %v422
        %v442 = vpop.f32.mrf.mxu0
        %v443 = vadd.f32 0.0, %v442
        %v444 = vpop.f32.mrf.mxu0
        %v445 = vadd.f32 0.0, %v444
        %446 = vmatmul.bf16.gmra.mxu0 %v425
        %v447 = vpop.f32.mrf.mxu0
        %v448 = vadd.f32 0.0, %v447
        %v449 = vpop.f32.mrf.mxu0
        %v450 = vadd.f32 0.0, %v449
        %451 = vmatmul.bf16.gmra.mxu0 %v428
        %v452 = vpop.f32.mrf.mxu0
        %v453 = vadd.f32 0.0, %v452
        %v454 = vpop.f32.mrf.mxu0
        %v455 = vadd.f32 0.0, %v454
        %456 = vmatmul.bf16.gmra.mxu0 %v431
        %v457 = vpop.f32.mrf.mxu0
        %v458 = vadd.f32 0.0, %v457
        %v459 = vpop.f32.mrf.mxu0
        %v460 = vadd.f32 0.0, %v459
        %461 = vdwg.mxu0
        %vm462 = vcmask 261120
        %463 = vst.msk [vmem:[%s215] sm:$0xff] %vm462, %v443
        %464 = vst.msk [vmem:[%s215 + $0x8] sm:$0xff] %vm462, %v445
        %s465 = scalar_lea.vmem %s215, 16 [#allocation3]
        %466 = vst.msk [vmem:[%s465] sm:$0xff] %vm462, %v448
        %467 = vst.msk [vmem:[%s465 + $0x8] sm:$0xff] %vm462, %v450
        %s468 = scalar_lea.vmem %s215, 32 [#allocation3]
        %469 = vst.msk [vmem:[%s468] sm:$0xff] %vm462, %v453
        %470 = vst.msk [vmem:[%s468 + $0x8] sm:$0xff] %vm462, %v455
        %s471 = scalar_lea.vmem %s215, 48 [#allocation3]
        %472 = vst.msk [vmem:[%s471] sm:$0xff] %vm462, %v458
        %473 = vst.msk [vmem:[%s471 + $0x8] sm:$0xff] %vm462, %v460
        %s474 = sand.u32 %s123, 1
        %s475 = scalar_lea.sflag [#allocation4], %s474
        %s476 = sand.u32 %s123, 1
        %s477 = smul.addr %s476, 64
        %s478 = scalar_lea.vmem [#allocation3], %s477
        // Predicated region
        $region33: #{decoder_forward.5} parent=31 // pred_check
          %p479 = pneg %p133
        $region34: #{decoder_forward.5} parent=31 // pred_check_branch
          %481 = sbr.rel (%p479) target = $region36
        $region35: #{decoder_forward.5} parent=31 // pred_region
          #allocation6 [shape = 'u32[6]{0}', space=smem, size = 0x18, scoped, tag = 'DMA stride descriptor']
          %s482 = smul.u32 4, %s23
          %s483 = smul.u32 2, %s24
          %485 = vsyncadd %s475, 0
          %s486 = smul.addr %s482, 4
          %s487 = sadd.s32 %s483, %s486
          %s488 = smul.addr %s22, 32
          %s489 = sadd.s32 %s487, %s488
          %s490 = smul.addr %s489, 8
          %s491 = scalar_lea.hbm %s3, %s490
          %s493 = sshll.u32 1, 14
          %s494 = sxor.u32 4294967295, %s493
          %s497 = sshll.u32 7, 18
          %s498 = sxor.u32 4294967295, %s497
          %s499 = sand.u32 0, %s498
          %s501 = sor.u32 %s499, 0
          %s502 = sshll.u32 %s478, 4
          %s503 = int_to_ptr.vmem [resolvable:$true] %s502
          %s504 = sshll.u32 %s491, 4
          %s505 = int_to_ptr.hbm [resolvable:$true] %s504
          %511 = sst [smem:[#allocation6]] 256
          %s512 = scalar_lea.smem [#allocation6], 1
          %513 = sst [smem:[%s512]] 512
          %s514 = scalar_lea.smem [#allocation6], 2
          %515 = sst [smem:[%s514]] 2
          %s516 = scalar_lea.smem [#allocation6], 3
          %517 = sst [smem:[%s516]] 128
          %s518 = scalar_lea.smem [#allocation6], 4
          %519 = sst [smem:[%s518]] 128
          %s520 = scalar_lea.smem [#allocation6], 5
          %521 = sst [smem:[%s520]] 8
          %523 = dma.general %s503, 1024, %s505, %s475, [#allocation5], [#allocation6], %s501, 0
        $region36: #{decoder_forward.5} parent=31 // pred_fallthru
          _
      $region32: #{decoder_forward.5} parent=5 // pred_fallthru
        _
      %p524 = scmp.le.s32.totalorder 2, %s12
      // Predicated region
      $region37: #{decoder_forward.5} parent=5 // pred_check
        %p525 = pneg %p524
      $region38: #{decoder_forward.5} parent=5 // pred_check_branch
        %527 = sbr.rel (%p525) target = $region40
      $region39: #{decoder_forward.5} parent=5 // pred_region
        %s528 = ssub.s32 %s12, 2
        // Predicated region
        $region41: #{decoder_forward.5} parent=39 // pred_check
          %p529 = pneg %p139
        $region42: #{decoder_forward.5} parent=39 // pred_check_branch
          %531 = sbr.rel (%p529) target = $region44
        $region43: #{decoder_forward.5} parent=39 // pred_region
          %s532 = sand.u32 %s124, 1
          %s533 = scalar_lea.sflag [#allocation4], %s532
          %s534 = sand.u32 %s124, 1
          %s535 = smul.addr %s534, 64
          %s536 = scalar_lea.vmem [#allocation3], %s535
          %538 = dma.done %s533, 1024
        $region44: #{decoder_forward.5} parent=39 // pred_fallthru
          _
      $region40: #{decoder_forward.5} parent=5 // pred_fallthru
        _
    $region6: #{decoder_forward.5} parent=1 // loop_footer
      %s16 = sadd.s32 1, %s12
    $region7: #{decoder_forward.5} parent=1 // loop_footer_branch
      %11 = sbr.rel target = $region3
    $region8: #{decoder_forward.5} parent=1 // loop_exit
      _
    %539 = vsyncpa [#allocation4], 1
    %s540 = scalar_lea.sflag [#allocation4], 1
    %541 = vsyncpa %s540, 1

// kernel: decoder_forward.3
$region0: #{decoder_forward.3}
  #allocation0 [shape = 'u32[]', space=smem, size = 0x4, offset = 0x4, fixed_abs, tag = 'smem constant byte address 0x4 - core index']
  #allocation1 [shape = 'u32[72,128]{1,0:T(1,128)}', space=vmem, size = 0x9000, scoped, tag = 'internal scratch']
  #allocation2 [shape = 'bf16[10,32,128]{2,1,0:T(8,128)(2,1)}', space=vmem, size = 0x14000, scoped, tag = 'scratch operand']
  %s0 = inlined_call_operand.vmem [shape: bf16[2,2,16,128], index: 0, kind: input, shape index: {}]
  %s1 = inlined_call_operand.vmem [shape: bf16[2,16,16,128], index: 1, kind: input, shape index: {}]
  %s2 = inlined_call_operand.vmem [shape: bf16[2,2,16,128], index: 2, kind: input, shape index: {}]
  %s3 = inlined_call_operand.vmem [shape: bf16[3,384,128], index: 3, kind: input, shape index: {}]
  %s4 = inlined_call_operand.vmem [shape: f32[1,128], index: 4, kind: input, shape index: {}]
  %s5 = inlined_call_operand.vmem [shape: f32[1,128], index: 5, kind: input, shape index: {}]
  %s6 = inlined_call_operand.vmem [shape: bf16[2,16,16,128], index: 6, kind: output, shape index: {}]
  %s7 = sld [smem:[#allocation0]]
  $region57: #{decoder_forward.3} parent=0
    _
  %s9 = ssub.s32 1, %s7
  %s10 = scalar_select 0, %s9, %s7
  loop: start=0, step=1, limit=6
  $region2: #{decoder_forward.3} parent=0 // loop_pre_header
    _
  $region3: #{decoder_forward.3} parent=0 // loop_header
    %s12 = sphi 0, %s16
    %p13 = scmp.ge.s32.totalorder %s12, 6
    %s19 = sphi 0, %s31
    %s20 = sphi 0, %s27
    %s21 = sphi 0, %s19
    %s22 = sphi 0, %s20
    %s23 = sphi 0, %s21
    %s24 = sphi 0, %s22
    %s36 = sphi 0, %s38
    %s39 = sphi 0, %s36
    %s40 = sphi 0, %s39
    %s56 = sphi 0, %s40
    %s64 = sphi 0, %s66
    %s67 = sphi 0, %s64
    %s68 = sphi 0, %s67
    %s84 = sphi 0, %s68
    %s92 = sphi 0, %s94
    %s95 = sphi 0, %s92
    %s96 = sphi 0, %s95
    %s112 = sphi 0, %s96
    %s116 = sphi 0, %s116
    %s118 = sphi 0, %s116
    %s119 = sphi 0, %s118
    %s133 = sphi 0, %s119
    %s137 = sphi 0, %s137
    %s139 = sphi 0, %s137
    %s140 = sphi 0, %s139
    %s154 = sphi 0, %s140
    %s158 = sphi 0, %s158
    %s160 = sphi 0, %s158
    %s161 = sphi 0, %s160
    %s175 = sphi 0, %s161
    %s183 = sphi 0, %s185
    %s186 = sphi 0, %s183
    %s187 = sphi 0, %s186
    %s203 = sphi 0, %s187
  $region4: #{decoder_forward.3} parent=0 // loop_header_branch
    %15 = sbr.rel (%p13) target = $region8
  $region5: #{decoder_forward.3} parent=0 // loop_body
    %s17 = ssub.s32 %s12, 1
    %s18 = ssub.s32 %s12, 2
    %s25 = sadd.s32 1, %s20
    %p26 = scmp.ge.s32.totalorder %s25, 2
    %s27 = scalar_select %p26, 0, %s25
    %s28 = sadd.s32 1, %s19
    %s29 = scalar_select %p26, %s28, %s19
    %p30 = scmp.ge.s32.totalorder %s29, 2
    %s31 = scalar_select %p30, 0, %s29
    %s32 = ssub.s32 %s19, %s31
    %s33 = ssub.s32 %s20, %s27
    %s34 = sor.u32 %s32, %s33
    %p35 = scmp.eq.s32.totalorder %s34, 0
    %s37 = sadd.s32 %s36, 1
    %s38 = scalar_select %p35, %s36, %s37
    %p41 = pneg %p35
    %p42 = scmp.eq.s32.totalorder %s12, 3
    %p43 = por %p41, %p42
    %p44 = scmp.ne.s32.totalorder %s36, %s39
    %p45 = scmp.eq.s32.totalorder %s12, 0
    %p46 = por %p44, %p45
    %p47 = scmp.ne.s32.totalorder %s36, %s39
    %p48 = scmp.eq.s32.totalorder %s17, 3
    %p49 = por %p47, %p48
    %p50 = scmp.ne.s32.totalorder %s39, %s40
    %p51 = scmp.eq.s32.totalorder %s17, 0
    %p52 = por %p50, %p51
    %p53 = scmp.ne.s32.totalorder %s39, %s40
    %p54 = scmp.eq.s32.totalorder %s18, 3
    %p55 = por %p53, %p54
    %p57 = scmp.ne.s32.totalorder %s40, %s56
    %p58 = scmp.eq.s32.totalorder %s18, 0
    %p59 = por %p57, %p58
    %s60 = ssub.s32 %s19, %s31
    %s61 = ssub.s32 %s20, %s27
    %s62 = sor.u32 %s60, %s61
    %p63 = scmp.eq.s32.totalorder %s62, 0
    %s65 = sadd.s32 %s64, 1
    %s66 = scalar_select %p63, %s64, %s65
    %p69 = pneg %p63
    %p70 = scmp.eq.s32.totalorder %s12, 3
    %p71 = por %p69, %p70
    %p72 = scmp.ne.s32.totalorder %s64, %s67
    %p73 = scmp.eq.s32.totalorder %s12, 0
    %p74 = por %p72, %p73
    %p75 = scmp.ne.s32.totalorder %s64, %s67
    %p76 = scmp.eq.s32.totalorder %s17, 3
    %p77 = por %p75, %p76
    %p78 = scmp.ne.s32.totalorder %s67, %s68
    %p79 = scmp.eq.s32.totalorder %s17, 0
    %p80 = por %p78, %p79
    %p81 = scmp.ne.s32.totalorder %s67, %s68
    %p82 = scmp.eq.s32.totalorder %s18, 3
    %p83 = por %p81, %p82
    %p85 = scmp.ne.s32.totalorder %s68, %s84
    %p86 = scmp.eq.s32.totalorder %s18, 0
    %p87 = por %p85, %p86
    %s88 = ssub.s32 %s19, %s31
    %s89 = ssub.s32 %s20, %s27
    %s90 = sor.u32 %s88, %s89
    %p91 = scmp.eq.s32.totalorder %s90, 0
    %s93 = sadd.s32 %s92, 1
    %s94 = scalar_select %p91, %s92, %s93
    %p97 = pneg %p91
    %p98 = scmp.eq.s32.totalorder %s12, 3
    %p99 = por %p97, %p98
    %p100 = scmp.ne.s32.totalorder %s92, %s95
    %p101 = scmp.eq.s32.totalorder %s12, 0
    %p102 = por %p100, %p101
    %p103 = scmp.ne.s32.totalorder %s92, %s95
    %p104 = scmp.eq.s32.totalorder %s17, 3
    %p105 = por %p103, %p104
    %p106 = scmp.ne.s32.totalorder %s95, %s96
    %p107 = scmp.eq.s32.totalorder %s17, 0
    %p108 = por %p106, %p107
    %p109 = scmp.ne.s32.totalorder %s95, %s96
    %p110 = scmp.eq.s32.totalorder %s18, 3
    %p111 = por %p109, %p110
    %p113 = scmp.ne.s32.totalorder %s96, %s112
    %p114 = scmp.eq.s32.totalorder %s18, 0
    %p115 = por %p113, %p114
    %s117 = sadd.s32 %s116, 1
    %p120 = scmp.eq.s32.totalorder %s12, 3
    %p121 = scmp.ne.s32.totalorder %s116, %s118
    %p122 = scmp.eq.s32.totalorder %s12, 0
    %p123 = por %p121, %p122
    %p124 = scmp.ne.s32.totalorder %s116, %s118
    %p125 = scmp.eq.s32.totalorder %s17, 3
    %p126 = por %p124, %p125
    %p127 = scmp.ne.s32.totalorder %s118, %s119
    %p128 = scmp.eq.s32.totalorder %s17, 0
    %p129 = por %p127, %p128
    %p130 = scmp.ne.s32.totalorder %s118, %s119
    %p131 = scmp.eq.s32.totalorder %s18, 3
    %p132 = por %p130, %p131
    %p134 = scmp.ne.s32.totalorder %s119, %s133
    %p135 = scmp.eq.s32.totalorder %s18, 0
    %p136 = por %p134, %p135
    %s138 = sadd.s32 %s137, 1
    %p141 = scmp.eq.s32.totalorder %s12, 3
    %p142 = scmp.ne.s32.totalorder %s137, %s139
    %p143 = scmp.eq.s32.totalorder %s12, 0
    %p144 = por %p142, %p143
    %p145 = scmp.ne.s32.totalorder %s137, %s139
    %p146 = scmp.eq.s32.totalorder %s17, 3
    %p147 = por %p145, %p146
    %p148 = scmp.ne.s32.totalorder %s139, %s140
    %p149 = scmp.eq.s32.totalorder %s17, 0
    %p150 = por %p148, %p149
    %p151 = scmp.ne.s32.totalorder %s139, %s140
    %p152 = scmp.eq.s32.totalorder %s18, 3
    %p153 = por %p151, %p152
    %p155 = scmp.ne.s32.totalorder %s140, %s154
    %p156 = scmp.eq.s32.totalorder %s18, 0
    %p157 = por %p155, %p156
    %s159 = sadd.s32 %s158, 1
    %p162 = scmp.eq.s32.totalorder %s12, 3
    %p163 = scmp.ne.s32.totalorder %s158, %s160
    %p164 = scmp.eq.s32.totalorder %s12, 0
    %p165 = por %p163, %p164
    %p166 = scmp.ne.s32.totalorder %s158, %s160
    %p167 = scmp.eq.s32.totalorder %s17, 3
    %p168 = por %p166, %p167
    %p169 = scmp.ne.s32.totalorder %s160, %s161
    %p170 = scmp.eq.s32.totalorder %s17, 0
    %p171 = por %p169, %p170
    %p172 = scmp.ne.s32.totalorder %s160, %s161
    %p173 = scmp.eq.s32.totalorder %s18, 3
    %p174 = por %p172, %p173
    %p176 = scmp.ne.s32.totalorder %s161, %s175
    %p177 = scmp.eq.s32.totalorder %s18, 0
    %p178 = por %p176, %p177
    %s179 = ssub.s32 %s19, %s31
    %s180 = ssub.s32 %s20, %s27
    %s181 = sor.u32 %s179, %s180
    %p182 = scmp.eq.s32.totalorder %s181, 0
    %s184 = sadd.s32 %s183, 1
    %s185 = scalar_select %p182, %s183, %s184
    %p188 = pneg %p182
    %p189 = scmp.eq.s32.totalorder %s12, 3
    %p190 = por %p188, %p189
    %p191 = scmp.ne.s32.totalorder %s183, %s186
    %p192 = scmp.eq.s32.totalorder %s12, 0
    %p193 = por %p191, %p192
    %p194 = scmp.ne.s32.totalorder %s183, %s186
    %p195 = scmp.eq.s32.totalorder %s17, 3
    %p196 = por %p194, %p195
    %p197 = scmp.ne.s32.totalorder %s186, %s187
    %p198 = scmp.eq.s32.totalorder %s17, 0
    %p199 = por %p197, %p198
    %p200 = scmp.ne.s32.totalorder %s186, %s187
    %p201 = scmp.eq.s32.totalorder %s18, 3
    %p202 = por %p200, %p201
    %p204 = scmp.ne.s32.totalorder %s187, %s203
    %p205 = scmp.eq.s32.totalorder %s18, 0
    %p206 = por %p204, %p205
    %p207 = scmp.le.s32.totalorder 1, %s12
    %p208 = scmp.lt.s32.totalorder %s12, 5
    %p209 = pnand %p207, %p208
    %p210 = pneg %p209
    // Predicated region
    $region9: #{decoder_forward.3} parent=5 // pred_check
      _
    $region10: #{decoder_forward.3} parent=5 // pred_check_branch
      %212 = sbr.rel (%p209) target = $region12
    $region11: #{decoder_forward.3} parent=5 // pred_region
      %s213 = ssub.s32 %s12, 1
      // Predicated region
      $region13: #{decoder_forward.3} parent=11 // pred_check
        %p214 = pneg %p129
      $region14: #{decoder_forward.3} parent=11 // pred_check_branch
        %216 = sbr.rel (%p214) target = $region16
      $region15: #{decoder_forward.3} parent=11 // pred_region
        _
      $region16: #{decoder_forward.3} parent=11 // pred_fallthru
        _
      // Predicated region
      $region17: #{decoder_forward.3} parent=11 // pred_check
        %p217 = pneg %p150
      $region18: #{decoder_forward.3} parent=11 // pred_check_branch
        %219 = sbr.rel (%p217) target = $region20
      $region19: #{decoder_forward.3} parent=11 // pred_region
        _
      $region20: #{decoder_forward.3} parent=11 // pred_fallthru
        _
      // Predicated region
      $region21: #{decoder_forward.3} parent=11 // pred_check
        %p220 = pneg %p171
      $region22: #{decoder_forward.3} parent=11 // pred_check_branch
        %222 = sbr.rel (%p220) target = $region24
      $region23: #{decoder_forward.3} parent=11 // pred_region
        _
      $region24: #{decoder_forward.3} parent=11 // pred_fallthru
        _
    $region12: #{decoder_forward.3} parent=5 // pred_fallthru
      _
    %p223 = scmp.lt.s32.totalorder %s12, 4
    // Predicated region
    $region25: #{decoder_forward.3} parent=5 // pred_check
      %p224 = pneg %p223
    $region26: #{decoder_forward.3} parent=5 // pred_check_branch
      %226 = sbr.rel (%p224) target = $region28
    $region27: #{decoder_forward.3} parent=5 // pred_region
      // Predicated region
      $region29: #{decoder_forward.3} parent=27 // pred_check
        %p227 = pneg %p46
      $region30: #{decoder_forward.3} parent=27 // pred_check_branch
        %229 = sbr.rel (%p227) target = $region32
      $region31: #{decoder_forward.3} parent=27 // pred_region
        %p230 = scmp.lt.s32.totalorder %s19, 1
        %s231 = scalar_select %p230, %s19, 1
        %p232 = scmp.lt.s32.totalorder %s20, 1
        %s233 = scalar_select %p232, %s20, 1
        %s234 = smul.addr %s233, 2
        %s235 = smul.addr %s231, 4
        %s236 = sadd.s32 %s234, %s235
        %s237 = smul.addr %s236, 4
        %s238 = scalar_lea.vmem %s0, %s237
      $region32: #{decoder_forward.3} parent=27 // pred_fallthru
        _
      // Predicated region
      $region33: #{decoder_forward.3} parent=27 // pred_check
        %p239 = pneg %p74
      $region34: #{decoder_forward.3} parent=27 // pred_check_branch
        %241 = sbr.rel (%p239) target = $region36
      $region35: #{decoder_forward.3} parent=27 // pred_region
        %s242 = smul.u32 8, %s20
        %p243 = scmp.lt.s32.totalorder %s19, 1
        %s244 = scalar_select %p243, %s19, 1
        %p245 = scmp.lt.s32.totalorder %s242, 15
        %s246 = scalar_select %p245, %s242, 15
        %s247 = smul.addr %s246, 2
        %s248 = smul.addr %s244, 32
        %s249 = sadd.s32 %s247, %s248
        %s250 = smul.addr %s249, 4
        %s251 = scalar_lea.vmem %s1, %s250
        %s252 = smul.u32 8, %s20
      $region36: #{decoder_forward.3} parent=27 // pred_fallthru
        _
      // Predicated region
      $region37: #{decoder_forward.3} parent=27 // pred_check
        %p253 = pneg %p102
      $region38: #{decoder_forward.3} parent=27 // pred_check_branch
        %255 = sbr.rel (%p253) target = $region40
      $region39: #{decoder_forward.3} parent=27 // pred_region
        %p256 = scmp.lt.s32.totalorder %s19, 1
        %s257 = scalar_select %p256, %s19, 1
        %p258 = scmp.lt.s32.totalorder %s20, 1
        %s259 = scalar_select %p258, %s20, 1
        %s260 = smul.addr %s259, 2
        %s261 = smul.addr %s257, 4
        %s262 = sadd.s32 %s260, %s261
        %s263 = smul.addr %s262, 4
        %s264 = scalar_lea.vmem %s2, %s263
      $region40: #{decoder_forward.3} parent=27 // pred_fallthru
        _
    $region28: #{decoder_forward.3} parent=5 // pred_fallthru
      _
    %p265 = scmp.le.s32.totalorder 1, %s12
    %p266 = scmp.lt.s32.totalorder %s12, 5
    %p267 = pnand %p265, %p266
    %p268 = pneg %p267
    // Predicated region
    $region41: #{decoder_forward.3} parent=5 // pred_check
      _
    $region42: #{decoder_forward.3} parent=5 // pred_check_branch
      %270 = sbr.rel (%p267) target = $region44
    $region43: #{decoder_forward.3} parent=5 // pred_region
      %s271 = ssub.s32 %s12, 1
      %p272 = scmp.lt.s32.totalorder %s21, 1
      %s273 = scalar_select %p272, %s21, 1
      %p274 = scmp.lt.s32.totalorder %s22, 1
      %s275 = scalar_select %p274, %s22, 1
      %s276 = smul.addr %s275, 2
      %s277 = smul.addr %s273, 4
      %s278 = sadd.s32 %s276, %s277
      %s279 = smul.addr %s278, 4
      %s280 = scalar_lea.vmem %s0, %s279
      %p281 = pneg %p52
      %p282 = pneg %p49
      %s283 = smul.u32 8, %s22
      %p284 = scmp.lt.s32.totalorder %s21, 1
      %s285 = scalar_select %p284, %s21, 1
      %p286 = scmp.lt.s32.totalorder %s283, 15
      %s287 = scalar_select %p286, %s283, 15
      %s288 = smul.addr %s287, 2
      %s289 = smul.addr %s285, 32
      %s290 = sadd.s32 %s288, %s289
      %s291 = smul.addr %s290, 4
      %s292 = scalar_lea.vmem %s1, %s291
      %p293 = pneg %p80
      %p294 = pneg %p77
      %p295 = scmp.lt.s32.totalorder %s21, 1
      %s296 = scalar_select %p295, %s21, 1
      %p297 = scmp.lt.s32.totalorder %s22, 1
      %s298 = scalar_select %p297, %s22, 1
      %s299 = smul.addr %s298, 2
      %s300 = smul.addr %s296, 4
      %s301 = sadd.s32 %s299, %s300
      %s302 = smul.addr %s301, 4
      %s303 = scalar_lea.vmem %s2, %s302
      %p304 = pneg %p108
      %p305 = pneg %p105
      %p306 = pneg %p129
      %p307 = pneg %p126
      %p308 = pneg %p150
      %p309 = pneg %p147
      %p310 = pneg %p171
      %p311 = pneg %p168
      %p312 = pneg %p199
      %p313 = pneg %p196
      %s314 = smul.u32 8, %s22
      %p315 = scmp.lt.s32.totalorder %s21, 1
      %s316 = scalar_select %p315, %s21, 1
      %p317 = scmp.lt.s32.totalorder %s314, 15
      %s318 = scalar_select %p317, %s314, 15
      %s319 = smul.addr %s318, 2
      %s320 = smul.addr %s316, 32
      %s321 = sadd.s32 %s319, %s320
      %s322 = smul.addr %s321, 4
      %s323 = scalar_lea.vmem %s6, %s322
      %p324 = scmp.lt.s32.totalorder %s21, 1
      %s325 = scalar_select %p324, %s21, 1
      %p326 = scmp.lt.s32.totalorder %s22, 1
      %s327 = scalar_select %p326, %s22, 1
      %s328 = smul.addr %s327, 2
      %s329 = smul.addr %s325, 4
      %s330 = sadd.s32 %s328, %s329
      %s331 = smul.addr %s330, 4
      %s332 = scalar_lea.vmem %s0, %s331
      %s333 = smul.u32 8, %s22
      %p334 = scmp.lt.s32.totalorder %s21, 1
      %s335 = scalar_select %p334, %s21, 1
      %p336 = scmp.lt.s32.totalorder %s333, 15
      %s337 = scalar_select %p336, %s333, 15
      %s338 = smul.addr %s337, 2
      %s339 = smul.addr %s335, 32
      %s340 = sadd.s32 %s338, %s339
      %s341 = smul.addr %s340, 4
      %s342 = scalar_lea.vmem %s1, %s341
      %s343 = smul.u32 8, %s22
      %p344 = scmp.lt.s32.totalorder %s21, 1
      %s345 = scalar_select %p344, %s21, 1
      %p346 = scmp.lt.s32.totalorder %s22, 1
      %s347 = scalar_select %p346, %s22, 1
      %s348 = smul.addr %s347, 2
      %s349 = smul.addr %s345, 4
      %s350 = sadd.s32 %s348, %s349
      %s351 = smul.addr %s350, 4
      %s352 = scalar_lea.vmem %s2, %s351
      %s353 = smul.u32 8, %s22
      %p354 = scmp.lt.s32.totalorder %s21, 1
      %s355 = scalar_select %p354, %s21, 1
      %p356 = scmp.lt.s32.totalorder %s353, 15
      %s357 = scalar_select %p356, %s353, 15
      %s358 = smul.addr %s357, 2
      %s359 = smul.addr %s355, 32
      %s360 = sadd.s32 %s358, %s359
      %s361 = smul.addr %s360, 4
      %s362 = scalar_lea.vmem %s6, %s361
      %s363 = smul.u32 8, %s22
      %vm365 = vcmask 1043459
      %vm366 = vsmask.f32 7950
      %vm367 = vmand %vm365, %vm366
      %v368 = vld [vmem:[#allocation2] sm:$0x8]
      %v369 = vsel %vm367, 0, %v368
      %370 = vst [vmem:[#allocation2] sm:$0x8] %v369
      %v371 = vld [vmem:[#allocation2 + $0x10] sm:$0x8]
      %v372 = vsel %vm367, 0, %v371
      %373 = vst [vmem:[#allocation2 + $0x10] sm:$0x8] %v372
      %v374 = vld [vmem:[#allocation2 + $0x20] sm:$0x8]
      %v375 = vsel %vm367, 0, %v374
      %376 = vst [vmem:[#allocation2 + $0x20] sm:$0x8] %v375
      %v377 = vld [vmem:[#allocation2 + $0x30] sm:$0x8]
      %v378 = vsel %vm367, 0, %v377
      %379 = vst [vmem:[#allocation2 + $0x30] sm:$0x8] %v378
      %v380 = vld [vmem:[#allocation2 + $0x40] sm:$0x8]
      %v381 = vsel %vm367, 0, %v380
      %382 = vst [vmem:[#allocation2 + $0x40] sm:$0x8] %v381
      %v383 = vld [vmem:[#allocation2 + $0x50] sm:$0x8]
      %v384 = vsel %vm367, 0, %v383
      %385 = vst [vmem:[#allocation2 + $0x50] sm:$0x8] %v384
      %v386 = vld [vmem:[#allocation2 + $0x60] sm:$0x8]
      %v387 = vsel %vm367, 0, %v386
      %388 = vst [vmem:[#allocation2 + $0x60] sm:$0x8] %v387
      %v389 = vld [vmem:[#allocation2 + $0x70] sm:$0x8]
      %v390 = vsel %vm367, 0, %v389
      %391 = vst [vmem:[#allocation2 + $0x70] sm:$0x8] %v390
      %v392 = vld [vmem:[#allocation2 + $0x80] sm:$0x8]
      %v393 = vsel %vm367, 0, %v392
      %394 = vst [vmem:[#allocation2 + $0x80] sm:$0x8] %v393
      %v395 = vld [vmem:[#allocation2 + $0x90] sm:$0x8]
      %v396 = vsel %vm367, 0, %v395
      %397 = vst [vmem:[#allocation2 + $0x90] sm:$0x8] %v396
      %vm398 = vcmask 1040384
      %vm399 = vsmask.f32 256
      %vm400 = vmand %vm398, %vm399
      %v401 = vld [vmem:[#allocation2 + $0xc] sm:$0x1]
      %v402 = vsel %vm400, 0, %v401
      %403 = vst [vmem:[#allocation2 + $0xc] sm:$0x1] %v402
      %v404 = vld [vmem:[#allocation2 + $0x1c] sm:$0x1]
      %v405 = vsel %vm400, 0, %v404
      %406 = vst [vmem:[#allocation2 + $0x1c] sm:$0x1] %v405
      %v407 = vld [vmem:[#allocation2 + $0x2c] sm:$0x1]
      %v408 = vsel %vm400, 0, %v407
      %409 = vst [vmem:[#allocation2 + $0x2c] sm:$0x1] %v408
      %v410 = vld [vmem:[#allocation2 + $0x3c] sm:$0x1]
      %v411 = vsel %vm400, 0, %v410
      %412 = vst [vmem:[#allocation2 + $0x3c] sm:$0x1] %v411
      %v413 = vld [vmem:[#allocation2 + $0x4c] sm:$0x1]
      %v414 = vsel %vm400, 0, %v413
      %415 = vst [vmem:[#allocation2 + $0x4c] sm:$0x1] %v414
      %v416 = vld [vmem:[#allocation2 + $0x5c] sm:$0x1]
      %v417 = vsel %vm400, 0, %v416
      %418 = vst [vmem:[#allocation2 + $0x5c] sm:$0x1] %v417
      %v419 = vld [vmem:[#allocation2 + $0x6c] sm:$0x1]
      %v420 = vsel %vm400, 0, %v419
      %421 = vst [vmem:[#allocation2 + $0x6c] sm:$0x1] %v420
      %v422 = vld [vmem:[#allocation2 + $0x7c] sm:$0x1]
      %v423 = vsel %vm400, 0, %v422
      %424 = vst [vmem:[#allocation2 + $0x7c] sm:$0x1] %v423
      %v425 = vld [vmem:[#allocation2 + $0x8c] sm:$0x1]
      %v426 = vsel %vm400, 0, %v425
      %427 = vst [vmem:[#allocation2 + $0x8c] sm:$0x1] %v426
      %v428 = vld [vmem:[#allocation2 + $0x9c] sm:$0x1]
      %v429 = vsel %vm400, 0, %v428
      %430 = vst [vmem:[#allocation2 + $0x9c] sm:$0x1] %v429
      %v431 = vld [vmem:[%s332] sm:$0xf]
      %v432 = vld [vmem:[%s332 + $0x4] sm:$0xf]
      %433 = vst [vmem:[#allocation2 + $0x4] sm:$0xf] %v431
      %434 = vst [vmem:[#allocation2 + $0x8] sm:$0xf] %v432
      %v435 = vld [vmem:[%s342] sm:$0xf]
      %v436 = vld [vmem:[%s342 + $0x4] sm:$0xf]
      %v437 = vld [vmem:[%s342 + $0x8] sm:$0xf]
      %v438 = vld [vmem:[%s342 + $0xc] sm:$0xf]
      %v439 = vld [vmem:[%s342 + $0x10] sm:$0xf]
      %v440 = vld [vmem:[%s342 + $0x14] sm:$0xf]
      %v441 = vld [vmem:[%s342 + $0x18] sm:$0xf]
      %v442 = vld [vmem:[%s342 + $0x1c] sm:$0xf]
      %v443 = vld [vmem:[%s342 + $0x20] sm:$0xf]
      %v444 = vld [vmem:[%s342 + $0x24] sm:$0xf]
      %v445 = vld [vmem:[%s342 + $0x28] sm:$0xf]
      %v446 = vld [vmem:[%s342 + $0x2c] sm:$0xf]
      %v447 = vld [vmem:[%s342 + $0x30] sm:$0xf]
      %v448 = vld [vmem:[%s342 + $0x34] sm:$0xf]
      %v449 = vld [vmem:[%s342 + $0x38] sm:$0xf]
      %v450 = vld [vmem:[%s342 + $0x3c] sm:$0xf]
      %s451 = scalar_lea.vmem [#allocation2], 16
      %452 = vst [vmem:[%s451 + $0x4] sm:$0xf] %v435
      %453 = vst [vmem:[%s451 + $0x8] sm:$0xf] %v436
      %454 = vst [vmem:[%s451 + $0x14] sm:$0xf] %v437
      %455 = vst [vmem:[%s451 + $0x18] sm:$0xf] %v438
      %456 = vst [vmem:[%s451 + $0x24] sm:$0xf] %v439
      %457 = vst [vmem:[%s451 + $0x28] sm:$0xf] %v440
      %458 = vst [vmem:[%s451 + $0x34] sm:$0xf] %v441
      %459 = vst [vmem:[%s451 + $0x38] sm:$0xf] %v442
      %460 = vst [vmem:[%s451 + $0x44] sm:$0xf] %v443
      %461 = vst [vmem:[%s451 + $0x48] sm:$0xf] %v444
      %462 = vst [vmem:[%s451 + $0x54] sm:$0xf] %v445
      %463 = vst [vmem:[%s451 + $0x58] sm:$0xf] %v446
      %464 = vst [vmem:[%s451 + $0x64] sm:$0xf] %v447
      %465 = vst [vmem:[%s451 + $0x68] sm:$0xf] %v448
      %466 = vst [vmem:[%s451 + $0x74] sm:$0xf] %v449
      %467 = vst [vmem:[%s451 + $0x78] sm:$0xf] %v450
      %v468 = vld [vmem:[%s352] sm:$0xf]
      %v469 = vld [vmem:[%s352 + $0x4] sm:$0xf]
      %s470 = scalar_lea.vmem [#allocation2], 144
      %471 = vst [vmem:[%s470 + $0x4] sm:$0xf] %v468
      %472 = vst [vmem:[%s470 + $0x8] sm:$0xf] %v469
      %v473 = vld [vmem:[#allocation2] sm:$0xf]
      %v474 = vld [vmem:[#allocation2 + $0x4] sm:$0xf]
      %v475 = vld [vmem:[#allocation2 + $0x8] sm:$0xf]
      %v476 = vld [vmem:[#allocation2 + $0xc] sm:$0xf]
      %v477 = vld [vmem:[#allocation2 + $0x10] sm:$0xf]
      %v478 = vld [vmem:[#allocation2 + $0x14] sm:$0xf]
      %v479 = vld [vmem:[#allocation2 + $0x18] sm:$0xf]
      %v480 = vld [vmem:[#allocation2 + $0x1c] sm:$0xf]
      %v481 = vld [vmem:[#allocation2 + $0x20] sm:$0xf]
      %v482 = vld [vmem:[#allocation2 + $0x24] sm:$0xf]
      %v483 = vld [vmem:[#allocation2 + $0x28] sm:$0xf]
      %v484 = vld [vmem:[#allocation2 + $0x2c] sm:$0xf]
      %v485 = vld [vmem:[#allocation2 + $0x30] sm:$0xf]
      %v486 = vld [vmem:[#allocation2 + $0x34] sm:$0xf]
      %v487 = vld [vmem:[#allocation2 + $0x38] sm:$0xf]
      %v488 = vld [vmem:[#allocation2 + $0x3c] sm:$0xf]
      %v489 = vld [vmem:[#allocation2 + $0x40] sm:$0xf]
      %v490 = vld [vmem:[#allocation2 + $0x44] sm:$0xf]
      %v491 = vld [vmem:[#allocation2 + $0x48] sm:$0xf]
      %v492 = vld [vmem:[#allocation2 + $0x4c] sm:$0xf]
      %v493 = vld [vmem:[#allocation2 + $0x50] sm:$0xf]
      %v494 = vld [vmem:[#allocation2 + $0x54] sm:$0xf]
      %v495 = vld [vmem:[#allocation2 + $0x58] sm:$0xf]
      %v496 = vld [vmem:[#allocation2 + $0x5c] sm:$0xf]
      %v497 = vld [vmem:[#allocation2 + $0x60] sm:$0xf]
      %v498 = vld [vmem:[#allocation2 + $0x64] sm:$0xf]
      %v499 = vld [vmem:[#allocation2 + $0x68] sm:$0xf]
      %v500 = vld [vmem:[#allocation2 + $0x6c] sm:$0xf]
      %v501 = vld [vmem:[#allocation2 + $0x70] sm:$0xf]
      %v502 = vld [vmem:[#allocation2 + $0x74] sm:$0xf]
      %v503 = vld [vmem:[#allocation2 + $0x78] sm:$0xf]
      %v504 = vld [vmem:[#allocation2 + $0x7c] sm:$0xf]
      %v505 = vld [vmem:[#allocation2 + $0x80] sm:$0xf]
      %v506 = vld [vmem:[#allocation2 + $0x84] sm:$0xf]
      %v507 = vld [vmem:[#allocation2 + $0x88] sm:$0xf]
      %v508 = vld [vmem:[#allocation2 + $0x8c] sm:$0xf]
      %v509 = vld [vmem:[#allocation2 + $0x90] sm:$0xf]
      %v510 = vld [vmem:[#allocation2 + $0x94] sm:$0xf]
      %v511 = vld [vmem:[#allocation2 + $0x98] sm:$0xf]
      %v512 = vld [vmem:[#allocation2 + $0x9c] sm:$0xf]
      %v537 = vunpack.c.l.b16 %v473
      %v538 = vunpack.c.l.b16 %v474
      %v539 = vunpack.c.l.b16 %v475
      %v540 = vunpack.c.l.b16 %v477
      %v541 = vunpack.c.l.b16 %v478
      %v542 = vunpack.c.l.b16 %v479
      %v543 = vunpack.c.l.b16 %v481
      %v544 = vunpack.c.l.b16 %v482
      %v545 = vunpack.c.l.b16 %v483
      %v546 = vunpack.c.l.b16 %v485
      %v547 = vunpack.c.l.b16 %v486
      %v548 = vunpack.c.l.b16 %v487
      %v549 = vunpack.c.l.b16 %v489
      %v550 = vunpack.c.l.b16 %v490
      %v551 = vunpack.c.l.b16 %v491
      %v552 = vunpack.c.l.b16 %v493
      %v553 = vunpack.c.l.b16 %v494
      %v554 = vunpack.c.l.b16 %v495
      %v555 = vunpack.c.l.b16 %v497
      %v556 = vunpack.c.l.b16 %v498
      %v557 = vunpack.c.l.b16 %v499
      %v558 = vunpack.c.l.b16 %v501
      %v559 = vunpack.c.l.b16 %v502
      %v560 = vunpack.c.l.b16 %v503
      %v561 = vpack.c.b16 %v538, %v537
      %v562 = vpack.c.b16 %v539, %v539
      %v563 = vpack.c.b16 %v541, %v540
      %v564 = vpack.c.b16 %v542, %v542
      %v565 = vpack.c.b16 %v544, %v543
      %v566 = vpack.c.b16 %v545, %v545
      %v567 = vpack.c.b16 %v547, %v546
      %v568 = vpack.c.b16 %v548, %v548
      %v569 = vpack.c.b16 %v550, %v549
      %v570 = vpack.c.b16 %v551, %v551
      %v571 = vpack.c.b16 %v553, %v552
      %v572 = vpack.c.b16 %v554, %v554
      %v573 = vpack.c.b16 %v556, %v555
      %v574 = vpack.c.b16 %v557, %v557
      %v575 = vpack.c.b16 %v559, %v558
      %v576 = vpack.c.b16 %v560, %v560
      %v577 = vpack.c.b16 %v539, %v538
      %v578 = vpack.c.b16 %v542, %v541
      %v579 = vpack.c.b16 %v545, %v544
      %v580 = vpack.c.b16 %v548, %v547
      %v581 = vpack.c.b16 %v551, %v550
      %v582 = vpack.c.b16 %v554, %v553
      %v583 = vpack.c.b16 %v557, %v556
      %v584 = vpack.c.b16 %v560, %v559
      %v586 = vshrl.u32 %v577, 16
      %v588 = vrot.slane %v586, 4
      %v589 = vshll.u32 %v577, 16
      %v591 = vrot.slane %v589, 5
      %v592 = vor.u32 %v588, %v591
      %v594 = vshrl.u32 %v578, 16
      %v596 = vrot.slane %v594, 4
      %v597 = vshll.u32 %v578, 16
      %v599 = vrot.slane %v597, 5
      %v600 = vor.u32 %v596, %v599
      %v602 = vshrl.u32 %v579, 16
      %v604 = vrot.slane %v602, 4
      %v605 = vshll.u32 %v579, 16
      %v607 = vrot.slane %v605, 5
      %v608 = vor.u32 %v604, %v607
      %v610 = vshrl.u32 %v580, 16
      %v612 = vrot.slane %v610, 4
      %v613 = vshll.u32 %v580, 16
      %v615 = vrot.slane %v613, 5
      %v616 = vor.u32 %v612, %v615
      %v618 = vshrl.u32 %v581, 16
      %v620 = vrot.slane %v618, 4
      %v621 = vshll.u32 %v581, 16
      %v623 = vrot.slane %v621, 5
      %v624 = vor.u32 %v620, %v623
      %v626 = vshrl.u32 %v582, 16
      %v628 = vrot.slane %v626, 4
      %v629 = vshll.u32 %v582, 16
      %v631 = vrot.slane %v629, 5
      %v632 = vor.u32 %v628, %v631
      %v634 = vshrl.u32 %v583, 16
      %v636 = vrot.slane %v634, 4
      %v637 = vshll.u32 %v583, 16
      %v639 = vrot.slane %v637, 5
      %v640 = vor.u32 %v636, %v639
      %v642 = vshrl.u32 %v584, 16
      %v644 = vrot.slane %v642, 4
      %v645 = vshll.u32 %v584, 16
      %v647 = vrot.slane %v645, 5
      %v648 = vor.u32 %v644, %v647
      %v657 = vunpack.c.l.b16 %v476
      %v658 = vunpack.c.l.b16 %v480
      %v659 = vunpack.c.l.b16 %v484
      %v660 = vunpack.c.l.b16 %v488
      %v661 = vunpack.c.l.b16 %v492
      %v662 = vunpack.c.l.b16 %v496
      %v663 = vunpack.c.l.b16 %v500
      %v664 = vunpack.c.l.b16 %v504
      %v665 = vpack.c.b16 %v657, %v657
      %v666 = vpack.c.b16 %v658, %v658
      %v667 = vpack.c.b16 %v659, %v659
      %v668 = vpack.c.b16 %v660, %v660
      %v669 = vpack.c.b16 %v661, %v661
      %v670 = vpack.c.b16 %v662, %v662
      %v671 = vpack.c.b16 %v663, %v663
      %v672 = vpack.c.b16 %v664, %v664
      %vm673 = vcmask 1042432
      %v674 = vrot.slane %v577, 5
      %v675 = vrot.slane %v665, 5
      %v676 = vsel %vm673, %v674, %v675
      %v677 = vrot.slane %v578, 5
      %v678 = vrot.slane %v666, 5
      %v679 = vsel %vm673, %v677, %v678
      %v680 = vrot.slane %v579, 5
      %v681 = vrot.slane %v667, 5
      %v682 = vsel %vm673, %v680, %v681
      %v683 = vrot.slane %v580, 5
      %v684 = vrot.slane %v668, 5
      %v685 = vsel %vm673, %v683, %v684
      %v686 = vrot.slane %v581, 5
      %v687 = vrot.slane %v669, 5
      %v688 = vsel %vm673, %v686, %v687
      %v689 = vrot.slane %v582, 5
      %v690 = vrot.slane %v670, 5
      %v691 = vsel %vm673, %v689, %v690
      %v692 = vrot.slane %v583, 5
      %v693 = vrot.slane %v671, 5
      %v694 = vsel %vm673, %v692, %v693
      %v695 = vrot.slane %v584, 5
      %v696 = vrot.slane %v672, 5
      %v697 = vsel %vm673, %v695, %v696
      %v698 = vld [vmem:[%s3] sm:$0xf]
      %v699 = vld [vmem:[%s3 + $0x4] sm:$0xf]
      %v700 = vld [vmem:[%s3 + $0x8] sm:$0xf]
      %v701 = vld [vmem:[%s3 + $0xc] sm:$0xf]
      %v702 = vld [vmem:[%s3 + $0x10] sm:$0xf]
      %v703 = vld [vmem:[%s3 + $0x14] sm:$0xf]
      %v704 = vld [vmem:[%s3 + $0x18] sm:$0xf]
      %v705 = vld [vmem:[%s3 + $0x1c] sm:$0xf]
      %v706 = vld [vmem:[%s3 + $0x20] sm:$0xf]
      %v707 = vld [vmem:[%s3 + $0x24] sm:$0xf]
      %v708 = vld [vmem:[%s3 + $0x28] sm:$0xf]
      %v709 = vld [vmem:[%s3 + $0x2c] sm:$0xf]
      %v710 = vld [vmem:[%s3 + $0x30] sm:$0xf]
      %v711 = vld [vmem:[%s3 + $0x34] sm:$0xf]
      %v712 = vld [vmem:[%s3 + $0x38] sm:$0xf]
      %v713 = vld [vmem:[%s3 + $0x3c] sm:$0xf]
      %v714 = vld [vmem:[%s3 + $0x40] sm:$0xf]
      %v715 = vld [vmem:[%s3 + $0x44] sm:$0xf]
      %v716 = vld [vmem:[%s3 + $0x48] sm:$0xf]
      %v717 = vld [vmem:[%s3 + $0x4c] sm:$0xf]
      %v718 = vld [vmem:[%s3 + $0x50] sm:$0xf]
      %v719 = vld [vmem:[%s3 + $0x54] sm:$0xf]
      %v720 = vld [vmem:[%s3 + $0x58] sm:$0xf]
      %v721 = vld [vmem:[%s3 + $0x5c] sm:$0xf]
      %v722 = vld [vmem:[%s3 + $0x60] sm:$0xf]
      %v723 = vld [vmem:[%s3 + $0x64] sm:$0xf]
      %v724 = vld [vmem:[%s3 + $0x68] sm:$0xf]
      %v725 = vld [vmem:[%s3 + $0x6c] sm:$0xf]
      %v726 = vld [vmem:[%s3 + $0x70] sm:$0xf]
      %v727 = vld [vmem:[%s3 + $0x74] sm:$0xf]
      %v728 = vld [vmem:[%s3 + $0x78] sm:$0xf]
      %v729 = vld [vmem:[%s3 + $0x7c] sm:$0xf]
      %v730 = vld [vmem:[%s3 + $0x80] sm:$0xf]
      %v731 = vld [vmem:[%s3 + $0x84] sm:$0xf]
      %v732 = vld [vmem:[%s3 + $0x88] sm:$0xf]
      %v733 = vld [vmem:[%s3 + $0x8c] sm:$0xf]
      %v734 = vld [vmem:[%s3 + $0x90] sm:$0xf]
      %v735 = vld [vmem:[%s3 + $0x94] sm:$0xf]
      %v736 = vld [vmem:[%s3 + $0x98] sm:$0xf]
      %v737 = vld [vmem:[%s3 + $0x9c] sm:$0xf]
      %v738 = vld [vmem:[%s3 + $0xa0] sm:$0xf]
      %v739 = vld [vmem:[%s3 + $0xa4] sm:$0xf]
      %v740 = vld [vmem:[%s3 + $0xa8] sm:$0xf]
      %v741 = vld [vmem:[%s3 + $0xac] sm:$0xf]
      %v742 = vld [vmem:[%s3 + $0xb0] sm:$0xf]
      %v743 = vld [vmem:[%s3 + $0xb4] sm:$0xf]
      %v744 = vld [vmem:[%s3 + $0xb8] sm:$0xf]
      %v745 = vld [vmem:[%s3 + $0xbc] sm:$0xf]
      %v749 = vunpack.c.l.b16 %v505
      %v750 = vunpack.c.l.b16 %v506
      %v751 = vunpack.c.l.b16 %v507
      %v752 = vpack.c.b16 %v750, %v749
      %v753 = vpack.c.b16 %v751, %v751
      %v754 = vpack.c.b16 %v751, %v750
      %v756 = vshrl.u32 %v754, 16
      %v758 = vrot.slane %v756, 4
      %v759 = vshll.u32 %v754, 16
      %v761 = vrot.slane %v759, 5
      %v762 = vor.u32 %v758, %v761
      %v764 = vunpack.c.l.b16 %v508
      %v765 = vpack.c.b16 %v764, %v764
      %v766 = vrot.slane %v754, 5
      %v767 = vrot.slane %v765, 5
      %v768 = vsel %vm673, %v766, %v767
      %s769 = scalar_lea.vmem %s3, 192
      %v770 = vld [vmem:[%s769] sm:$0xf]
      %v771 = vld [vmem:[%s769 + $0x4] sm:$0xf]
      %v772 = vld [vmem:[%s769 + $0x8] sm:$0xf]
      %v773 = vld [vmem:[%s769 + $0xc] sm:$0xf]
      %v774 = vld [vmem:[%s769 + $0x10] sm:$0xf]
      %v775 = vld [vmem:[%s769 + $0x14] sm:$0xf]
      %v776 = vld [vmem:[%s769 + $0x18] sm:$0xf]
      %v777 = vld [vmem:[%s769 + $0x1c] sm:$0xf]
      %v778 = vld [vmem:[%s769 + $0x20] sm:$0xf]
      %v779 = vld [vmem:[%s769 + $0x24] sm:$0xf]
      %v780 = vld [vmem:[%s769 + $0x28] sm:$0xf]
      %v781 = vld [vmem:[%s769 + $0x2c] sm:$0xf]
      %v782 = vld [vmem:[%s769 + $0x30] sm:$0xf]
      %v783 = vld [vmem:[%s769 + $0x34] sm:$0xf]
      %v784 = vld [vmem:[%s769 + $0x38] sm:$0xf]
      %v785 = vld [vmem:[%s769 + $0x3c] sm:$0xf]
      %v786 = vld [vmem:[%s769 + $0x40] sm:$0xf]
      %v787 = vld [vmem:[%s769 + $0x44] sm:$0xf]
      %v788 = vld [vmem:[%s769 + $0x48] sm:$0xf]
      %v789 = vld [vmem:[%s769 + $0x4c] sm:$0xf]
      %v790 = vld [vmem:[%s769 + $0x50] sm:$0xf]
      %v791 = vld [vmem:[%s769 + $0x54] sm:$0xf]
      %v792 = vld [vmem:[%s769 + $0x58] sm:$0xf]
      %v793 = vld [vmem:[%s769 + $0x5c] sm:$0xf]
      %v794 = vld [vmem:[%s769 + $0x60] sm:$0xf]
      %v795 = vld [vmem:[%s769 + $0x64] sm:$0xf]
      %v796 = vld [vmem:[%s769 + $0x68] sm:$0xf]
      %v797 = vld [vmem:[%s769 + $0x6c] sm:$0xf]
      %v798 = vld [vmem:[%s769 + $0x70] sm:$0xf]
      %v799 = vld [vmem:[%s769 + $0x74] sm:$0xf]
      %v800 = vld [vmem:[%s769 + $0x78] sm:$0xf]
      %v801 = vld [vmem:[%s769 + $0x7c] sm:$0xf]
      %v802 = vld [vmem:[%s769 + $0x80] sm:$0xf]
      %v803 = vld [vmem:[%s769 + $0x84] sm:$0xf]
      %v804 = vld [vmem:[%s769 + $0x88] sm:$0xf]
      %v805 = vld [vmem:[%s769 + $0x8c] sm:$0xf]
      %v806 = vld [vmem:[%s769 + $0x90] sm:$0xf]
      %v807 = vld [vmem:[%s769 + $0x94] sm:$0xf]
      %v808 = vld [vmem:[%s769 + $0x98] sm:$0xf]
      %v809 = vld [vmem:[%s769 + $0x9c] sm:$0xf]
      %v810 = vld [vmem:[%s769 + $0xa0] sm:$0xf]
      %v811 = vld [vmem:[%s769 + $0xa4] sm:$0xf]
      %v812 = vld [vmem:[%s769 + $0xa8] sm:$0xf]
      %v813 = vld [vmem:[%s769 + $0xac] sm:$0xf]
      %v814 = vld [vmem:[%s769 + $0xb0] sm:$0xf]
      %v815 = vld [vmem:[%s769 + $0xb4] sm:$0xf]
      %v816 = vld [vmem:[%s769 + $0xb8] sm:$0xf]
      %v817 = vld [vmem:[%s769 + $0xbc] sm:$0xf]
      %vm818 = vsmask.f32 4352
      %v820 = vshrl.u32 %v563, 16
      %v822 = vrot.slane %v820, 3
      %v823 = vshll.u32 %v563, 16
      %v825 = vrot.slane %v823, 4
      %v826 = vor.u32 %v822, %v825
      %v828 = vshrl.u32 %v564, 16
      %v830 = vrot.slane %v828, 3
      %v831 = vshll.u32 %v564, 16
      %v833 = vrot.slane %v831, 4
      %v834 = vor.u32 %v830, %v833
      %v835 = vsel %vm818, %v826, %v834
      %v837 = vshrl.u32 %v600, 16
      %v839 = vrot.slane %v837, 3
      %v840 = vshll.u32 %v600, 16
      %v842 = vrot.slane %v840, 4
      %v843 = vor.u32 %v839, %v842
      %v844 = vsel %vm818, %v843, %v843
      %v846 = vshrl.u32 %v677, 16
      %v848 = vrot.slane %v846, 3
      %v849 = vshll.u32 %v677, 16
      %v851 = vrot.slane %v849, 4
      %v852 = vor.u32 %v848, %v851
      %v854 = vshrl.u32 %v679, 16
      %v856 = vrot.slane %v854, 3
      %v857 = vshll.u32 %v679, 16
      %v859 = vrot.slane %v857, 4
      %v860 = vor.u32 %v856, %v859
      %v861 = vsel %vm818, %v852, %v860
      %v863 = vshrl.u32 %v565, 16
      %v865 = vrot.slane %v863, 3
      %v866 = vshll.u32 %v565, 16
      %v868 = vrot.slane %v866, 4
      %v869 = vor.u32 %v865, %v868
      %v871 = vshrl.u32 %v566, 16
      %v873 = vrot.slane %v871, 3
      %v874 = vshll.u32 %v566, 16
      %v876 = vrot.slane %v874, 4
      %v877 = vor.u32 %v873, %v876
      %v878 = vsel %vm818, %v869, %v877
      %v880 = vshrl.u32 %v608, 16
      %v882 = vrot.slane %v880, 3
      %v883 = vshll.u32 %v608, 16
      %v885 = vrot.slane %v883, 4
      %v886 = vor.u32 %v882, %v885
      %v887 = vsel %vm818, %v886, %v886
      %v889 = vshrl.u32 %v680, 16
      %v891 = vrot.slane %v889, 3
      %v892 = vshll.u32 %v680, 16
      %v894 = vrot.slane %v892, 4
      %v895 = vor.u32 %v891, %v894
      %v897 = vshrl.u32 %v682, 16
      %v899 = vrot.slane %v897, 3
      %v900 = vshll.u32 %v682, 16
      %v902 = vrot.slane %v900, 4
      %v903 = vor.u32 %v899, %v902
      %v904 = vsel %vm818, %v895, %v903
      %v906 = vshrl.u32 %v567, 16
      %v908 = vrot.slane %v906, 3
      %v909 = vshll.u32 %v567, 16
      %v911 = vrot.slane %v909, 4
      %v912 = vor.u32 %v908, %v911
      %v914 = vshrl.u32 %v568, 16
      %v916 = vrot.slane %v914, 3
      %v917 = vshll.u32 %v568, 16
      %v919 = vrot.slane %v917, 4
      %v920 = vor.u32 %v916, %v919
      %v921 = vsel %vm818, %v912, %v920
      %v923 = vshrl.u32 %v616, 16
      %v925 = vrot.slane %v923, 3
      %v926 = vshll.u32 %v616, 16
      %v928 = vrot.slane %v926, 4
      %v929 = vor.u32 %v925, %v928
      %v930 = vsel %vm818, %v929, %v929
      %v932 = vshrl.u32 %v683, 16
      %v934 = vrot.slane %v932, 3
      %v935 = vshll.u32 %v683, 16
      %v937 = vrot.slane %v935, 4
      %v938 = vor.u32 %v934, %v937
      %v940 = vshrl.u32 %v685, 16
      %v942 = vrot.slane %v940, 3
      %v943 = vshll.u32 %v685, 16
      %v945 = vrot.slane %v943, 4
      %v946 = vor.u32 %v942, %v945
      %v947 = vsel %vm818, %v938, %v946
      %v949 = vshrl.u32 %v569, 16
      %v951 = vrot.slane %v949, 3
      %v952 = vshll.u32 %v569, 16
      %v954 = vrot.slane %v952, 4
      %v955 = vor.u32 %v951, %v954
      %v957 = vshrl.u32 %v570, 16
      %v959 = vrot.slane %v957, 3
      %v960 = vshll.u32 %v570, 16
      %v962 = vrot.slane %v960, 4
      %v963 = vor.u32 %v959, %v962
      %v964 = vsel %vm818, %v955, %v963
      %v966 = vshrl.u32 %v624, 16
      %v968 = vrot.slane %v966, 3
      %v969 = vshll.u32 %v624, 16
      %v971 = vrot.slane %v969, 4
      %v972 = vor.u32 %v968, %v971
      %v973 = vsel %vm818, %v972, %v972
      %v975 = vshrl.u32 %v686, 16
      %v977 = vrot.slane %v975, 3
      %v978 = vshll.u32 %v686, 16
      %v980 = vrot.slane %v978, 4
      %v981 = vor.u32 %v977, %v980
      %v983 = vshrl.u32 %v688, 16
      %v985 = vrot.slane %v983, 3
      %v986 = vshll.u32 %v688, 16
      %v988 = vrot.slane %v986, 4
      %v989 = vor.u32 %v985, %v988
      %v990 = vsel %vm818, %v981, %v989
      %v992 = vshrl.u32 %v571, 16
      %v994 = vrot.slane %v992, 3
      %v995 = vshll.u32 %v571, 16
      %v997 = vrot.slane %v995, 4
      %v998 = vor.u32 %v994, %v997
      %v1000 = vshrl.u32 %v572, 16
      %v1002 = vrot.slane %v1000, 3
      %v1003 = vshll.u32 %v572, 16
      %v1005 = vrot.slane %v1003, 4
      %v1006 = vor.u32 %v1002, %v1005
      %v1007 = vsel %vm818, %v998, %v1006
      %v1009 = vshrl.u32 %v632, 16
      %v1011 = vrot.slane %v1009, 3
      %v1012 = vshll.u32 %v632, 16
      %v1014 = vrot.slane %v1012, 4
      %v1015 = vor.u32 %v1011, %v1014
      %v1016 = vsel %vm818, %v1015, %v1015
      %v1018 = vshrl.u32 %v689, 16
      %v1020 = vrot.slane %v1018, 3
      %v1021 = vshll.u32 %v689, 16
      %v1023 = vrot.slane %v1021, 4
      %v1024 = vor.u32 %v1020, %v1023
      %v1026 = vshrl.u32 %v691, 16
      %v1028 = vrot.slane %v1026, 3
      %v1029 = vshll.u32 %v691, 16
      %v1031 = vrot.slane %v1029, 4
      %v1032 = vor.u32 %v1028, %v1031
      %v1033 = vsel %vm818, %v1024, %v1032
      %v1035 = vshrl.u32 %v573, 16
      %v1037 = vrot.slane %v1035, 3
      %v1038 = vshll.u32 %v573, 16
      %v1040 = vrot.slane %v1038, 4
      %v1041 = vor.u32 %v1037, %v1040
      %v1043 = vshrl.u32 %v574, 16
      %v1045 = vrot.slane %v1043, 3
      %v1046 = vshll.u32 %v574, 16
      %v1048 = vrot.slane %v1046, 4
      %v1049 = vor.u32 %v1045, %v1048
      %v1050 = vsel %vm818, %v1041, %v1049
      %v1052 = vshrl.u32 %v640, 16
      %v1054 = vrot.slane %v1052, 3
      %v1055 = vshll.u32 %v640, 16
      %v1057 = vrot.slane %v1055, 4
      %v1058 = vor.u32 %v1054, %v1057
      %v1059 = vsel %vm818, %v1058, %v1058
      %v1061 = vshrl.u32 %v692, 16
      %v1063 = vrot.slane %v1061, 3
      %v1064 = vshll.u32 %v692, 16
      %v1066 = vrot.slane %v1064, 4
      %v1067 = vor.u32 %v1063, %v1066
      %v1069 = vshrl.u32 %v694, 16
      %v1071 = vrot.slane %v1069, 3
      %v1072 = vshll.u32 %v694, 16
      %v1074 = vrot.slane %v1072, 4
      %v1075 = vor.u32 %v1071, %v1074
      %v1076 = vsel %vm818, %v1067, %v1075
      %v1078 = vshrl.u32 %v575, 16
      %v1080 = vrot.slane %v1078, 3
      %v1081 = vshll.u32 %v575, 16
      %v1083 = vrot.slane %v1081, 4
      %v1084 = vor.u32 %v1080, %v1083
      %v1086 = vshrl.u32 %v576, 16
      %v1088 = vrot.slane %v1086, 3
      %v1089 = vshll.u32 %v576, 16
      %v1091 = vrot.slane %v1089, 4
      %v1092 = vor.u32 %v1088, %v1091
      %v1093 = vsel %vm818, %v1084, %v1092
      %v1095 = vshrl.u32 %v648, 16
      %v1097 = vrot.slane %v1095, 3
      %v1098 = vshll.u32 %v648, 16
      %v1100 = vrot.slane %v1098, 4
      %v1101 = vor.u32 %v1097, %v1100
      %v1102 = vsel %vm818, %v1101, %v1101
      %v1104 = vshrl.u32 %v695, 16
      %v1106 = vrot.slane %v1104, 3
      %v1107 = vshll.u32 %v695, 16
      %v1109 = vrot.slane %v1107, 4
      %v1110 = vor.u32 %v1106, %v1109
      %v1112 = vshrl.u32 %v697, 16
      %v1114 = vrot.slane %v1112, 3
      %v1115 = vshll.u32 %v697, 16
      %v1117 = vrot.slane %v1115, 4
      %v1118 = vor.u32 %v1114, %v1117
      %v1119 = vsel %vm818, %v1110, %v1118
      %v1121 = vshrl.u32 %v752, 16
      %v1123 = vrot.slane %v1121, 3
      %v1124 = vshll.u32 %v752, 16
      %v1126 = vrot.slane %v1124, 4
      %v1127 = vor.u32 %v1123, %v1126
      %v1129 = vshrl.u32 %v753, 16
      %v1131 = vrot.slane %v1129, 3
      %v1132 = vshll.u32 %v753, 16
      %v1134 = vrot.slane %v1132, 4
      %v1135 = vor.u32 %v1131, %v1134
      %v1136 = vsel %vm818, %v1127, %v1135
      %v1138 = vshrl.u32 %v762, 16
      %v1140 = vrot.slane %v1138, 3
      %v1141 = vshll.u32 %v762, 16
      %v1143 = vrot.slane %v1141, 4
      %v1144 = vor.u32 %v1140, %v1143
      %v1145 = vsel %vm818, %v1144, %v1144
      %v1147 = vshrl.u32 %v766, 16
      %v1149 = vrot.slane %v1147, 3
      %v1150 = vshll.u32 %v766, 16
      %v1152 = vrot.slane %v1150, 4
      %v1153 = vor.u32 %v1149, %v1152
      %v1155 = vshrl.u32 %v768, 16
      %v1157 = vrot.slane %v1155, 3
      %v1158 = vshll.u32 %v768, 16
      %v1160 = vrot.slane %v1158, 4
      %v1161 = vor.u32 %v1157, %v1160
      %v1162 = vsel %vm818, %v1153, %v1161
      %v1235 = vunpack.c.l.b16 %v770
      %v1236 = vunpack.c.l.b16 %v771
      %v1237 = vunpack.c.l.b16 %v772
      %v1238 = vunpack.c.l.b16 %v773
      %v1239 = vunpack.c.l.b16 %v774
      %v1240 = vunpack.c.l.b16 %v775
      %v1241 = vunpack.c.l.b16 %v776
      %v1242 = vunpack.c.l.b16 %v777
      %v1243 = vunpack.c.l.b16 %v778
      %v1244 = vunpack.c.l.b16 %v779
      %v1245 = vunpack.c.l.b16 %v780
      %v1246 = vunpack.c.l.b16 %v781
      %v1247 = vunpack.c.l.b16 %v782
      %v1248 = vunpack.c.l.b16 %v783
      %v1249 = vunpack.c.l.b16 %v784
      %v1250 = vunpack.c.l.b16 %v785
      %v1251 = vunpack.c.l.b16 %v786
      %v1252 = vunpack.c.l.b16 %v787
      %v1253 = vunpack.c.l.b16 %v788
      %v1254 = vunpack.c.l.b16 %v789
      %v1255 = vunpack.c.l.b16 %v790
      %v1256 = vunpack.c.l.b16 %v791
      %v1257 = vunpack.c.l.b16 %v792
      %v1258 = vunpack.c.l.b16 %v793
      %v1259 = vunpack.c.l.b16 %v794
      %v1260 = vunpack.c.l.b16 %v795
      %v1261 = vunpack.c.l.b16 %v796
      %v1262 = vunpack.c.l.b16 %v797
      %v1263 = vunpack.c.l.b16 %v798
      %v1264 = vunpack.c.l.b16 %v799
      %v1265 = vunpack.c.l.b16 %v800
      %v1266 = vunpack.c.l.b16 %v801
      %v1267 = vunpack.c.l.b16 %v802
      %v1268 = vunpack.c.l.b16 %v803
      %v1269 = vunpack.c.l.b16 %v804
      %v1270 = vunpack.c.l.b16 %v805
      %v1271 = vunpack.c.l.b16 %v806
      %v1272 = vunpack.c.l.b16 %v807
      %v1273 = vunpack.c.l.b16 %v808
      %v1274 = vunpack.c.l.b16 %v809
      %v1275 = vunpack.c.l.b16 %v810
      %v1276 = vunpack.c.l.b16 %v811
      %v1277 = vunpack.c.l.b16 %v812
      %v1278 = vunpack.c.l.b16 %v813
      %v1279 = vunpack.c.l.b16 %v814
      %v1280 = vunpack.c.l.b16 %v815
      %v1281 = vunpack.c.l.b16 %v816
      %v1282 = vunpack.c.l.b16 %v817
      %v1283 = vpack.c.b16 %v1236, %v1235
      %v1284 = vpack.c.b16 %v1238, %v1237
      %v1285 = vpack.c.b16 %v1240, %v1239
      %v1286 = vpack.c.b16 %v1242, %v1241
      %v1287 = vpack.c.b16 %v1244, %v1243
      %v1288 = vpack.c.b16 %v1246, %v1245
      %v1289 = vpack.c.b16 %v1248, %v1247
      %v1290 = vpack.c.b16 %v1250, %v1249
      %v1291 = vpack.c.b16 %v1252, %v1251
      %v1292 = vpack.c.b16 %v1254, %v1253
      %v1293 = vpack.c.b16 %v1256, %v1255
      %v1294 = vpack.c.b16 %v1258, %v1257
      %v1295 = vpack.c.b16 %v1260, %v1259
      %v1296 = vpack.c.b16 %v1262, %v1261
      %v1297 = vpack.c.b16 %v1264, %v1263
      %v1298 = vpack.c.b16 %v1266, %v1265
      %v1299 = vpack.c.b16 %v1268, %v1267
      %v1300 = vpack.c.b16 %v1270, %v1269
      %v1301 = vpack.c.b16 %v1272, %v1271
      %v1302 = vpack.c.b16 %v1274, %v1273
      %v1303 = vpack.c.b16 %v1276, %v1275
      %v1304 = vpack.c.b16 %v1278, %v1277
      %v1305 = vpack.c.b16 %v1280, %v1279
      %v1306 = vpack.c.b16 %v1282, %v1281
      %1331 = vmatpush.bf16.msra.mxu0 %v1290
      %1332 = vmatpush.bf16.msra.mxu0 %v1289
      %1333 = vmatpush.bf16.msra.mxu0 %v1288
      %1334 = vmatpush.bf16.msra.mxu0 %v1287
      %1335 = vmatpush.bf16.msra.mxu0 %v1286
      %1336 = vmatpush.bf16.msra.mxu0 %v1285
      %1337 = vmatpush.bf16.msra.mxu0 %v1284
      %1338 = vmatpush.bf16.msra.mxu0 %v1283
      %1339 = vmatmul.bf16.gmra.mxu0 %v835
      %v1340 = vpop.f32.mrf.mxu0
      %v1341 = vadd.f32 0.0, %v1340
      %v1342 = vpop.f32.mrf.mxu0
      %v1343 = vadd.f32 0.0, %v1342
      %1344 = vmatmul.bf16.gmra.mxu0 %v878
      %v1345 = vpop.f32.mrf.mxu0
      %v1346 = vadd.f32 0.0, %v1345
      %v1347 = vpop.f32.mrf.mxu0
      %v1348 = vadd.f32 0.0, %v1347
      %1349 = vmatmul.bf16.gmra.mxu0 %v921
      %v1350 = vpop.f32.mrf.mxu0
      %v1351 = vadd.f32 0.0, %v1350
      %v1352 = vpop.f32.mrf.mxu0
      %v1353 = vadd.f32 0.0, %v1352
      %1354 = vmatmul.bf16.gmra.mxu0 %v964
      %v1355 = vpop.f32.mrf.mxu0
      %v1356 = vadd.f32 0.0, %v1355
      %v1357 = vpop.f32.mrf.mxu0
      %v1358 = vadd.f32 0.0, %v1357
      %1359 = vmatmul.bf16.gmra.mxu0 %v1007
      %v1360 = vpop.f32.mrf.mxu0
      %v1361 = vadd.f32 0.0, %v1360
      %v1362 = vpop.f32.mrf.mxu0
      %v1363 = vadd.f32 0.0, %v1362
      %1364 = vmatmul.bf16.gmra.mxu0 %v1050
      %v1365 = vpop.f32.mrf.mxu0
      %v1366 = vadd.f32 0.0, %v1365
      %v1367 = vpop.f32.mrf.mxu0
      %v1368 = vadd.f32 0.0, %v1367
      %1369 = vmatmul.bf16.gmra.mxu0 %v1093
      %v1370 = vpop.f32.mrf.mxu0
      %v1371 = vadd.f32 0.0, %v1370
      %v1372 = vpop.f32.mrf.mxu0
      %v1373 = vadd.f32 0.0, %v1372
      %1374 = vmatmul.bf16.gmra.mxu0 %v1136
      %v1375 = vpop.f32.mrf.mxu0
      %v1376 = vadd.f32 0.0, %v1375
      %v1377 = vpop.f32.mrf.mxu0
      %v1378 = vadd.f32 0.0, %v1377
      %1379 = vdwg.mxu0
      %1380 = vmatpush.bf16.msra.mxu0 %v1298
      %1381 = vmatpush.bf16.msra.mxu0 %v1297
      %1382 = vmatpush.bf16.msra.mxu0 %v1296
      %1383 = vmatpush.bf16.msra.mxu0 %v1295
      %1384 = vmatpush.bf16.msra.mxu0 %v1294
      %1385 = vmatpush.bf16.msra.mxu0 %v1293
      %1386 = vmatpush.bf16.msra.mxu0 %v1292
      %1387 = vmatpush.bf16.msra.mxu0 %v1291
      %1388 = vmatmul.bf16.gmra.mxu0 %v844
      %v1389 = vpop.f32.mrf.mxu0
      %v1390 = vadd.f32 %v1341, %v1389
      %v1391 = vpop.f32.mrf.mxu0
      %v1392 = vadd.f32 %v1343, %v1391
      %1393 = vmatmul.bf16.gmra.mxu0 %v887
      %v1394 = vpop.f32.mrf.mxu0
      %v1395 = vadd.f32 %v1346, %v1394
      %v1396 = vpop.f32.mrf.mxu0
      %v1397 = vadd.f32 %v1348, %v1396
      %1398 = vmatmul.bf16.gmra.mxu0 %v930
      %v1399 = vpop.f32.mrf.mxu0
      %v1400 = vadd.f32 %v1351, %v1399
      %v1401 = vpop.f32.mrf.mxu0
      %v1402 = vadd.f32 %v1353, %v1401
      %1403 = vmatmul.bf16.gmra.mxu0 %v973
      %v1404 = vpop.f32.mrf.mxu0
      %v1405 = vadd.f32 %v1356, %v1404
      %v1406 = vpop.f32.mrf.mxu0
      %v1407 = vadd.f32 %v1358, %v1406
      %1408 = vmatmul.bf16.gmra.mxu0 %v1016
      %v1409 = vpop.f32.mrf.mxu0
      %v1410 = vadd.f32 %v1361, %v1409
      %v1411 = vpop.f32.mrf.mxu0
      %v1412 = vadd.f32 %v1363, %v1411
      %1413 = vmatmul.bf16.gmra.mxu0 %v1059
      %v1414 = vpop.f32.mrf.mxu0
      %v1415 = vadd.f32 %v1366, %v1414
      %v1416 = vpop.f32.mrf.mxu0
      %v1417 = vadd.f32 %v1368, %v1416
      %1418 = vmatmul.bf16.gmra.mxu0 %v1102
      %v1419 = vpop.f32.mrf.mxu0
      %v1420 = vadd.f32 %v1371, %v1419
      %v1421 = vpop.f32.mrf.mxu0
      %v1422 = vadd.f32 %v1373, %v1421
      %1423 = vmatmul.bf16.gmra.mxu0 %v1145
      %v1424 = vpop.f32.mrf.mxu0
      %v1425 = vadd.f32 %v1376, %v1424
      %v1426 = vpop.f32.mrf.mxu0
      %v1427 = vadd.f32 %v1378, %v1426
      %1428 = vdwg.mxu0
      %1429 = vmatpush.bf16.msra.mxu0 %v1306
      %1430 = vmatpush.bf16.msra.mxu0 %v1305
      %1431 = vmatpush.bf16.msra.mxu0 %v1304
      %1432 = vmatpush.bf16.msra.mxu0 %v1303
      %1433 = vmatpush.bf16.msra.mxu0 %v1302
      %1434 = vmatpush.bf16.msra.mxu0 %v1301
      %1435 = vmatpush.bf16.msra.mxu0 %v1300
      %1436 = vmatpush.bf16.msra.mxu0 %v1299
      %1437 = vmatmul.bf16.gmra.mxu0 %v861
      %v1438 = vpop.f32.mrf.mxu0
      %v1439 = vadd.f32 %v1390, %v1438
      %v1440 = vpop.f32.mrf.mxu0
      %v1441 = vadd.f32 %v1392, %v1440
      %1442 = vmatmul.bf16.gmra.mxu0 %v904
      %v1443 = vpop.f32.mrf.mxu0
      %v1444 = vadd.f32 %v1395, %v1443
      %v1445 = vpop.f32.mrf.mxu0
      %v1446 = vadd.f32 %v1397, %v1445
      %1447 = vmatmul.bf16.gmra.mxu0 %v947
      %v1448 = vpop.f32.mrf.mxu0
      %v1449 = vadd.f32 %v1400, %v1448
      %v1450 = vpop.f32.mrf.mxu0
      %v1451 = vadd.f32 %v1402, %v1450
      %1452 = vmatmul.bf16.gmra.mxu0 %v990
      %v1453 = vpop.f32.mrf.mxu0
      %v1454 = vadd.f32 %v1405, %v1453
      %v1455 = vpop.f32.mrf.mxu0
      %v1456 = vadd.f32 %v1407, %v1455
      %1457 = vmatmul.bf16.gmra.mxu0 %v1033
      %v1458 = vpop.f32.mrf.mxu0
      %v1459 = vadd.f32 %v1410, %v1458
      %v1460 = vpop.f32.mrf.mxu0
      %v1461 = vadd.f32 %v1412, %v1460
      %1462 = vmatmul.bf16.gmra.mxu0 %v1076
      %v1463 = vpop.f32.mrf.mxu0
      %v1464 = vadd.f32 %v1415, %v1463
      %v1465 = vpop.f32.mrf.mxu0
      %v1466 = vadd.f32 %v1417, %v1465
      %1467 = vmatmul.bf16.gmra.mxu0 %v1119
      %v1468 = vpop.f32.mrf.mxu0
      %v1469 = vadd.f32 %v1420, %v1468
      %v1470 = vpop.f32.mrf.mxu0
      %v1471 = vadd.f32 %v1422, %v1470
      %1472 = vmatmul.bf16.gmra.mxu0 %v1162
      %v1473 = vpop.f32.mrf.mxu0
      %v1474 = vadd.f32 %v1425, %v1473
      %v1475 = vpop.f32.mrf.mxu0
      %v1476 = vadd.f32 %v1427, %v1475
      %1477 = vdwg.mxu0
      %v1479 = vshrl.u32 %v561, 16
      %v1481 = vrot.slane %v1479, 3
      %v1482 = vshll.u32 %v561, 16
      %v1484 = vrot.slane %v1482, 4
      %v1485 = vor.u32 %v1481, %v1484
      %v1487 = vshrl.u32 %v562, 16
      %v1489 = vrot.slane %v1487, 3
      %v1490 = vshll.u32 %v562, 16
      %v1492 = vrot.slane %v1490, 4
      %v1493 = vor.u32 %v1489, %v1492
      %v1494 = vsel %vm818, %v1485, %v1493
      %v1496 = vshrl.u32 %v592, 16
      %v1498 = vrot.slane %v1496, 3
      %v1499 = vshll.u32 %v592, 16
      %v1501 = vrot.slane %v1499, 4
      %v1502 = vor.u32 %v1498, %v1501
      %v1503 = vsel %vm818, %v1502, %v1502
      %v1505 = vshrl.u32 %v674, 16
      %v1507 = vrot.slane %v1505, 3
      %v1508 = vshll.u32 %v674, 16
      %v1510 = vrot.slane %v1508, 4
      %v1511 = vor.u32 %v1507, %v1510
      %v1513 = vshrl.u32 %v676, 16
      %v1515 = vrot.slane %v1513, 3
      %v1516 = vshll.u32 %v676, 16
      %v1518 = vrot.slane %v1516, 4
      %v1519 = vor.u32 %v1515, %v1518
      %v1520 = vsel %vm818, %v1511, %v1519
      %v1572 = vunpack.c.l.b16 %v698
      %v1573 = vunpack.c.l.b16 %v699
      %v1574 = vunpack.c.l.b16 %v700
      %v1575 = vunpack.c.l.b16 %v701
      %v1576 = vunpack.c.l.b16 %v702
      %v1577 = vunpack.c.l.b16 %v703
      %v1578 = vunpack.c.l.b16 %v704
      %v1579 = vunpack.c.l.b16 %v705
      %v1580 = vunpack.c.l.b16 %v706
      %v1581 = vunpack.c.l.b16 %v707
      %v1582 = vunpack.c.l.b16 %v708
      %v1583 = vunpack.c.l.b16 %v709
      %v1584 = vunpack.c.l.b16 %v710
      %v1585 = vunpack.c.l.b16 %v711
      %v1586 = vunpack.c.l.b16 %v712
      %v1587 = vunpack.c.l.b16 %v713
      %v1588 = vunpack.c.l.b16 %v714
      %v1589 = vunpack.c.l.b16 %v715
      %v1590 = vunpack.c.l.b16 %v716
      %v1591 = vunpack.c.l.b16 %v717
      %v1592 = vunpack.c.l.b16 %v718
      %v1593 = vunpack.c.l.b16 %v719
      %v1594 = vunpack.c.l.b16 %v720
      %v1595 = vunpack.c.l.b16 %v721
      %v1596 = vunpack.c.l.b16 %v722
      %v1597 = vunpack.c.l.b16 %v723
      %v1598 = vunpack.c.l.b16 %v724
      %v1599 = vunpack.c.l.b16 %v725
      %v1600 = vunpack.c.l.b16 %v726
      %v1601 = vunpack.c.l.b16 %v727
      %v1602 = vunpack.c.l.b16 %v728
      %v1603 = vunpack.c.l.b16 %v729
      %v1604 = vunpack.c.l.b16 %v730
      %v1605 = vunpack.c.l.b16 %v731
      %v1606 = vunpack.c.l.b16 %v732
      %v1607 = vunpack.c.l.b16 %v733
      %v1608 = vunpack.c.l.b16 %v734
      %v1609 = vunpack.c.l.b16 %v735
      %v1610 = vunpack.c.l.b16 %v736
      %v1611 = vunpack.c.l.b16 %v737
      %v1612 = vunpack.c.l.b16 %v738
      %v1613 = vunpack.c.l.b16 %v739
      %v1614 = vunpack.c.l.b16 %v740
      %v1615 = vunpack.c.l.b16 %v741
      %v1616 = vunpack.c.l.b16 %v742
      %v1617 = vunpack.c.l.b16 %v743
      %v1618 = vunpack.c.l.b16 %v744
      %v1619 = vunpack.c.l.b16 %v745
      %v1620 = vpack.c.b16 %v1573, %v1572
      %v1621 = vpack.c.b16 %v1575, %v1574
      %v1622 = vpack.c.b16 %v1577, %v1576
      %v1623 = vpack.c.b16 %v1579, %v1578
      %v1624 = vpack.c.b16 %v1581, %v1580
      %v1625 = vpack.c.b16 %v1583, %v1582
      %v1626 = vpack.c.b16 %v1585, %v1584
      %v1627 = vpack.c.b16 %v1587, %v1586
      %v1628 = vpack.c.b16 %v1589, %v1588
      %v1629 = vpack.c.b16 %v1591, %v1590
      %v1630 = vpack.c.b16 %v1593, %v1592
      %v1631 = vpack.c.b16 %v1595, %v1594
      %v1632 = vpack.c.b16 %v1597, %v1596
      %v1633 = vpack.c.b16 %v1599, %v1598
      %v1634 = vpack.c.b16 %v1601, %v1600
      %v1635 = vpack.c.b16 %v1603, %v1602
      %v1636 = vpack.c.b16 %v1605, %v1604
      %v1637 = vpack.c.b16 %v1607, %v1606
      %v1638 = vpack.c.b16 %v1609, %v1608
      %v1639 = vpack.c.b16 %v1611, %v1610
      %v1640 = vpack.c.b16 %v1613, %v1612
      %v1641 = vpack.c.b16 %v1615, %v1614
      %v1642 = vpack.c.b16 %v1617, %v1616
      %v1643 = vpack.c.b16 %v1619, %v1618
      %1668 = vmatpush.bf16.msra.mxu0 %v1627
      %1669 = vmatpush.bf16.msra.mxu0 %v1626
      %1670 = vmatpush.bf16.msra.mxu0 %v1625
      %1671 = vmatpush.bf16.msra.mxu0 %v1624
      %1672 = vmatpush.bf16.msra.mxu0 %v1623
      %1673 = vmatpush.bf16.msra.mxu0 %v1622
      %1674 = vmatpush.bf16.msra.mxu0 %v1621
      %1675 = vmatpush.bf16.msra.mxu0 %v1620
      %1676 = vmatmul.bf16.gmra.mxu0 %v1494
      %v1677 = vpop.f32.mrf.mxu0
      %v1678 = vadd.f32 %v1439, %v1677
      %v1679 = vpop.f32.mrf.mxu0
      %v1680 = vadd.f32 %v1441, %v1679
      %1681 = vmatmul.bf16.gmra.mxu0 %v835
      %v1682 = vpop.f32.mrf.mxu0
      %v1683 = vadd.f32 %v1444, %v1682
      %v1684 = vpop.f32.mrf.mxu0
      %v1685 = vadd.f32 %v1446, %v1684
      %1686 = vmatmul.bf16.gmra.mxu0 %v878
      %v1687 = vpop.f32.mrf.mxu0
      %v1688 = vadd.f32 %v1449, %v1687
      %v1689 = vpop.f32.mrf.mxu0
      %v1690 = vadd.f32 %v1451, %v1689
      %1691 = vmatmul.bf16.gmra.mxu0 %v921
      %v1692 = vpop.f32.mrf.mxu0
      %v1693 = vadd.f32 %v1454, %v1692
      %v1694 = vpop.f32.mrf.mxu0
      %v1695 = vadd.f32 %v1456, %v1694
      %1696 = vmatmul.bf16.gmra.mxu0 %v964
      %v1697 = vpop.f32.mrf.mxu0
      %v1698 = vadd.f32 %v1459, %v1697
      %v1699 = vpop.f32.mrf.mxu0
      %v1700 = vadd.f32 %v1461, %v1699
      %1701 = vmatmul.bf16.gmra.mxu0 %v1007
      %v1702 = vpop.f32.mrf.mxu0
      %v1703 = vadd.f32 %v1464, %v1702
      %v1704 = vpop.f32.mrf.mxu0
      %v1705 = vadd.f32 %v1466, %v1704
      %1706 = vmatmul.bf16.gmra.mxu0 %v1050
      %v1707 = vpop.f32.mrf.mxu0
      %v1708 = vadd.f32 %v1469, %v1707
      %v1709 = vpop.f32.mrf.mxu0
      %v1710 = vadd.f32 %v1471, %v1709
      %1711 = vmatmul.bf16.gmra.mxu0 %v1093
      %v1712 = vpop.f32.mrf.mxu0
      %v1713 = vadd.f32 %v1474, %v1712
      %v1714 = vpop.f32.mrf.mxu0
      %v1715 = vadd.f32 %v1476, %v1714
      %1716 = vdwg.mxu0
      %1717 = vmatpush.bf16.msra.mxu0 %v1635
      %1718 = vmatpush.bf16.msra.mxu0 %v1634
      %1719 = vmatpush.bf16.msra.mxu0 %v1633
      %1720 = vmatpush.bf16.msra.mxu0 %v1632
      %1721 = vmatpush.bf16.msra.mxu0 %v1631
      %1722 = vmatpush.bf16.msra.mxu0 %v1630
      %1723 = vmatpush.bf16.msra.mxu0 %v1629
      %1724 = vmatpush.bf16.msra.mxu0 %v1628
      %1725 = vmatmul.bf16.gmra.mxu0 %v1503
      %v1726 = vpop.f32.mrf.mxu0
      %v1727 = vadd.f32 %v1678, %v1726
      %v1728 = vpop.f32.mrf.mxu0
      %v1729 = vadd.f32 %v1680, %v1728
      %1730 = vmatmul.bf16.gmra.mxu0 %v844
      %v1731 = vpop.f32.mrf.mxu0
      %v1732 = vadd.f32 %v1683, %v1731
      %v1733 = vpop.f32.mrf.mxu0
      %v1734 = vadd.f32 %v1685, %v1733
      %1735 = vmatmul.bf16.gmra.mxu0 %v887
      %v1736 = vpop.f32.mrf.mxu0
      %v1737 = vadd.f32 %v1688, %v1736
      %v1738 = vpop.f32.mrf.mxu0
      %v1739 = vadd.f32 %v1690, %v1738
      %1740 = vmatmul.bf16.gmra.mxu0 %v930
      %v1741 = vpop.f32.mrf.mxu0
      %v1742 = vadd.f32 %v1693, %v1741
      %v1743 = vpop.f32.mrf.mxu0
      %v1744 = vadd.f32 %v1695, %v1743
      %1745 = vmatmul.bf16.gmra.mxu0 %v973
      %v1746 = vpop.f32.mrf.mxu0
      %v1747 = vadd.f32 %v1698, %v1746
      %v1748 = vpop.f32.mrf.mxu0
      %v1749 = vadd.f32 %v1700, %v1748
      %1750 = vmatmul.bf16.gmra.mxu0 %v1016
      %v1751 = vpop.f32.mrf.mxu0
      %v1752 = vadd.f32 %v1703, %v1751
      %v1753 = vpop.f32.mrf.mxu0
      %v1754 = vadd.f32 %v1705, %v1753
      %1755 = vmatmul.bf16.gmra.mxu0 %v1059
      %v1756 = vpop.f32.mrf.mxu0
      %v1757 = vadd.f32 %v1708, %v1756
      %v1758 = vpop.f32.mrf.mxu0
      %v1759 = vadd.f32 %v1710, %v1758
      %1760 = vmatmul.bf16.gmra.mxu0 %v1102
      %v1761 = vpop.f32.mrf.mxu0
      %v1762 = vadd.f32 %v1713, %v1761
      %v1763 = vpop.f32.mrf.mxu0
      %v1764 = vadd.f32 %v1715, %v1763
      %1765 = vdwg.mxu0
      %1766 = vmatpush.bf16.msra.mxu0 %v1643
      %1767 = vmatpush.bf16.msra.mxu0 %v1642
      %1768 = vmatpush.bf16.msra.mxu0 %v1641
      %1769 = vmatpush.bf16.msra.mxu0 %v1640
      %1770 = vmatpush.bf16.msra.mxu0 %v1639
      %1771 = vmatpush.bf16.msra.mxu0 %v1638
      %1772 = vmatpush.bf16.msra.mxu0 %v1637
      %1773 = vmatpush.bf16.msra.mxu0 %v1636
      %1774 = vmatmul.bf16.gmra.mxu0 %v1520
      %v1775 = vpop.f32.mrf.mxu0
      %v1776 = vadd.f32 %v1727, %v1775
      %v1777 = vpop.f32.mrf.mxu0
      %v1778 = vadd.f32 %v1729, %v1777
      %1779 = vmatmul.bf16.gmra.mxu0 %v861
      %v1780 = vpop.f32.mrf.mxu0
      %v1781 = vadd.f32 %v1732, %v1780
      %v1782 = vpop.f32.mrf.mxu0
      %v1783 = vadd.f32 %v1734, %v1782
      %1784 = vmatmul.bf16.gmra.mxu0 %v904
      %v1785 = vpop.f32.mrf.mxu0
      %v1786 = vadd.f32 %v1737, %v1785
      %v1787 = vpop.f32.mrf.mxu0
      %v1788 = vadd.f32 %v1739, %v1787
      %1789 = vmatmul.bf16.gmra.mxu0 %v947
      %v1790 = vpop.f32.mrf.mxu0
      %v1791 = vadd.f32 %v1742, %v1790
      %v1792 = vpop.f32.mrf.mxu0
      %v1793 = vadd.f32 %v1744, %v1792
      %1794 = vmatmul.bf16.gmra.mxu0 %v990
      %v1795 = vpop.f32.mrf.mxu0
      %v1796 = vadd.f32 %v1747, %v1795
      %v1797 = vpop.f32.mrf.mxu0
      %v1798 = vadd.f32 %v1749, %v1797
      %1799 = vmatmul.bf16.gmra.mxu0 %v1033
      %v1800 = vpop.f32.mrf.mxu0
      %v1801 = vadd.f32 %v1752, %v1800
      %v1802 = vpop.f32.mrf.mxu0
      %v1803 = vadd.f32 %v1754, %v1802
      %1804 = vmatmul.bf16.gmra.mxu0 %v1076
      %v1805 = vpop.f32.mrf.mxu0
      %v1806 = vadd.f32 %v1757, %v1805
      %v1807 = vpop.f32.mrf.mxu0
      %v1808 = vadd.f32 %v1759, %v1807
      %1809 = vmatmul.bf16.gmra.mxu0 %v1119
      %v1810 = vpop.f32.mrf.mxu0
      %v1811 = vadd.f32 %v1762, %v1810
      %v1812 = vpop.f32.mrf.mxu0
      %v1813 = vadd.f32 %v1764, %v1812
      %1814 = vdwg.mxu0
      %v1818 = vunpack.c.l.b16 %v509
      %v1819 = vunpack.c.l.b16 %v510
      %v1820 = vunpack.c.l.b16 %v511
      %v1821 = vpack.c.b16 %v1819, %v1818
      %v1822 = vpack.c.b16 %v1820, %v1820
      %v1823 = vpack.c.b16 %v1820, %v1819
      %v1825 = vshrl.u32 %v1823, 16
      %v1827 = vrot.slane %v1825, 4
      %v1828 = vshll.u32 %v1823, 16
      %v1830 = vrot.slane %v1828, 5
      %v1831 = vor.u32 %v1827, %v1830
      %v1833 = vunpack.c.l.b16 %v512
      %v1834 = vpack.c.b16 %v1833, %v1833
      %v1835 = vrot.slane %v1823, 5
      %v1836 = vrot.slane %v1834, 5
      %v1837 = vsel %vm673, %v1835, %v1836
      %s1838 = scalar_lea.vmem %s3, 384
      %v1839 = vld [vmem:[%s1838] sm:$0xf]
      %v1840 = vld [vmem:[%s1838 + $0x4] sm:$0xf]
      %v1841 = vld [vmem:[%s1838 + $0x8] sm:$0xf]
      %v1842 = vld [vmem:[%s1838 + $0xc] sm:$0xf]
      %v1843 = vld [vmem:[%s1838 + $0x10] sm:$0xf]
      %v1844 = vld [vmem:[%s1838 + $0x14] sm:$0xf]
      %v1845 = vld [vmem:[%s1838 + $0x18] sm:$0xf]
      %v1846 = vld [vmem:[%s1838 + $0x1c] sm:$0xf]
      %v1847 = vld [vmem:[%s1838 + $0x20] sm:$0xf]
      %v1848 = vld [vmem:[%s1838 + $0x24] sm:$0xf]
      %v1849 = vld [vmem:[%s1838 + $0x28] sm:$0xf]
      %v1850 = vld [vmem:[%s1838 + $0x2c] sm:$0xf]
      %v1851 = vld [vmem:[%s1838 + $0x30] sm:$0xf]
      %v1852 = vld [vmem:[%s1838 + $0x34] sm:$0xf]
      %v1853 = vld [vmem:[%s1838 + $0x38] sm:$0xf]
      %v1854 = vld [vmem:[%s1838 + $0x3c] sm:$0xf]
      %v1855 = vld [vmem:[%s1838 + $0x40] sm:$0xf]
      %v1856 = vld [vmem:[%s1838 + $0x44] sm:$0xf]
      %v1857 = vld [vmem:[%s1838 + $0x48] sm:$0xf]
      %v1858 = vld [vmem:[%s1838 + $0x4c] sm:$0xf]
      %v1859 = vld [vmem:[%s1838 + $0x50] sm:$0xf]
      %v1860 = vld [vmem:[%s1838 + $0x54] sm:$0xf]
      %v1861 = vld [vmem:[%s1838 + $0x58] sm:$0xf]
      %v1862 = vld [vmem:[%s1838 + $0x5c] sm:$0xf]
      %v1863 = vld [vmem:[%s1838 + $0x60] sm:$0xf]
      %v1864 = vld [vmem:[%s1838 + $0x64] sm:$0xf]
      %v1865 = vld [vmem:[%s1838 + $0x68] sm:$0xf]
      %v1866 = vld [vmem:[%s1838 + $0x6c] sm:$0xf]
      %v1867 = vld [vmem:[%s1838 + $0x70] sm:$0xf]
      %v1868 = vld [vmem:[%s1838 + $0x74] sm:$0xf]
      %v1869 = vld [vmem:[%s1838 + $0x78] sm:$0xf]
      %v1870 = vld [vmem:[%s1838 + $0x7c] sm:$0xf]
      %v1871 = vld [vmem:[%s1838 + $0x80] sm:$0xf]
      %v1872 = vld [vmem:[%s1838 + $0x84] sm:$0xf]
      %v1873 = vld [vmem:[%s1838 + $0x88] sm:$0xf]
      %v1874 = vld [vmem:[%s1838 + $0x8c] sm:$0xf]
      %v1875 = vld [vmem:[%s1838 + $0x90] sm:$0xf]
      %v1876 = vld [vmem:[%s1838 + $0x94] sm:$0xf]
      %v1877 = vld [vmem:[%s1838 + $0x98] sm:$0xf]
      %v1878 = vld [vmem:[%s1838 + $0x9c] sm:$0xf]
      %v1879 = vld [vmem:[%s1838 + $0xa0] sm:$0xf]
      %v1880 = vld [vmem:[%s1838 + $0xa4] sm:$0xf]
      %v1881 = vld [vmem:[%s1838 + $0xa8] sm:$0xf]
      %v1882 = vld [vmem:[%s1838 + $0xac] sm:$0xf]
      %v1883 = vld [vmem:[%s1838 + $0xb0] sm:$0xf]
      %v1884 = vld [vmem:[%s1838 + $0xb4] sm:$0xf]
      %v1885 = vld [vmem:[%s1838 + $0xb8] sm:$0xf]
      %v1886 = vld [vmem:[%s1838 + $0xbc] sm:$0xf]
      %v1888 = vshrl.u32 %v1821, 16
      %v1890 = vrot.slane %v1888, 3
      %v1891 = vshll.u32 %v1821, 16
      %v1893 = vrot.slane %v1891, 4
      %v1894 = vor.u32 %v1890, %v1893
      %v1896 = vshrl.u32 %v1822, 16
      %v1898 = vrot.slane %v1896, 3
      %v1899 = vshll.u32 %v1822, 16
      %v1901 = vrot.slane %v1899, 4
      %v1902 = vor.u32 %v1898, %v1901
      %v1903 = vsel %vm818, %v1894, %v1902
      %v1905 = vshrl.u32 %v1831, 16
      %v1907 = vrot.slane %v1905, 3
      %v1908 = vshll.u32 %v1831, 16
      %v1910 = vrot.slane %v1908, 4
      %v1911 = vor.u32 %v1907, %v1910
      %v1912 = vsel %vm818, %v1911, %v1911
      %v1914 = vshrl.u32 %v1835, 16
      %v1916 = vrot.slane %v1914, 3
      %v1917 = vshll.u32 %v1835, 16
      %v1919 = vrot.slane %v1917, 4
      %v1920 = vor.u32 %v1916, %v1919
      %v1922 = vshrl.u32 %v1837, 16
      %v1924 = vrot.slane %v1922, 3
      %v1925 = vshll.u32 %v1837, 16
      %v1927 = vrot.slane %v1925, 4
      %v1928 = vor.u32 %v1924, %v1927
      %v1929 = vsel %vm818, %v1920, %v1928
      %v1981 = vunpack.c.l.b16 %v1839
      %v1982 = vunpack.c.l.b16 %v1840
      %v1983 = vunpack.c.l.b16 %v1841
      %v1984 = vunpack.c.l.b16 %v1842
      %v1985 = vunpack.c.l.b16 %v1843
      %v1986 = vunpack.c.l.b16 %v1844
      %v1987 = vunpack.c.l.b16 %v1845
      %v1988 = vunpack.c.l.b16 %v1846
      %v1989 = vunpack.c.l.b16 %v1847
      %v1990 = vunpack.c.l.b16 %v1848
      %v1991 = vunpack.c.l.b16 %v1849
      %v1992 = vunpack.c.l.b16 %v1850
      %v1993 = vunpack.c.l.b16 %v1851
      %v1994 = vunpack.c.l.b16 %v1852
      %v1995 = vunpack.c.l.b16 %v1853
      %v1996 = vunpack.c.l.b16 %v1854
      %v1997 = vunpack.c.l.b16 %v1855
      %v1998 = vunpack.c.l.b16 %v1856
      %v1999 = vunpack.c.l.b16 %v1857
      %v2000 = vunpack.c.l.b16 %v1858
      %v2001 = vunpack.c.l.b16 %v1859
      %v2002 = vunpack.c.l.b16 %v1860
      %v2003 = vunpack.c.l.b16 %v1861
      %v2004 = vunpack.c.l.b16 %v1862
      %v2005 = vunpack.c.l.b16 %v1863
      %v2006 = vunpack.c.l.b16 %v1864
      %v2007 = vunpack.c.l.b16 %v1865
      %v2008 = vunpack.c.l.b16 %v1866
      %v2009 = vunpack.c.l.b16 %v1867
      %v2010 = vunpack.c.l.b16 %v1868
      %v2011 = vunpack.c.l.b16 %v1869
      %v2012 = vunpack.c.l.b16 %v1870
      %v2013 = vunpack.c.l.b16 %v1871
      %v2014 = vunpack.c.l.b16 %v1872
      %v2015 = vunpack.c.l.b16 %v1873
      %v2016 = vunpack.c.l.b16 %v1874
      %v2017 = vunpack.c.l.b16 %v1875
      %v2018 = vunpack.c.l.b16 %v1876
      %v2019 = vunpack.c.l.b16 %v1877
      %v2020 = vunpack.c.l.b16 %v1878
      %v2021 = vunpack.c.l.b16 %v1879
      %v2022 = vunpack.c.l.b16 %v1880
      %v2023 = vunpack.c.l.b16 %v1881
      %v2024 = vunpack.c.l.b16 %v1882
      %v2025 = vunpack.c.l.b16 %v1883
      %v2026 = vunpack.c.l.b16 %v1884
      %v2027 = vunpack.c.l.b16 %v1885
      %v2028 = vunpack.c.l.b16 %v1886
      %v2029 = vpack.c.b16 %v1982, %v1981
      %v2030 = vpack.c.b16 %v1984, %v1983
      %v2031 = vpack.c.b16 %v1986, %v1985
      %v2032 = vpack.c.b16 %v1988, %v1987
      %v2033 = vpack.c.b16 %v1990, %v1989
      %v2034 = vpack.c.b16 %v1992, %v1991
      %v2035 = vpack.c.b16 %v1994, %v1993
      %v2036 = vpack.c.b16 %v1996, %v1995
      %v2037 = vpack.c.b16 %v1998, %v1997
      %v2038 = vpack.c.b16 %v2000, %v1999
      %v2039 = vpack.c.b16 %v2002, %v2001
      %v2040 = vpack.c.b16 %v2004, %v2003
      %v2041 = vpack.c.b16 %v2006, %v2005
      %v2042 = vpack.c.b16 %v2008, %v2007
      %v2043 = vpack.c.b16 %v2010, %v2009
      %v2044 = vpack.c.b16 %v2012, %v2011
      %v2045 = vpack.c.b16 %v2014, %v2013
      %v2046 = vpack.c.b16 %v2016, %v2015
      %v2047 = vpack.c.b16 %v2018, %v2017
      %v2048 = vpack.c.b16 %v2020, %v2019
      %v2049 = vpack.c.b16 %v2022, %v2021
      %v2050 = vpack.c.b16 %v2024, %v2023
      %v2051 = vpack.c.b16 %v2026, %v2025
      %v2052 = vpack.c.b16 %v2028, %v2027
      %2077 = vmatpush.bf16.msra.mxu0 %v2036
      %2078 = vmatpush.bf16.msra.mxu0 %v2035
      %2079 = vmatpush.bf16.msra.mxu0 %v2034
      %2080 = vmatpush.bf16.msra.mxu0 %v2033
      %2081 = vmatpush.bf16.msra.mxu0 %v2032
      %2082 = vmatpush.bf16.msra.mxu0 %v2031
      %2083 = vmatpush.bf16.msra.mxu0 %v2030
      %2084 = vmatpush.bf16.msra.mxu0 %v2029
      %2085 = vmatmul.bf16.gmra.mxu0 %v878
      %v2086 = vpop.f32.mrf.mxu0
      %v2087 = vadd.f32 0.0, %v2086
      %v2088 = vpop.f32.mrf.mxu0
      %v2089 = vadd.f32 0.0, %v2088
      %2090 = vmatmul.bf16.gmra.mxu0 %v921
      %v2091 = vpop.f32.mrf.mxu0
      %v2092 = vadd.f32 0.0, %v2091
      %v2093 = vpop.f32.mrf.mxu0
      %v2094 = vadd.f32 0.0, %v2093
      %2095 = vmatmul.bf16.gmra.mxu0 %v964
      %v2096 = vpop.f32.mrf.mxu0
      %v2097 = vadd.f32 0.0, %v2096
      %v2098 = vpop.f32.mrf.mxu0
      %v2099 = vadd.f32 0.0, %v2098
      %2100 = vmatmul.bf16.gmra.mxu0 %v1007
      %v2101 = vpop.f32.mrf.mxu0
      %v2102 = vadd.f32 0.0, %v2101
      %v2103 = vpop.f32.mrf.mxu0
      %v2104 = vadd.f32 0.0, %v2103
      %2105 = vmatmul.bf16.gmra.mxu0 %v1050
      %v2106 = vpop.f32.mrf.mxu0
      %v2107 = vadd.f32 0.0, %v2106
      %v2108 = vpop.f32.mrf.mxu0
      %v2109 = vadd.f32 0.0, %v2108
      %2110 = vmatmul.bf16.gmra.mxu0 %v1093
      %v2111 = vpop.f32.mrf.mxu0
      %v2112 = vadd.f32 0.0, %v2111
      %v2113 = vpop.f32.mrf.mxu0
      %v2114 = vadd.f32 0.0, %v2113
      %2115 = vmatmul.bf16.gmra.mxu0 %v1136
      %v2116 = vpop.f32.mrf.mxu0
      %v2117 = vadd.f32 0.0, %v2116
      %v2118 = vpop.f32.mrf.mxu0
      %v2119 = vadd.f32 0.0, %v2118
      %2120 = vmatmul.bf16.gmra.mxu0 %v1903
      %v2121 = vpop.f32.mrf.mxu0
      %v2122 = vadd.f32 0.0, %v2121
      %v2123 = vpop.f32.mrf.mxu0
      %v2124 = vadd.f32 0.0, %v2123
      %2125 = vdwg.mxu0
      %2126 = vmatpush.bf16.msra.mxu0 %v2044
      %2127 = vmatpush.bf16.msra.mxu0 %v2043
      %2128 = vmatpush.bf16.msra.mxu0 %v2042
      %2129 = vmatpush.bf16.msra.mxu0 %v2041
      %2130 = vmatpush.bf16.msra.mxu0 %v2040
      %2131 = vmatpush.bf16.msra.mxu0 %v2039
      %2132 = vmatpush.bf16.msra.mxu0 %v2038
      %2133 = vmatpush.bf16.msra.mxu0 %v2037
      %2134 = vmatmul.bf16.gmra.mxu0 %v887
      %v2135 = vpop.f32.mrf.mxu0
      %v2136 = vadd.f32 %v2087, %v2135
      %v2137 = vpop.f32.mrf.mxu0
      %v2138 = vadd.f32 %v2089, %v2137
      %2139 = vmatmul.bf16.gmra.mxu0 %v930
      %v2140 = vpop.f32.mrf.mxu0
      %v2141 = vadd.f32 %v2092, %v2140
      %v2142 = vpop.f32.mrf.mxu0
      %v2143 = vadd.f32 %v2094, %v2142
      %2144 = vmatmul.bf16.gmra.mxu0 %v973
      %v2145 = vpop.f32.mrf.mxu0
      %v2146 = vadd.f32 %v2097, %v2145
      %v2147 = vpop.f32.mrf.mxu0
      %v2148 = vadd.f32 %v2099, %v2147
      %2149 = vmatmul.bf16.gmra.mxu0 %v1016
      %v2150 = vpop.f32.mrf.mxu0
      %v2151 = vadd.f32 %v2102, %v2150
      %v2152 = vpop.f32.mrf.mxu0
      %v2153 = vadd.f32 %v2104, %v2152
      %2154 = vmatmul.bf16.gmra.mxu0 %v1059
      %v2155 = vpop.f32.mrf.mxu0
      %v2156 = vadd.f32 %v2107, %v2155
      %v2157 = vpop.f32.mrf.mxu0
      %v2158 = vadd.f32 %v2109, %v2157
      %2159 = vmatmul.bf16.gmra.mxu0 %v1102
      %v2160 = vpop.f32.mrf.mxu0
      %v2161 = vadd.f32 %v2112, %v2160
      %v2162 = vpop.f32.mrf.mxu0
      %v2163 = vadd.f32 %v2114, %v2162
      %2164 = vmatmul.bf16.gmra.mxu0 %v1145
      %v2165 = vpop.f32.mrf.mxu0
      %v2166 = vadd.f32 %v2117, %v2165
      %v2167 = vpop.f32.mrf.mxu0
      %v2168 = vadd.f32 %v2119, %v2167
      %2169 = vmatmul.bf16.gmra.mxu0 %v1912
      %v2170 = vpop.f32.mrf.mxu0
      %v2171 = vadd.f32 %v2122, %v2170
      %v2172 = vpop.f32.mrf.mxu0
      %v2173 = vadd.f32 %v2124, %v2172
      %2174 = vdwg.mxu0
      %2175 = vmatpush.bf16.msra.mxu0 %v2052
      %2176 = vmatpush.bf16.msra.mxu0 %v2051
      %2177 = vmatpush.bf16.msra.mxu0 %v2050
      %2178 = vmatpush.bf16.msra.mxu0 %v2049
      %2179 = vmatpush.bf16.msra.mxu0 %v2048
      %2180 = vmatpush.bf16.msra.mxu0 %v2047
      %2181 = vmatpush.bf16.msra.mxu0 %v2046
      %2182 = vmatpush.bf16.msra.mxu0 %v2045
      %2183 = vmatmul.bf16.gmra.mxu0 %v904
      %v2184 = vpop.f32.mrf.mxu0
      %v2185 = vadd.f32 %v2136, %v2184
      %v2186 = vpop.f32.mrf.mxu0
      %v2187 = vadd.f32 %v2138, %v2186
      %2188 = vmatmul.bf16.gmra.mxu0 %v947
      %v2189 = vpop.f32.mrf.mxu0
      %v2190 = vadd.f32 %v2141, %v2189
      %v2191 = vpop.f32.mrf.mxu0
      %v2192 = vadd.f32 %v2143, %v2191
      %2193 = vmatmul.bf16.gmra.mxu0 %v990
      %v2194 = vpop.f32.mrf.mxu0
      %v2195 = vadd.f32 %v2146, %v2194
      %v2196 = vpop.f32.mrf.mxu0
      %v2197 = vadd.f32 %v2148, %v2196
      %2198 = vmatmul.bf16.gmra.mxu0 %v1033
      %v2199 = vpop.f32.mrf.mxu0
      %v2200 = vadd.f32 %v2151, %v2199
      %v2201 = vpop.f32.mrf.mxu0
      %v2202 = vadd.f32 %v2153, %v2201
      %2203 = vmatmul.bf16.gmra.mxu0 %v1076
      %v2204 = vpop.f32.mrf.mxu0
      %v2205 = vadd.f32 %v2156, %v2204
      %v2206 = vpop.f32.mrf.mxu0
      %v2207 = vadd.f32 %v2158, %v2206
      %2208 = vmatmul.bf16.gmra.mxu0 %v1119
      %v2209 = vpop.f32.mrf.mxu0
      %v2210 = vadd.f32 %v2161, %v2209
      %v2211 = vpop.f32.mrf.mxu0
      %v2212 = vadd.f32 %v2163, %v2211
      %2213 = vmatmul.bf16.gmra.mxu0 %v1162
      %v2214 = vpop.f32.mrf.mxu0
      %v2215 = vadd.f32 %v2166, %v2214
      %v2216 = vpop.f32.mrf.mxu0
      %v2217 = vadd.f32 %v2168, %v2216
      %2218 = vmatmul.bf16.gmra.mxu0 %v1929
      %v2219 = vpop.f32.mrf.mxu0
      %v2220 = vadd.f32 %v2171, %v2219
      %v2221 = vpop.f32.mrf.mxu0
      %v2222 = vadd.f32 %v2173, %v2221
      %2223 = vdwg.mxu0
      %v2224 = vadd.f32 %v1776, %v2185
      %v2225 = vadd.f32 %v1778, %v2187
      %v2226 = vadd.f32 %v1781, %v2190
      %v2227 = vadd.f32 %v1783, %v2192
      %v2228 = vadd.f32 %v1786, %v2195
      %v2229 = vadd.f32 %v1788, %v2197
      %v2230 = vadd.f32 %v1791, %v2200
      %v2231 = vadd.f32 %v1793, %v2202
      %v2232 = vadd.f32 %v1796, %v2205
      %v2233 = vadd.f32 %v1798, %v2207
      %v2234 = vadd.f32 %v1801, %v2210
      %v2235 = vadd.f32 %v1803, %v2212
      %v2236 = vadd.f32 %v1806, %v2215
      %v2237 = vadd.f32 %v1808, %v2217
      %v2238 = vadd.f32 %v1811, %v2220
      %v2239 = vadd.f32 %v1813, %v2222
      %v2240 = vld [vmem:[%s4] sm:$0x1]
      %v2242 = vperm.slane %v2240, 0
      %v2244 = vmul.f32 %v2224, %v2242
      %v2245 = vmul.f32 %v2225, %v2242
      %v2246 = vmul.f32 %v2226, %v2242
      %v2247 = vmul.f32 %v2227, %v2242
      %v2248 = vmul.f32 %v2228, %v2242
      %v2249 = vmul.f32 %v2229, %v2242
      %v2250 = vmul.f32 %v2230, %v2242
      %v2251 = vmul.f32 %v2231, %v2242
      %v2252 = vmul.f32 %v2232, %v2242
      %v2253 = vmul.f32 %v2233, %v2242
      %v2254 = vmul.f32 %v2234, %v2242
      %v2255 = vmul.f32 %v2235, %v2242
      %v2256 = vmul.f32 %v2236, %v2242
      %v2257 = vmul.f32 %v2237, %v2242
      %v2258 = vmul.f32 %v2238, %v2242
      %v2259 = vmul.f32 %v2239, %v2242
      %v2260 = vld [vmem:[%s5] sm:$0x1]
      %v2262 = vperm.slane %v2260, 0
      %v2264 = vadd.f32 %v2244, %v2262
      %v2265 = vadd.f32 %v2245, %v2262
      %v2266 = vadd.f32 %v2246, %v2262
      %v2267 = vadd.f32 %v2247, %v2262
      %v2268 = vadd.f32 %v2248, %v2262
      %v2269 = vadd.f32 %v2249, %v2262
      %v2270 = vadd.f32 %v2250, %v2262
      %v2271 = vadd.f32 %v2251, %v2262
      %v2272 = vadd.f32 %v2252, %v2262
      %v2273 = vadd.f32 %v2253, %v2262
      %v2274 = vadd.f32 %v2254, %v2262
      %v2275 = vadd.f32 %v2255, %v2262
      %v2276 = vadd.f32 %v2256, %v2262
      %v2277 = vadd.f32 %v2257, %v2262
      %v2278 = vadd.f32 %v2258, %v2262
      %v2279 = vadd.f32 %v2259, %v2262
      %v2280 = vmax.f32 %v2264, 0.0
      %v2281 = vmax.f32 %v2265, 0.0
      %v2282 = vmax.f32 %v2266, 0.0
      %v2283 = vmax.f32 %v2267, 0.0
      %v2284 = vmax.f32 %v2268, 0.0
      %v2285 = vmax.f32 %v2269, 0.0
      %v2286 = vmax.f32 %v2270, 0.0
      %v2287 = vmax.f32 %v2271, 0.0
      %v2288 = vmax.f32 %v2272, 0.0
      %v2289 = vmax.f32 %v2273, 0.0
      %v2290 = vmax.f32 %v2274, 0.0
      %v2291 = vmax.f32 %v2275, 0.0
      %v2292 = vmax.f32 %v2276, 0.0
      %v2293 = vmax.f32 %v2277, 0.0
      %v2294 = vmax.f32 %v2278, 0.0
      %v2295 = vmax.f32 %v2279, 0.0
      %v2296 = vpack.c.bf16 %v2280, %v2280
      %v2297 = vpack.c.bf16 %v2281, %v2281
      %v2298 = vpack.c.bf16 %v2282, %v2282
      %v2299 = vpack.c.bf16 %v2283, %v2283
      %v2300 = vpack.c.bf16 %v2284, %v2284
      %v2301 = vpack.c.bf16 %v2285, %v2285
      %v2302 = vpack.c.bf16 %v2286, %v2286
      %v2303 = vpack.c.bf16 %v2287, %v2287
      %v2304 = vpack.c.bf16 %v2288, %v2288
      %v2305 = vpack.c.bf16 %v2289, %v2289
      %v2306 = vpack.c.bf16 %v2290, %v2290
      %v2307 = vpack.c.bf16 %v2291, %v2291
      %v2308 = vpack.c.bf16 %v2292, %v2292
      %v2309 = vpack.c.bf16 %v2293, %v2293
      %v2310 = vpack.c.bf16 %v2294, %v2294
      %v2311 = vpack.c.bf16 %v2295, %v2295
      %2312 = vst [vmem:[%s362] sm:$0xf] %v2296
      %2313 = vst [vmem:[%s362 + $0x4] sm:$0xf] %v2297
      %2314 = vst [vmem:[%s362 + $0x8] sm:$0xf] %v2298
      %2315 = vst [vmem:[%s362 + $0xc] sm:$0xf] %v2299
      %2316 = vst [vmem:[%s362 + $0x10] sm:$0xf] %v2300
      %2317 = vst [vmem:[%s362 + $0x14] sm:$0xf] %v2301
      %2318 = vst [vmem:[%s362 + $0x18] sm:$0xf] %v2302
      %2319 = vst [vmem:[%s362 + $0x1c] sm:$0xf] %v2303
      %2320 = vst [vmem:[%s362 + $0x20] sm:$0xf] %v2304
      %2321 = vst [vmem:[%s362 + $0x24] sm:$0xf] %v2305
      %2322 = vst [vmem:[%s362 + $0x28] sm:$0xf] %v2306
      %2323 = vst [vmem:[%s362 + $0x2c] sm:$0xf] %v2307
      %2324 = vst [vmem:[%s362 + $0x30] sm:$0xf] %v2308
      %2325 = vst [vmem:[%s362 + $0x34] sm:$0xf] %v2309
      %2326 = vst [vmem:[%s362 + $0x38] sm:$0xf] %v2310
      %2327 = vst [vmem:[%s362 + $0x3c] sm:$0xf] %v2311
      %s2328 = smul.u32 8, %s22
      %p2329 = scmp.lt.s32.totalorder %s21, 1
      %s2330 = scalar_select %p2329, %s21, 1
      %p2331 = scmp.lt.s32.totalorder %s2328, 15
      %s2332 = scalar_select %p2331, %s2328, 15
      %s2333 = smul.addr %s2332, 2
      %s2334 = smul.addr %s2330, 32
      %s2335 = sadd.s32 %s2333, %s2334
      %s2336 = smul.addr %s2335, 4
      %s2337 = scalar_lea.vmem %s6, %s2336
      // Predicated region
      $region45: #{decoder_forward.3} parent=43 // pred_check
        %p2338 = pneg %p196
      $region46: #{decoder_forward.3} parent=43 // pred_check_branch
        %2340 = sbr.rel (%p2338) target = $region48
      $region47: #{decoder_forward.3} parent=43 // pred_region
        %s2341 = smul.u32 8, %s22
      $region48: #{decoder_forward.3} parent=43 // pred_fallthru
        _
    $region44: #{decoder_forward.3} parent=5 // pred_fallthru
      _
    %p2342 = scmp.le.s32.totalorder 2, %s12
    // Predicated region
    $region49: #{decoder_forward.3} parent=5 // pred_check
      %p2343 = pneg %p2342
    $region50: #{decoder_forward.3} parent=5 // pred_check_branch
      %2345 = sbr.rel (%p2343) target = $region52
    $region51: #{decoder_forward.3} parent=5 // pred_region
      %s2346 = ssub.s32 %s12, 2
      // Predicated region
      $region53: #{decoder_forward.3} parent=51 // pred_check
        %p2347 = pneg %p202
      $region54: #{decoder_forward.3} parent=51 // pred_check_branch
        %2349 = sbr.rel (%p2347) target = $region56
      $region55: #{decoder_forward.3} parent=51 // pred_region
        %s2350 = smul.u32 8, %s24
        %p2351 = scmp.lt.s32.totalorder %s23, 1
        %s2352 = scalar_select %p2351, %s23, 1
        %p2353 = scmp.lt.s32.totalorder %s2350, 15
        %s2354 = scalar_select %p2353, %s2350, 15
        %s2355 = smul.addr %s2354, 2
        %s2356 = smul.addr %s2352, 32
        %s2357 = sadd.s32 %s2355, %s2356
        %s2358 = smul.addr %s2357, 4
        %s2359 = scalar_lea.vmem %s6, %s2358
      $region56: #{decoder_forward.3} parent=51 // pred_fallthru
        _
    $region52: #{decoder_forward.3} parent=5 // pred_fallthru
      _
  $region6: #{decoder_forward.3} parent=0 // loop_footer
    %s16 = sadd.s32 1, %s12
  $region7: #{decoder_forward.3} parent=0 // loop_footer_branch
    %11 = sbr.rel target = $region3
  $region8: #{decoder_forward.3} parent=0 // loop_exit
    _

// kernel: decoder_forward.4
$region0: #{decoder_forward.4}
  #allocation0 [shape = 'u32[]', space=smem, size = 0x4, offset = 0x4, fixed_abs, tag = 'smem constant byte address 0x4 - core index']
  #allocation1 [shape = 'u32[72,128]{1,0:T(1,128)}', space=vmem, size = 0x9000, scoped, tag = 'internal scratch']
  #allocation2 [shape = 'bf16[10,32,128]{2,1,0:T(8,128)(2,1)}', space=vmem, size = 0x14000, scoped, tag = 'scratch operand']
  %s0 = inlined_call_operand.vmem [shape: bf16[2,2,16,128], index: 0, kind: input, shape index: {}]
  %s1 = inlined_call_operand.vmem [shape: bf16[2,16,16,128], index: 1, kind: input, shape index: {}]
  %s2 = inlined_call_operand.vmem [shape: bf16[2,2,16,128], index: 2, kind: input, shape index: {}]
  %s3 = inlined_call_operand.vmem [shape: bf16[3,384,128], index: 3, kind: input, shape index: {}]
  %s4 = inlined_call_operand.vmem [shape: f32[1,128], index: 4, kind: input, shape index: {}]
  %s5 = inlined_call_operand.vmem [shape: f32[1,128], index: 5, kind: input, shape index: {}]
  %s6 = inlined_call_operand.vmem [shape: bf16[128,128], index: 6, kind: input, shape index: {}]
  %s7 = inlined_call_operand.vmem [shape: f32[1,128], index: 7, kind: input, shape index: {}]
  %s8 = inlined_call_operand.vmem [shape: bf16[2,16,16,128], index: 8, kind: output, shape index: {}]
  %s9 = sld [smem:[#allocation0]]
  $region65: #{decoder_forward.4} parent=0
    _
  %s11 = ssub.s32 1, %s9
  %s12 = scalar_select 0, %s11, %s9
  loop: start=0, step=1, limit=6
  $region2: #{decoder_forward.4} parent=0 // loop_pre_header
    _
  $region3: #{decoder_forward.4} parent=0 // loop_header
    %s14 = sphi 0, %s18
    %p15 = scmp.ge.s32.totalorder %s14, 6
    %s21 = sphi 0, %s33
    %s22 = sphi 0, %s29
    %s23 = sphi 0, %s21
    %s24 = sphi 0, %s22
    %s25 = sphi 0, %s23
    %s26 = sphi 0, %s24
    %s38 = sphi 0, %s40
    %s41 = sphi 0, %s38
    %s42 = sphi 0, %s41
    %s58 = sphi 0, %s42
    %s66 = sphi 0, %s68
    %s69 = sphi 0, %s66
    %s70 = sphi 0, %s69
    %s86 = sphi 0, %s70
    %s94 = sphi 0, %s96
    %s97 = sphi 0, %s94
    %s98 = sphi 0, %s97
    %s114 = sphi 0, %s98
    %s118 = sphi 0, %s118
    %s120 = sphi 0, %s118
    %s121 = sphi 0, %s120
    %s135 = sphi 0, %s121
    %s139 = sphi 0, %s139
    %s141 = sphi 0, %s139
    %s142 = sphi 0, %s141
    %s156 = sphi 0, %s142
    %s160 = sphi 0, %s160
    %s162 = sphi 0, %s160
    %s163 = sphi 0, %s162
    %s177 = sphi 0, %s163
    %s181 = sphi 0, %s181
    %s183 = sphi 0, %s181
    %s184 = sphi 0, %s183
    %s198 = sphi 0, %s184
    %s202 = sphi 0, %s202
    %s204 = sphi 0, %s202
    %s205 = sphi 0, %s204
    %s219 = sphi 0, %s205
    %s227 = sphi 0, %s229
    %s230 = sphi 0, %s227
    %s231 = sphi 0, %s230
    %s247 = sphi 0, %s231
  $region4: #{decoder_forward.4} parent=0 // loop_header_branch
    %17 = sbr.rel (%p15) target = $region8
  $region5: #{decoder_forward.4} parent=0 // loop_body
    %s19 = ssub.s32 %s14, 1
    %s20 = ssub.s32 %s14, 2
    %s27 = sadd.s32 1, %s22
    %p28 = scmp.ge.s32.totalorder %s27, 2
    %s29 = scalar_select %p28, 0, %s27
    %s30 = sadd.s32 1, %s21
    %s31 = scalar_select %p28, %s30, %s21
    %p32 = scmp.ge.s32.totalorder %s31, 2
    %s33 = scalar_select %p32, 0, %s31
    %s34 = ssub.s32 %s21, %s33
    %s35 = ssub.s32 %s22, %s29
    %s36 = sor.u32 %s34, %s35
    %p37 = scmp.eq.s32.totalorder %s36, 0
    %s39 = sadd.s32 %s38, 1
    %s40 = scalar_select %p37, %s38, %s39
    %p43 = pneg %p37
    %p44 = scmp.eq.s32.totalorder %s14, 3
    %p45 = por %p43, %p44
    %p46 = scmp.ne.s32.totalorder %s38, %s41
    %p47 = scmp.eq.s32.totalorder %s14, 0
    %p48 = por %p46, %p47
    %p49 = scmp.ne.s32.totalorder %s38, %s41
    %p50 = scmp.eq.s32.totalorder %s19, 3
    %p51 = por %p49, %p50
    %p52 = scmp.ne.s32.totalorder %s41, %s42
    %p53 = scmp.eq.s32.totalorder %s19, 0
    %p54 = por %p52, %p53
    %p55 = scmp.ne.s32.totalorder %s41, %s42
    %p56 = scmp.eq.s32.totalorder %s20, 3
    %p57 = por %p55, %p56
    %p59 = scmp.ne.s32.totalorder %s42, %s58
    %p60 = scmp.eq.s32.totalorder %s20, 0
    %p61 = por %p59, %p60
    %s62 = ssub.s32 %s21, %s33
    %s63 = ssub.s32 %s22, %s29
    %s64 = sor.u32 %s62, %s63
    %p65 = scmp.eq.s32.totalorder %s64, 0
    %s67 = sadd.s32 %s66, 1
    %s68 = scalar_select %p65, %s66, %s67
    %p71 = pneg %p65
    %p72 = scmp.eq.s32.totalorder %s14, 3
    %p73 = por %p71, %p72
    %p74 = scmp.ne.s32.totalorder %s66, %s69
    %p75 = scmp.eq.s32.totalorder %s14, 0
    %p76 = por %p74, %p75
    %p77 = scmp.ne.s32.totalorder %s66, %s69
    %p78 = scmp.eq.s32.totalorder %s19, 3
    %p79 = por %p77, %p78
    %p80 = scmp.ne.s32.totalorder %s69, %s70
    %p81 = scmp.eq.s32.totalorder %s19, 0
    %p82 = por %p80, %p81
    %p83 = scmp.ne.s32.totalorder %s69, %s70
    %p84 = scmp.eq.s32.totalorder %s20, 3
    %p85 = por %p83, %p84
    %p87 = scmp.ne.s32.totalorder %s70, %s86
    %p88 = scmp.eq.s32.totalorder %s20, 0
    %p89 = por %p87, %p88
    %s90 = ssub.s32 %s21, %s33
    %s91 = ssub.s32 %s22, %s29
    %s92 = sor.u32 %s90, %s91
    %p93 = scmp.eq.s32.totalorder %s92, 0
    %s95 = sadd.s32 %s94, 1
    %s96 = scalar_select %p93, %s94, %s95
    %p99 = pneg %p93
    %p100 = scmp.eq.s32.totalorder %s14, 3
    %p101 = por %p99, %p100
    %p102 = scmp.ne.s32.totalorder %s94, %s97
    %p103 = scmp.eq.s32.totalorder %s14, 0
    %p104 = por %p102, %p103
    %p105 = scmp.ne.s32.totalorder %s94, %s97
    %p106 = scmp.eq.s32.totalorder %s19, 3
    %p107 = por %p105, %p106
    %p108 = scmp.ne.s32.totalorder %s97, %s98
    %p109 = scmp.eq.s32.totalorder %s19, 0
    %p110 = por %p108, %p109
    %p111 = scmp.ne.s32.totalorder %s97, %s98
    %p112 = scmp.eq.s32.totalorder %s20, 3
    %p113 = por %p111, %p112
    %p115 = scmp.ne.s32.totalorder %s98, %s114
    %p116 = scmp.eq.s32.totalorder %s20, 0
    %p117 = por %p115, %p116
    %s119 = sadd.s32 %s118, 1
    %p122 = scmp.eq.s32.totalorder %s14, 3
    %p123 = scmp.ne.s32.totalorder %s118, %s120
    %p124 = scmp.eq.s32.totalorder %s14, 0
    %p125 = por %p123, %p124
    %p126 = scmp.ne.s32.totalorder %s118, %s120
    %p127 = scmp.eq.s32.totalorder %s19, 3
    %p128 = por %p126, %p127
    %p129 = scmp.ne.s32.totalorder %s120, %s121
    %p130 = scmp.eq.s32.totalorder %s19, 0
    %p131 = por %p129, %p130
    %p132 = scmp.ne.s32.totalorder %s120, %s121
    %p133 = scmp.eq.s32.totalorder %s20, 3
    %p134 = por %p132, %p133
    %p136 = scmp.ne.s32.totalorder %s121, %s135
    %p137 = scmp.eq.s32.totalorder %s20, 0
    %p138 = por %p136, %p137
    %s140 = sadd.s32 %s139, 1
    %p143 = scmp.eq.s32.totalorder %s14, 3
    %p144 = scmp.ne.s32.totalorder %s139, %s141
    %p145 = scmp.eq.s32.totalorder %s14, 0
    %p146 = por %p144, %p145
    %p147 = scmp.ne.s32.totalorder %s139, %s141
    %p148 = scmp.eq.s32.totalorder %s19, 3
    %p149 = por %p147, %p148
    %p150 = scmp.ne.s32.totalorder %s141, %s142
    %p151 = scmp.eq.s32.totalorder %s19, 0
    %p152 = por %p150, %p151
    %p153 = scmp.ne.s32.totalorder %s141, %s142
    %p154 = scmp.eq.s32.totalorder %s20, 3
    %p155 = por %p153, %p154
    %p157 = scmp.ne.s32.totalorder %s142, %s156
    %p158 = scmp.eq.s32.totalorder %s20, 0
    %p159 = por %p157, %p158
    %s161 = sadd.s32 %s160, 1
    %p164 = scmp.eq.s32.totalorder %s14, 3
    %p165 = scmp.ne.s32.totalorder %s160, %s162
    %p166 = scmp.eq.s32.totalorder %s14, 0
    %p167 = por %p165, %p166
    %p168 = scmp.ne.s32.totalorder %s160, %s162
    %p169 = scmp.eq.s32.totalorder %s19, 3
    %p170 = por %p168, %p169
    %p171 = scmp.ne.s32.totalorder %s162, %s163
    %p172 = scmp.eq.s32.totalorder %s19, 0
    %p173 = por %p171, %p172
    %p174 = scmp.ne.s32.totalorder %s162, %s163
    %p175 = scmp.eq.s32.totalorder %s20, 3
    %p176 = por %p174, %p175
    %p178 = scmp.ne.s32.totalorder %s163, %s177
    %p179 = scmp.eq.s32.totalorder %s20, 0
    %p180 = por %p178, %p179
    %s182 = sadd.s32 %s181, 1
    %p185 = scmp.eq.s32.totalorder %s14, 3
    %p186 = scmp.ne.s32.totalorder %s181, %s183
    %p187 = scmp.eq.s32.totalorder %s14, 0
    %p188 = por %p186, %p187
    %p189 = scmp.ne.s32.totalorder %s181, %s183
    %p190 = scmp.eq.s32.totalorder %s19, 3
    %p191 = por %p189, %p190
    %p192 = scmp.ne.s32.totalorder %s183, %s184
    %p193 = scmp.eq.s32.totalorder %s19, 0
    %p194 = por %p192, %p193
    %p195 = scmp.ne.s32.totalorder %s183, %s184
    %p196 = scmp.eq.s32.totalorder %s20, 3
    %p197 = por %p195, %p196
    %p199 = scmp.ne.s32.totalorder %s184, %s198
    %p200 = scmp.eq.s32.totalorder %s20, 0
    %p201 = por %p199, %p200
    %s203 = sadd.s32 %s202, 1
    %p206 = scmp.eq.s32.totalorder %s14, 3
    %p207 = scmp.ne.s32.totalorder %s202, %s204
    %p208 = scmp.eq.s32.totalorder %s14, 0
    %p209 = por %p207, %p208
    %p210 = scmp.ne.s32.totalorder %s202, %s204
    %p211 = scmp.eq.s32.totalorder %s19, 3
    %p212 = por %p210, %p211
    %p213 = scmp.ne.s32.totalorder %s204, %s205
    %p214 = scmp.eq.s32.totalorder %s19, 0
    %p215 = por %p213, %p214
    %p216 = scmp.ne.s32.totalorder %s204, %s205
    %p217 = scmp.eq.s32.totalorder %s20, 3
    %p218 = por %p216, %p217
    %p220 = scmp.ne.s32.totalorder %s205, %s219
    %p221 = scmp.eq.s32.totalorder %s20, 0
    %p222 = por %p220, %p221
    %s223 = ssub.s32 %s21, %s33
    %s224 = ssub.s32 %s22, %s29
    %s225 = sor.u32 %s223, %s224
    %p226 = scmp.eq.s32.totalorder %s225, 0
    %s228 = sadd.s32 %s227, 1
    %s229 = scalar_select %p226, %s227, %s228
    %p232 = pneg %p226
    %p233 = scmp.eq.s32.totalorder %s14, 3
    %p234 = por %p232, %p233
    %p235 = scmp.ne.s32.totalorder %s227, %s230
    %p236 = scmp.eq.s32.totalorder %s14, 0
    %p237 = por %p235, %p236
    %p238 = scmp.ne.s32.totalorder %s227, %s230
    %p239 = scmp.eq.s32.totalorder %s19, 3
    %p240 = por %p238, %p239
    %p241 = scmp.ne.s32.totalorder %s230, %s231
    %p242 = scmp.eq.s32.totalorder %s19, 0
    %p243 = por %p241, %p242
    %p244 = scmp.ne.s32.totalorder %s230, %s231
    %p245 = scmp.eq.s32.totalorder %s20, 3
    %p246 = por %p244, %p245
    %p248 = scmp.ne.s32.totalorder %s231, %s247
    %p249 = scmp.eq.s32.totalorder %s20, 0
    %p250 = por %p248, %p249
    %p251 = scmp.le.s32.totalorder 1, %s14
    %p252 = scmp.lt.s32.totalorder %s14, 5
    %p253 = pnand %p251, %p252
    %p254 = pneg %p253
    // Predicated region
    $region9: #{decoder_forward.4} parent=5 // pred_check
      _
    $region10: #{decoder_forward.4} parent=5 // pred_check_branch
      %256 = sbr.rel (%p253) target = $region12
    $region11: #{decoder_forward.4} parent=5 // pred_region
      %s257 = ssub.s32 %s14, 1
      // Predicated region
      $region13: #{decoder_forward.4} parent=11 // pred_check
        %p258 = pneg %p131
      $region14: #{decoder_forward.4} parent=11 // pred_check_branch
        %260 = sbr.rel (%p258) target = $region16
      $region15: #{decoder_forward.4} parent=11 // pred_region
        _
      $region16: #{decoder_forward.4} parent=11 // pred_fallthru
        _
      // Predicated region
      $region17: #{decoder_forward.4} parent=11 // pred_check
        %p261 = pneg %p152
      $region18: #{decoder_forward.4} parent=11 // pred_check_branch
        %263 = sbr.rel (%p261) target = $region20
      $region19: #{decoder_forward.4} parent=11 // pred_region
        _
      $region20: #{decoder_forward.4} parent=11 // pred_fallthru
        _
      // Predicated region
      $region21: #{decoder_forward.4} parent=11 // pred_check
        %p264 = pneg %p173
      $region22: #{decoder_forward.4} parent=11 // pred_check_branch
        %266 = sbr.rel (%p264) target = $region24
      $region23: #{decoder_forward.4} parent=11 // pred_region
        _
      $region24: #{decoder_forward.4} parent=11 // pred_fallthru
        _
      // Predicated region
      $region25: #{decoder_forward.4} parent=11 // pred_check
        %p267 = pneg %p194
      $region26: #{decoder_forward.4} parent=11 // pred_check_branch
        %269 = sbr.rel (%p267) target = $region28
      $region27: #{decoder_forward.4} parent=11 // pred_region
        _
      $region28: #{decoder_forward.4} parent=11 // pred_fallthru
        _
      // Predicated region
      $region29: #{decoder_forward.4} parent=11 // pred_check
        %p270 = pneg %p215
      $region30: #{decoder_forward.4} parent=11 // pred_check_branch
        %272 = sbr.rel (%p270) target = $region32
      $region31: #{decoder_forward.4} parent=11 // pred_region
        _
      $region32: #{decoder_forward.4} parent=11 // pred_fallthru
        _
    $region12: #{decoder_forward.4} parent=5 // pred_fallthru
      _
    %p273 = scmp.lt.s32.totalorder %s14, 4
    // Predicated region
    $region33: #{decoder_forward.4} parent=5 // pred_check
      %p274 = pneg %p273
    $region34: #{decoder_forward.4} parent=5 // pred_check_branch
      %276 = sbr.rel (%p274) target = $region36
    $region35: #{decoder_forward.4} parent=5 // pred_region
      // Predicated region
      $region37: #{decoder_forward.4} parent=35 // pred_check
        %p277 = pneg %p48
      $region38: #{decoder_forward.4} parent=35 // pred_check_branch
        %279 = sbr.rel (%p277) target = $region40
      $region39: #{decoder_forward.4} parent=35 // pred_region
        %p280 = scmp.lt.s32.totalorder %s21, 1
        %s281 = scalar_select %p280, %s21, 1
        %p282 = scmp.lt.s32.totalorder %s22, 1
        %s283 = scalar_select %p282, %s22, 1
        %s284 = smul.addr %s283, 2
        %s285 = smul.addr %s281, 4
        %s286 = sadd.s32 %s284, %s285
        %s287 = smul.addr %s286, 4
        %s288 = scalar_lea.vmem %s0, %s287
      $region40: #{decoder_forward.4} parent=35 // pred_fallthru
        _
      // Predicated region
      $region41: #{decoder_forward.4} parent=35 // pred_check
        %p289 = pneg %p76
      $region42: #{decoder_forward.4} parent=35 // pred_check_branch
        %291 = sbr.rel (%p289) target = $region44
      $region43: #{decoder_forward.4} parent=35 // pred_region
        %s292 = smul.u32 8, %s22
        %p293 = scmp.lt.s32.totalorder %s21, 1
        %s294 = scalar_select %p293, %s21, 1
        %p295 = scmp.lt.s32.totalorder %s292, 15
        %s296 = scalar_select %p295, %s292, 15
        %s297 = smul.addr %s296, 2
        %s298 = smul.addr %s294, 32
        %s299 = sadd.s32 %s297, %s298
        %s300 = smul.addr %s299, 4
        %s301 = scalar_lea.vmem %s1, %s300
        %s302 = smul.u32 8, %s22
      $region44: #{decoder_forward.4} parent=35 // pred_fallthru
        _
      // Predicated region
      $region45: #{decoder_forward.4} parent=35 // pred_check
        %p303 = pneg %p104
      $region46: #{decoder_forward.4} parent=35 // pred_check_branch
        %305 = sbr.rel (%p303) target = $region48
      $region47: #{decoder_forward.4} parent=35 // pred_region
        %p306 = scmp.lt.s32.totalorder %s21, 1
        %s307 = scalar_select %p306, %s21, 1
        %p308 = scmp.lt.s32.totalorder %s22, 1
        %s309 = scalar_select %p308, %s22, 1
        %s310 = smul.addr %s309, 2
        %s311 = smul.addr %s307, 4
        %s312 = sadd.s32 %s310, %s311
        %s313 = smul.addr %s312, 4
        %s314 = scalar_lea.vmem %s2, %s313
      $region48: #{decoder_forward.4} parent=35 // pred_fallthru
        _
    $region36: #{decoder_forward.4} parent=5 // pred_fallthru
      _
    %p315 = scmp.le.s32.totalorder 1, %s14
    %p316 = scmp.lt.s32.totalorder %s14, 5
    %p317 = pnand %p315, %p316
    %p318 = pneg %p317
    // Predicated region
    $region49: #{decoder_forward.4} parent=5 // pred_check
      _
    $region50: #{decoder_forward.4} parent=5 // pred_check_branch
      %320 = sbr.rel (%p317) target = $region52
    $region51: #{decoder_forward.4} parent=5 // pred_region
      %s321 = ssub.s32 %s14, 1
      %p322 = scmp.lt.s32.totalorder %s23, 1
      %s323 = scalar_select %p322, %s23, 1
      %p324 = scmp.lt.s32.totalorder %s24, 1
      %s325 = scalar_select %p324, %s24, 1
      %s326 = smul.addr %s325, 2
      %s327 = smul.addr %s323, 4
      %s328 = sadd.s32 %s326, %s327
      %s329 = smul.addr %s328, 4
      %s330 = scalar_lea.vmem %s0, %s329
      %p331 = pneg %p54
      %p332 = pneg %p51
      %s333 = smul.u32 8, %s24
      %p334 = scmp.lt.s32.totalorder %s23, 1
      %s335 = scalar_select %p334, %s23, 1
      %p336 = scmp.lt.s32.totalorder %s333, 15
      %s337 = scalar_select %p336, %s333, 15
      %s338 = smul.addr %s337, 2
      %s339 = smul.addr %s335, 32
      %s340 = sadd.s32 %s338, %s339
      %s341 = smul.addr %s340, 4
      %s342 = scalar_lea.vmem %s1, %s341
      %p343 = pneg %p82
      %p344 = pneg %p79
      %p345 = scmp.lt.s32.totalorder %s23, 1
      %s346 = scalar_select %p345, %s23, 1
      %p347 = scmp.lt.s32.totalorder %s24, 1
      %s348 = scalar_select %p347, %s24, 1
      %s349 = smul.addr %s348, 2
      %s350 = smul.addr %s346, 4
      %s351 = sadd.s32 %s349, %s350
      %s352 = smul.addr %s351, 4
      %s353 = scalar_lea.vmem %s2, %s352
      %p354 = pneg %p110
      %p355 = pneg %p107
      %p356 = pneg %p131
      %p357 = pneg %p128
      %p358 = pneg %p152
      %p359 = pneg %p149
      %p360 = pneg %p173
      %p361 = pneg %p170
      %p362 = pneg %p194
      %p363 = pneg %p191
      %p364 = pneg %p215
      %p365 = pneg %p212
      %p366 = pneg %p243
      %p367 = pneg %p240
      %s368 = smul.u32 8, %s24
      %p369 = scmp.lt.s32.totalorder %s23, 1
      %s370 = scalar_select %p369, %s23, 1
      %p371 = scmp.lt.s32.totalorder %s368, 15
      %s372 = scalar_select %p371, %s368, 15
      %s373 = smul.addr %s372, 2
      %s374 = smul.addr %s370, 32
      %s375 = sadd.s32 %s373, %s374
      %s376 = smul.addr %s375, 4
      %s377 = scalar_lea.vmem %s8, %s376
      %p378 = scmp.lt.s32.totalorder %s23, 1
      %s379 = scalar_select %p378, %s23, 1
      %p380 = scmp.lt.s32.totalorder %s24, 1
      %s381 = scalar_select %p380, %s24, 1
      %s382 = smul.addr %s381, 2
      %s383 = smul.addr %s379, 4
      %s384 = sadd.s32 %s382, %s383
      %s385 = smul.addr %s384, 4
      %s386 = scalar_lea.vmem %s0, %s385
      %s387 = smul.u32 8, %s24
      %p388 = scmp.lt.s32.totalorder %s23, 1
      %s389 = scalar_select %p388, %s23, 1
      %p390 = scmp.lt.s32.totalorder %s387, 15
      %s391 = scalar_select %p390, %s387, 15
      %s392 = smul.addr %s391, 2
      %s393 = smul.addr %s389, 32
      %s394 = sadd.s32 %s392, %s393
      %s395 = smul.addr %s394, 4
      %s396 = scalar_lea.vmem %s1, %s395
      %s397 = smul.u32 8, %s24
      %p398 = scmp.lt.s32.totalorder %s23, 1
      %s399 = scalar_select %p398, %s23, 1
      %p400 = scmp.lt.s32.totalorder %s24, 1
      %s401 = scalar_select %p400, %s24, 1
      %s402 = smul.addr %s401, 2
      %s403 = smul.addr %s399, 4
      %s404 = sadd.s32 %s402, %s403
      %s405 = smul.addr %s404, 4
      %s406 = scalar_lea.vmem %s2, %s405
      %s407 = smul.u32 8, %s24
      %p408 = scmp.lt.s32.totalorder %s23, 1
      %s409 = scalar_select %p408, %s23, 1
      %p410 = scmp.lt.s32.totalorder %s407, 15
      %s411 = scalar_select %p410, %s407, 15
      %s412 = smul.addr %s411, 2
      %s413 = smul.addr %s409, 32
      %s414 = sadd.s32 %s412, %s413
      %s415 = smul.addr %s414, 4
      %s416 = scalar_lea.vmem %s8, %s415
      %s417 = smul.u32 8, %s24
      %vm419 = vcmask 1043459
      %vm420 = vsmask.f32 7950
      %vm421 = vmand %vm419, %vm420
      %v422 = vld [vmem:[#allocation2] sm:$0x8]
      %v423 = vsel %vm421, 0, %v422
      %424 = vst [vmem:[#allocation2] sm:$0x8] %v423
      %v425 = vld [vmem:[#allocation2 + $0x10] sm:$0x8]
      %v426 = vsel %vm421, 0, %v425
      %427 = vst [vmem:[#allocation2 + $0x10] sm:$0x8] %v426
      %v428 = vld [vmem:[#allocation2 + $0x20] sm:$0x8]
      %v429 = vsel %vm421, 0, %v428
      %430 = vst [vmem:[#allocation2 + $0x20] sm:$0x8] %v429
      %v431 = vld [vmem:[#allocation2 + $0x30] sm:$0x8]
      %v432 = vsel %vm421, 0, %v431
      %433 = vst [vmem:[#allocation2 + $0x30] sm:$0x8] %v432
      %v434 = vld [vmem:[#allocation2 + $0x40] sm:$0x8]
      %v435 = vsel %vm421, 0, %v434
      %436 = vst [vmem:[#allocation2 + $0x40] sm:$0x8] %v435
      %v437 = vld [vmem:[#allocation2 + $0x50] sm:$0x8]
      %v438 = vsel %vm421, 0, %v437
      %439 = vst [vmem:[#allocation2 + $0x50] sm:$0x8] %v438
      %v440 = vld [vmem:[#allocation2 + $0x60] sm:$0x8]
      %v441 = vsel %vm421, 0, %v440
      %442 = vst [vmem:[#allocation2 + $0x60] sm:$0x8] %v441
      %v443 = vld [vmem:[#allocation2 + $0x70] sm:$0x8]
      %v444 = vsel %vm421, 0, %v443
      %445 = vst [vmem:[#allocation2 + $0x70] sm:$0x8] %v444
      %v446 = vld [vmem:[#allocation2 + $0x80] sm:$0x8]
      %v447 = vsel %vm421, 0, %v446
      %448 = vst [vmem:[#allocation2 + $0x80] sm:$0x8] %v447
      %v449 = vld [vmem:[#allocation2 + $0x90] sm:$0x8]
      %v450 = vsel %vm421, 0, %v449
      %451 = vst [vmem:[#allocation2 + $0x90] sm:$0x8] %v450
      %vm452 = vcmask 1040384
      %vm453 = vsmask.f32 256
      %vm454 = vmand %vm452, %vm453
      %v455 = vld [vmem:[#allocation2 + $0xc] sm:$0x1]
      %v456 = vsel %vm454, 0, %v455
      %457 = vst [vmem:[#allocation2 + $0xc] sm:$0x1] %v456
      %v458 = vld [vmem:[#allocation2 + $0x1c] sm:$0x1]
      %v459 = vsel %vm454, 0, %v458
      %460 = vst [vmem:[#allocation2 + $0x1c] sm:$0x1] %v459
      %v461 = vld [vmem:[#allocation2 + $0x2c] sm:$0x1]
      %v462 = vsel %vm454, 0, %v461
      %463 = vst [vmem:[#allocation2 + $0x2c] sm:$0x1] %v462
      %v464 = vld [vmem:[#allocation2 + $0x3c] sm:$0x1]
      %v465 = vsel %vm454, 0, %v464
      %466 = vst [vmem:[#allocation2 + $0x3c] sm:$0x1] %v465
      %v467 = vld [vmem:[#allocation2 + $0x4c] sm:$0x1]
      %v468 = vsel %vm454, 0, %v467
      %469 = vst [vmem:[#allocation2 + $0x4c] sm:$0x1] %v468
      %v470 = vld [vmem:[#allocation2 + $0x5c] sm:$0x1]
      %v471 = vsel %vm454, 0, %v470
      %472 = vst [vmem:[#allocation2 + $0x5c] sm:$0x1] %v471
      %v473 = vld [vmem:[#allocation2 + $0x6c] sm:$0x1]
      %v474 = vsel %vm454, 0, %v473
      %475 = vst [vmem:[#allocation2 + $0x6c] sm:$0x1] %v474
      %v476 = vld [vmem:[#allocation2 + $0x7c] sm:$0x1]
      %v477 = vsel %vm454, 0, %v476
      %478 = vst [vmem:[#allocation2 + $0x7c] sm:$0x1] %v477
      %v479 = vld [vmem:[#allocation2 + $0x8c] sm:$0x1]
      %v480 = vsel %vm454, 0, %v479
      %481 = vst [vmem:[#allocation2 + $0x8c] sm:$0x1] %v480
      %v482 = vld [vmem:[#allocation2 + $0x9c] sm:$0x1]
      %v483 = vsel %vm454, 0, %v482
      %484 = vst [vmem:[#allocation2 + $0x9c] sm:$0x1] %v483
      %v485 = vld [vmem:[%s386] sm:$0xf]
      %v486 = vld [vmem:[%s386 + $0x4] sm:$0xf]
      %487 = vst [vmem:[#allocation2 + $0x4] sm:$0xf] %v485
      %488 = vst [vmem:[#allocation2 + $0x8] sm:$0xf] %v486
      %v489 = vld [vmem:[%s396] sm:$0xf]
      %v490 = vld [vmem:[%s396 + $0x4] sm:$0xf]
      %v491 = vld [vmem:[%s396 + $0x8] sm:$0xf]
      %v492 = vld [vmem:[%s396 + $0xc] sm:$0xf]
      %v493 = vld [vmem:[%s396 + $0x10] sm:$0xf]
      %v494 = vld [vmem:[%s396 + $0x14] sm:$0xf]
      %v495 = vld [vmem:[%s396 + $0x18] sm:$0xf]
      %v496 = vld [vmem:[%s396 + $0x1c] sm:$0xf]
      %v497 = vld [vmem:[%s396 + $0x20] sm:$0xf]
      %v498 = vld [vmem:[%s396 + $0x24] sm:$0xf]
      %v499 = vld [vmem:[%s396 + $0x28] sm:$0xf]
      %v500 = vld [vmem:[%s396 + $0x2c] sm:$0xf]
      %v501 = vld [vmem:[%s396 + $0x30] sm:$0xf]
      %v502 = vld [vmem:[%s396 + $0x34] sm:$0xf]
      %v503 = vld [vmem:[%s396 + $0x38] sm:$0xf]
      %v504 = vld [vmem:[%s396 + $0x3c] sm:$0xf]
      %s505 = scalar_lea.vmem [#allocation2], 16
      %506 = vst [vmem:[%s505 + $0x4] sm:$0xf] %v489
      %507 = vst [vmem:[%s505 + $0x8] sm:$0xf] %v490
      %508 = vst [vmem:[%s505 + $0x14] sm:$0xf] %v491
      %509 = vst [vmem:[%s505 + $0x18] sm:$0xf] %v492
      %510 = vst [vmem:[%s505 + $0x24] sm:$0xf] %v493
      %511 = vst [vmem:[%s505 + $0x28] sm:$0xf] %v494
      %512 = vst [vmem:[%s505 + $0x34] sm:$0xf] %v495
      %513 = vst [vmem:[%s505 + $0x38] sm:$0xf] %v496
      %514 = vst [vmem:[%s505 + $0x44] sm:$0xf] %v497
      %515 = vst [vmem:[%s505 + $0x48] sm:$0xf] %v498
      %516 = vst [vmem:[%s505 + $0x54] sm:$0xf] %v499
      %517 = vst [vmem:[%s505 + $0x58] sm:$0xf] %v500
      %518 = vst [vmem:[%s505 + $0x64] sm:$0xf] %v501
      %519 = vst [vmem:[%s505 + $0x68] sm:$0xf] %v502
      %520 = vst [vmem:[%s505 + $0x74] sm:$0xf] %v503
      %521 = vst [vmem:[%s505 + $0x78] sm:$0xf] %v504
      %v522 = vld [vmem:[%s406] sm:$0xf]
      %v523 = vld [vmem:[%s406 + $0x4] sm:$0xf]
      %s524 = scalar_lea.vmem [#allocation2], 144
      %525 = vst [vmem:[%s524 + $0x4] sm:$0xf] %v522
      %526 = vst [vmem:[%s524 + $0x8] sm:$0xf] %v523
      %v527 = vld [vmem:[#allocation2] sm:$0xf]
      %v528 = vld [vmem:[#allocation2 + $0x4] sm:$0xf]
      %v529 = vld [vmem:[#allocation2 + $0x8] sm:$0xf]
      %v530 = vld [vmem:[#allocation2 + $0xc] sm:$0xf]
      %v531 = vld [vmem:[#allocation2 + $0x10] sm:$0xf]
      %v532 = vld [vmem:[#allocation2 + $0x14] sm:$0xf]
      %v533 = vld [vmem:[#allocation2 + $0x18] sm:$0xf]
      %v534 = vld [vmem:[#allocation2 + $0x1c] sm:$0xf]
      %v535 = vld [vmem:[#allocation2 + $0x20] sm:$0xf]
      %v536 = vld [vmem:[#allocation2 + $0x24] sm:$0xf]
      %v537 = vld [vmem:[#allocation2 + $0x28] sm:$0xf]
      %v538 = vld [vmem:[#allocation2 + $0x2c] sm:$0xf]
      %v539 = vld [vmem:[#allocation2 + $0x30] sm:$0xf]
      %v540 = vld [vmem:[#allocation2 + $0x34] sm:$0xf]
      %v541 = vld [vmem:[#allocation2 + $0x38] sm:$0xf]
      %v542 = vld [vmem:[#allocation2 + $0x3c] sm:$0xf]
      %v543 = vld [vmem:[#allocation2 + $0x40] sm:$0xf]
      %v544 = vld [vmem:[#allocation2 + $0x44] sm:$0xf]
      %v545 = vld [vmem:[#allocation2 + $0x48] sm:$0xf]
      %v546 = vld [vmem:[#allocation2 + $0x4c] sm:$0xf]
      %v547 = vld [vmem:[#allocation2 + $0x50] sm:$0xf]
      %v548 = vld [vmem:[#allocation2 + $0x54] sm:$0xf]
      %v549 = vld [vmem:[#allocation2 + $0x58] sm:$0xf]
      %v550 = vld [vmem:[#allocation2 + $0x5c] sm:$0xf]
      %v551 = vld [vmem:[#allocation2 + $0x60] sm:$0xf]
      %v552 = vld [vmem:[#allocation2 + $0x64] sm:$0xf]
      %v553 = vld [vmem:[#allocation2 + $0x68] sm:$0xf]
      %v554 = vld [vmem:[#allocation2 + $0x6c] sm:$0xf]
      %v555 = vld [vmem:[#allocation2 + $0x70] sm:$0xf]
      %v556 = vld [vmem:[#allocation2 + $0x74] sm:$0xf]
      %v557 = vld [vmem:[#allocation2 + $0x78] sm:$0xf]
      %v558 = vld [vmem:[#allocation2 + $0x7c] sm:$0xf]
      %v559 = vld [vmem:[#allocation2 + $0x80] sm:$0xf]
      %v560 = vld [vmem:[#allocation2 + $0x84] sm:$0xf]
      %v561 = vld [vmem:[#allocation2 + $0x88] sm:$0xf]
      %v562 = vld [vmem:[#allocation2 + $0x8c] sm:$0xf]
      %v563 = vld [vmem:[#allocation2 + $0x90] sm:$0xf]
      %v564 = vld [vmem:[#allocation2 + $0x94] sm:$0xf]
      %v565 = vld [vmem:[#allocation2 + $0x98] sm:$0xf]
      %v566 = vld [vmem:[#allocation2 + $0x9c] sm:$0xf]
      %v591 = vunpack.c.l.b16 %v527
      %v592 = vunpack.c.l.b16 %v528
      %v593 = vunpack.c.l.b16 %v529
      %v594 = vunpack.c.l.b16 %v531
      %v595 = vunpack.c.l.b16 %v532
      %v596 = vunpack.c.l.b16 %v533
      %v597 = vunpack.c.l.b16 %v535
      %v598 = vunpack.c.l.b16 %v536
      %v599 = vunpack.c.l.b16 %v537
      %v600 = vunpack.c.l.b16 %v539
      %v601 = vunpack.c.l.b16 %v540
      %v602 = vunpack.c.l.b16 %v541
      %v603 = vunpack.c.l.b16 %v543
      %v604 = vunpack.c.l.b16 %v544
      %v605 = vunpack.c.l.b16 %v545
      %v606 = vunpack.c.l.b16 %v547
      %v607 = vunpack.c.l.b16 %v548
      %v608 = vunpack.c.l.b16 %v549
      %v609 = vunpack.c.l.b16 %v551
      %v610 = vunpack.c.l.b16 %v552
      %v611 = vunpack.c.l.b16 %v553
      %v612 = vunpack.c.l.b16 %v555
      %v613 = vunpack.c.l.b16 %v556
      %v614 = vunpack.c.l.b16 %v557
      %v615 = vpack.c.b16 %v592, %v591
      %v616 = vpack.c.b16 %v593, %v593
      %v617 = vpack.c.b16 %v595, %v594
      %v618 = vpack.c.b16 %v596, %v596
      %v619 = vpack.c.b16 %v598, %v597
      %v620 = vpack.c.b16 %v599, %v599
      %v621 = vpack.c.b16 %v601, %v600
      %v622 = vpack.c.b16 %v602, %v602
      %v623 = vpack.c.b16 %v604, %v603
      %v624 = vpack.c.b16 %v605, %v605
      %v625 = vpack.c.b16 %v607, %v606
      %v626 = vpack.c.b16 %v608, %v608
      %v627 = vpack.c.b16 %v610, %v609
      %v628 = vpack.c.b16 %v611, %v611
      %v629 = vpack.c.b16 %v613, %v612
      %v630 = vpack.c.b16 %v614, %v614
      %v631 = vpack.c.b16 %v593, %v592
      %v632 = vpack.c.b16 %v596, %v595
      %v633 = vpack.c.b16 %v599, %v598
      %v634 = vpack.c.b16 %v602, %v601
      %v635 = vpack.c.b16 %v605, %v604
      %v636 = vpack.c.b16 %v608, %v607
      %v637 = vpack.c.b16 %v611, %v610
      %v638 = vpack.c.b16 %v614, %v613
      %v640 = vshrl.u32 %v631, 16
      %v642 = vrot.slane %v640, 4
      %v643 = vshll.u32 %v631, 16
      %v645 = vrot.slane %v643, 5
      %v646 = vor.u32 %v642, %v645
      %v648 = vshrl.u32 %v632, 16
      %v650 = vrot.slane %v648, 4
      %v651 = vshll.u32 %v632, 16
      %v653 = vrot.slane %v651, 5
      %v654 = vor.u32 %v650, %v653
      %v656 = vshrl.u32 %v633, 16
      %v658 = vrot.slane %v656, 4
      %v659 = vshll.u32 %v633, 16
      %v661 = vrot.slane %v659, 5
      %v662 = vor.u32 %v658, %v661
      %v664 = vshrl.u32 %v634, 16
      %v666 = vrot.slane %v664, 4
      %v667 = vshll.u32 %v634, 16
      %v669 = vrot.slane %v667, 5
      %v670 = vor.u32 %v666, %v669
      %v672 = vshrl.u32 %v635, 16
      %v674 = vrot.slane %v672, 4
      %v675 = vshll.u32 %v635, 16
      %v677 = vrot.slane %v675, 5
      %v678 = vor.u32 %v674, %v677
      %v680 = vshrl.u32 %v636, 16
      %v682 = vrot.slane %v680, 4
      %v683 = vshll.u32 %v636, 16
      %v685 = vrot.slane %v683, 5
      %v686 = vor.u32 %v682, %v685
      %v688 = vshrl.u32 %v637, 16
      %v690 = vrot.slane %v688, 4
      %v691 = vshll.u32 %v637, 16
      %v693 = vrot.slane %v691, 5
      %v694 = vor.u32 %v690, %v693
      %v696 = vshrl.u32 %v638, 16
      %v698 = vrot.slane %v696, 4
      %v699 = vshll.u32 %v638, 16
      %v701 = vrot.slane %v699, 5
      %v702 = vor.u32 %v698, %v701
      %v711 = vunpack.c.l.b16 %v530
      %v712 = vunpack.c.l.b16 %v534
      %v713 = vunpack.c.l.b16 %v538
      %v714 = vunpack.c.l.b16 %v542
      %v715 = vunpack.c.l.b16 %v546
      %v716 = vunpack.c.l.b16 %v550
      %v717 = vunpack.c.l.b16 %v554
      %v718 = vunpack.c.l.b16 %v558
      %v719 = vpack.c.b16 %v711, %v711
      %v720 = vpack.c.b16 %v712, %v712
      %v721 = vpack.c.b16 %v713, %v713
      %v722 = vpack.c.b16 %v714, %v714
      %v723 = vpack.c.b16 %v715, %v715
      %v724 = vpack.c.b16 %v716, %v716
      %v725 = vpack.c.b16 %v717, %v717
      %v726 = vpack.c.b16 %v718, %v718
      %vm727 = vcmask 1042432
      %v728 = vrot.slane %v631, 5
      %v729 = vrot.slane %v719, 5
      %v730 = vsel %vm727, %v728, %v729
      %v731 = vrot.slane %v632, 5
      %v732 = vrot.slane %v720, 5
      %v733 = vsel %vm727, %v731, %v732
      %v734 = vrot.slane %v633, 5
      %v735 = vrot.slane %v721, 5
      %v736 = vsel %vm727, %v734, %v735
      %v737 = vrot.slane %v634, 5
      %v738 = vrot.slane %v722, 5
      %v739 = vsel %vm727, %v737, %v738
      %v740 = vrot.slane %v635, 5
      %v741 = vrot.slane %v723, 5
      %v742 = vsel %vm727, %v740, %v741
      %v743 = vrot.slane %v636, 5
      %v744 = vrot.slane %v724, 5
      %v745 = vsel %vm727, %v743, %v744
      %v746 = vrot.slane %v637, 5
      %v747 = vrot.slane %v725, 5
      %v748 = vsel %vm727, %v746, %v747
      %v749 = vrot.slane %v638, 5
      %v750 = vrot.slane %v726, 5
      %v751 = vsel %vm727, %v749, %v750
      %v752 = vld [vmem:[%s3] sm:$0xf]
      %v753 = vld [vmem:[%s3 + $0x4] sm:$0xf]
      %v754 = vld [vmem:[%s3 + $0x8] sm:$0xf]
      %v755 = vld [vmem:[%s3 + $0xc] sm:$0xf]
      %v756 = vld [vmem:[%s3 + $0x10] sm:$0xf]
      %v757 = vld [vmem:[%s3 + $0x14] sm:$0xf]
      %v758 = vld [vmem:[%s3 + $0x18] sm:$0xf]
      %v759 = vld [vmem:[%s3 + $0x1c] sm:$0xf]
      %v760 = vld [vmem:[%s3 + $0x20] sm:$0xf]
      %v761 = vld [vmem:[%s3 + $0x24] sm:$0xf]
      %v762 = vld [vmem:[%s3 + $0x28] sm:$0xf]
      %v763 = vld [vmem:[%s3 + $0x2c] sm:$0xf]
      %v764 = vld [vmem:[%s3 + $0x30] sm:$0xf]
      %v765 = vld [vmem:[%s3 + $0x34] sm:$0xf]
      %v766 = vld [vmem:[%s3 + $0x38] sm:$0xf]
      %v767 = vld [vmem:[%s3 + $0x3c] sm:$0xf]
      %v768 = vld [vmem:[%s3 + $0x40] sm:$0xf]
      %v769 = vld [vmem:[%s3 + $0x44] sm:$0xf]
      %v770 = vld [vmem:[%s3 + $0x48] sm:$0xf]
      %v771 = vld [vmem:[%s3 + $0x4c] sm:$0xf]
      %v772 = vld [vmem:[%s3 + $0x50] sm:$0xf]
      %v773 = vld [vmem:[%s3 + $0x54] sm:$0xf]
      %v774 = vld [vmem:[%s3 + $0x58] sm:$0xf]
      %v775 = vld [vmem:[%s3 + $0x5c] sm:$0xf]
      %v776 = vld [vmem:[%s3 + $0x60] sm:$0xf]
      %v777 = vld [vmem:[%s3 + $0x64] sm:$0xf]
      %v778 = vld [vmem:[%s3 + $0x68] sm:$0xf]
      %v779 = vld [vmem:[%s3 + $0x6c] sm:$0xf]
      %v780 = vld [vmem:[%s3 + $0x70] sm:$0xf]
      %v781 = vld [vmem:[%s3 + $0x74] sm:$0xf]
      %v782 = vld [vmem:[%s3 + $0x78] sm:$0xf]
      %v783 = vld [vmem:[%s3 + $0x7c] sm:$0xf]
      %v784 = vld [vmem:[%s3 + $0x80] sm:$0xf]
      %v785 = vld [vmem:[%s3 + $0x84] sm:$0xf]
      %v786 = vld [vmem:[%s3 + $0x88] sm:$0xf]
      %v787 = vld [vmem:[%s3 + $0x8c] sm:$0xf]
      %v788 = vld [vmem:[%s3 + $0x90] sm:$0xf]
      %v789 = vld [vmem:[%s3 + $0x94] sm:$0xf]
      %v790 = vld [vmem:[%s3 + $0x98] sm:$0xf]
      %v791 = vld [vmem:[%s3 + $0x9c] sm:$0xf]
      %v792 = vld [vmem:[%s3 + $0xa0] sm:$0xf]
      %v793 = vld [vmem:[%s3 + $0xa4] sm:$0xf]
      %v794 = vld [vmem:[%s3 + $0xa8] sm:$0xf]
      %v795 = vld [vmem:[%s3 + $0xac] sm:$0xf]
      %v796 = vld [vmem:[%s3 + $0xb0] sm:$0xf]
      %v797 = vld [vmem:[%s3 + $0xb4] sm:$0xf]
      %v798 = vld [vmem:[%s3 + $0xb8] sm:$0xf]
      %v799 = vld [vmem:[%s3 + $0xbc] sm:$0xf]
      %v803 = vunpack.c.l.b16 %v559
      %v804 = vunpack.c.l.b16 %v560
      %v805 = vunpack.c.l.b16 %v561
      %v806 = vpack.c.b16 %v804, %v803
      %v807 = vpack.c.b16 %v805, %v805
      %v808 = vpack.c.b16 %v805, %v804
      %v810 = vshrl.u32 %v808, 16
      %v812 = vrot.slane %v810, 4
      %v813 = vshll.u32 %v808, 16
      %v815 = vrot.slane %v813, 5
      %v816 = vor.u32 %v812, %v815
      %v818 = vunpack.c.l.b16 %v562
      %v819 = vpack.c.b16 %v818, %v818
      %v820 = vrot.slane %v808, 5
      %v821 = vrot.slane %v819, 5
      %v822 = vsel %vm727, %v820, %v821
      %s823 = scalar_lea.vmem %s3, 192
      %v824 = vld [vmem:[%s823] sm:$0xf]
      %v825 = vld [vmem:[%s823 + $0x4] sm:$0xf]
      %v826 = vld [vmem:[%s823 + $0x8] sm:$0xf]
      %v827 = vld [vmem:[%s823 + $0xc] sm:$0xf]
      %v828 = vld [vmem:[%s823 + $0x10] sm:$0xf]
      %v829 = vld [vmem:[%s823 + $0x14] sm:$0xf]
      %v830 = vld [vmem:[%s823 + $0x18] sm:$0xf]
      %v831 = vld [vmem:[%s823 + $0x1c] sm:$0xf]
      %v832 = vld [vmem:[%s823 + $0x20] sm:$0xf]
      %v833 = vld [vmem:[%s823 + $0x24] sm:$0xf]
      %v834 = vld [vmem:[%s823 + $0x28] sm:$0xf]
      %v835 = vld [vmem:[%s823 + $0x2c] sm:$0xf]
      %v836 = vld [vmem:[%s823 + $0x30] sm:$0xf]
      %v837 = vld [vmem:[%s823 + $0x34] sm:$0xf]
      %v838 = vld [vmem:[%s823 + $0x38] sm:$0xf]
      %v839 = vld [vmem:[%s823 + $0x3c] sm:$0xf]
      %v840 = vld [vmem:[%s823 + $0x40] sm:$0xf]
      %v841 = vld [vmem:[%s823 + $0x44] sm:$0xf]
      %v842 = vld [vmem:[%s823 + $0x48] sm:$0xf]
      %v843 = vld [vmem:[%s823 + $0x4c] sm:$0xf]
      %v844 = vld [vmem:[%s823 + $0x50] sm:$0xf]
      %v845 = vld [vmem:[%s823 + $0x54] sm:$0xf]
      %v846 = vld [vmem:[%s823 + $0x58] sm:$0xf]
      %v847 = vld [vmem:[%s823 + $0x5c] sm:$0xf]
      %v848 = vld [vmem:[%s823 + $0x60] sm:$0xf]
      %v849 = vld [vmem:[%s823 + $0x64] sm:$0xf]
      %v850 = vld [vmem:[%s823 + $0x68] sm:$0xf]
      %v851 = vld [vmem:[%s823 + $0x6c] sm:$0xf]
      %v852 = vld [vmem:[%s823 + $0x70] sm:$0xf]
      %v853 = vld [vmem:[%s823 + $0x74] sm:$0xf]
      %v854 = vld [vmem:[%s823 + $0x78] sm:$0xf]
      %v855 = vld [vmem:[%s823 + $0x7c] sm:$0xf]
      %v856 = vld [vmem:[%s823 + $0x80] sm:$0xf]
      %v857 = vld [vmem:[%s823 + $0x84] sm:$0xf]
      %v858 = vld [vmem:[%s823 + $0x88] sm:$0xf]
      %v859 = vld [vmem:[%s823 + $0x8c] sm:$0xf]
      %v860 = vld [vmem:[%s823 + $0x90] sm:$0xf]
      %v861 = vld [vmem:[%s823 + $0x94] sm:$0xf]
      %v862 = vld [vmem:[%s823 + $0x98] sm:$0xf]
      %v863 = vld [vmem:[%s823 + $0x9c] sm:$0xf]
      %v864 = vld [vmem:[%s823 + $0xa0] sm:$0xf]
      %v865 = vld [vmem:[%s823 + $0xa4] sm:$0xf]
      %v866 = vld [vmem:[%s823 + $0xa8] sm:$0xf]
      %v867 = vld [vmem:[%s823 + $0xac] sm:$0xf]
      %v868 = vld [vmem:[%s823 + $0xb0] sm:$0xf]
      %v869 = vld [vmem:[%s823 + $0xb4] sm:$0xf]
      %v870 = vld [vmem:[%s823 + $0xb8] sm:$0xf]
      %v871 = vld [vmem:[%s823 + $0xbc] sm:$0xf]
      %vm872 = vsmask.f32 4352
      %v874 = vshrl.u32 %v617, 16
      %v876 = vrot.slane %v874, 3
      %v877 = vshll.u32 %v617, 16
      %v879 = vrot.slane %v877, 4
      %v880 = vor.u32 %v876, %v879
      %v882 = vshrl.u32 %v618, 16
      %v884 = vrot.slane %v882, 3
      %v885 = vshll.u32 %v618, 16
      %v887 = vrot.slane %v885, 4
      %v888 = vor.u32 %v884, %v887
      %v889 = vsel %vm872, %v880, %v888
      %v891 = vshrl.u32 %v654, 16
      %v893 = vrot.slane %v891, 3
      %v894 = vshll.u32 %v654, 16
      %v896 = vrot.slane %v894, 4
      %v897 = vor.u32 %v893, %v896
      %v898 = vsel %vm872, %v897, %v897
      %v900 = vshrl.u32 %v731, 16
      %v902 = vrot.slane %v900, 3
      %v903 = vshll.u32 %v731, 16
      %v905 = vrot.slane %v903, 4
      %v906 = vor.u32 %v902, %v905
      %v908 = vshrl.u32 %v733, 16
      %v910 = vrot.slane %v908, 3
      %v911 = vshll.u32 %v733, 16
      %v913 = vrot.slane %v911, 4
      %v914 = vor.u32 %v910, %v913
      %v915 = vsel %vm872, %v906, %v914
      %v917 = vshrl.u32 %v619, 16
      %v919 = vrot.slane %v917, 3
      %v920 = vshll.u32 %v619, 16
      %v922 = vrot.slane %v920, 4
      %v923 = vor.u32 %v919, %v922
      %v925 = vshrl.u32 %v620, 16
      %v927 = vrot.slane %v925, 3
      %v928 = vshll.u32 %v620, 16
      %v930 = vrot.slane %v928, 4
      %v931 = vor.u32 %v927, %v930
      %v932 = vsel %vm872, %v923, %v931
      %v934 = vshrl.u32 %v662, 16
      %v936 = vrot.slane %v934, 3
      %v937 = vshll.u32 %v662, 16
      %v939 = vrot.slane %v937, 4
      %v940 = vor.u32 %v936, %v939
      %v941 = vsel %vm872, %v940, %v940
      %v943 = vshrl.u32 %v734, 16
      %v945 = vrot.slane %v943, 3
      %v946 = vshll.u32 %v734, 16
      %v948 = vrot.slane %v946, 4
      %v949 = vor.u32 %v945, %v948
      %v951 = vshrl.u32 %v736, 16
      %v953 = vrot.slane %v951, 3
      %v954 = vshll.u32 %v736, 16
      %v956 = vrot.slane %v954, 4
      %v957 = vor.u32 %v953, %v956
      %v958 = vsel %vm872, %v949, %v957
      %v960 = vshrl.u32 %v621, 16
      %v962 = vrot.slane %v960, 3
      %v963 = vshll.u32 %v621, 16
      %v965 = vrot.slane %v963, 4
      %v966 = vor.u32 %v962, %v965
      %v968 = vshrl.u32 %v622, 16
      %v970 = vrot.slane %v968, 3
      %v971 = vshll.u32 %v622, 16
      %v973 = vrot.slane %v971, 4
      %v974 = vor.u32 %v970, %v973
      %v975 = vsel %vm872, %v966, %v974
      %v977 = vshrl.u32 %v670, 16
      %v979 = vrot.slane %v977, 3
      %v980 = vshll.u32 %v670, 16
      %v982 = vrot.slane %v980, 4
      %v983 = vor.u32 %v979, %v982
      %v984 = vsel %vm872, %v983, %v983
      %v986 = vshrl.u32 %v737, 16
      %v988 = vrot.slane %v986, 3
      %v989 = vshll.u32 %v737, 16
      %v991 = vrot.slane %v989, 4
      %v992 = vor.u32 %v988, %v991
      %v994 = vshrl.u32 %v739, 16
      %v996 = vrot.slane %v994, 3
      %v997 = vshll.u32 %v739, 16
      %v999 = vrot.slane %v997, 4
      %v1000 = vor.u32 %v996, %v999
      %v1001 = vsel %vm872, %v992, %v1000
      %v1003 = vshrl.u32 %v623, 16
      %v1005 = vrot.slane %v1003, 3
      %v1006 = vshll.u32 %v623, 16
      %v1008 = vrot.slane %v1006, 4
      %v1009 = vor.u32 %v1005, %v1008
      %v1011 = vshrl.u32 %v624, 16
      %v1013 = vrot.slane %v1011, 3
      %v1014 = vshll.u32 %v624, 16
      %v1016 = vrot.slane %v1014, 4
      %v1017 = vor.u32 %v1013, %v1016
      %v1018 = vsel %vm872, %v1009, %v1017
      %v1020 = vshrl.u32 %v678, 16
      %v1022 = vrot.slane %v1020, 3
      %v1023 = vshll.u32 %v678, 16
      %v1025 = vrot.slane %v1023, 4
      %v1026 = vor.u32 %v1022, %v1025
      %v1027 = vsel %vm872, %v1026, %v1026
      %v1029 = vshrl.u32 %v740, 16
      %v1031 = vrot.slane %v1029, 3
      %v1032 = vshll.u32 %v740, 16
      %v1034 = vrot.slane %v1032, 4
      %v1035 = vor.u32 %v1031, %v1034
      %v1037 = vshrl.u32 %v742, 16
      %v1039 = vrot.slane %v1037, 3
      %v1040 = vshll.u32 %v742, 16
      %v1042 = vrot.slane %v1040, 4
      %v1043 = vor.u32 %v1039, %v1042
      %v1044 = vsel %vm872, %v1035, %v1043
      %v1046 = vshrl.u32 %v625, 16
      %v1048 = vrot.slane %v1046, 3
      %v1049 = vshll.u32 %v625, 16
      %v1051 = vrot.slane %v1049, 4
      %v1052 = vor.u32 %v1048, %v1051
      %v1054 = vshrl.u32 %v626, 16
      %v1056 = vrot.slane %v1054, 3
      %v1057 = vshll.u32 %v626, 16
      %v1059 = vrot.slane %v1057, 4
      %v1060 = vor.u32 %v1056, %v1059
      %v1061 = vsel %vm872, %v1052, %v1060
      %v1063 = vshrl.u32 %v686, 16
      %v1065 = vrot.slane %v1063, 3
      %v1066 = vshll.u32 %v686, 16
      %v1068 = vrot.slane %v1066, 4
      %v1069 = vor.u32 %v1065, %v1068
      %v1070 = vsel %vm872, %v1069, %v1069
      %v1072 = vshrl.u32 %v743, 16
      %v1074 = vrot.slane %v1072, 3
      %v1075 = vshll.u32 %v743, 16
      %v1077 = vrot.slane %v1075, 4
      %v1078 = vor.u32 %v1074, %v1077
      %v1080 = vshrl.u32 %v745, 16
      %v1082 = vrot.slane %v1080, 3
      %v1083 = vshll.u32 %v745, 16
      %v1085 = vrot.slane %v1083, 4
      %v1086 = vor.u32 %v1082, %v1085
      %v1087 = vsel %vm872, %v1078, %v1086
      %v1089 = vshrl.u32 %v627, 16
      %v1091 = vrot.slane %v1089, 3
      %v1092 = vshll.u32 %v627, 16
      %v1094 = vrot.slane %v1092, 4
      %v1095 = vor.u32 %v1091, %v1094
      %v1097 = vshrl.u32 %v628, 16
      %v1099 = vrot.slane %v1097, 3
      %v1100 = vshll.u32 %v628, 16
      %v1102 = vrot.slane %v1100, 4
      %v1103 = vor.u32 %v1099, %v1102
      %v1104 = vsel %vm872, %v1095, %v1103
      %v1106 = vshrl.u32 %v694, 16
      %v1108 = vrot.slane %v1106, 3
      %v1109 = vshll.u32 %v694, 16
      %v1111 = vrot.slane %v1109, 4
      %v1112 = vor.u32 %v1108, %v1111
      %v1113 = vsel %vm872, %v1112, %v1112
      %v1115 = vshrl.u32 %v746, 16
      %v1117 = vrot.slane %v1115, 3
      %v1118 = vshll.u32 %v746, 16
      %v1120 = vrot.slane %v1118, 4
      %v1121 = vor.u32 %v1117, %v1120
      %v1123 = vshrl.u32 %v748, 16
      %v1125 = vrot.slane %v1123, 3
      %v1126 = vshll.u32 %v748, 16
      %v1128 = vrot.slane %v1126, 4
      %v1129 = vor.u32 %v1125, %v1128
      %v1130 = vsel %vm872, %v1121, %v1129
      %v1132 = vshrl.u32 %v629, 16
      %v1134 = vrot.slane %v1132, 3
      %v1135 = vshll.u32 %v629, 16
      %v1137 = vrot.slane %v1135, 4
      %v1138 = vor.u32 %v1134, %v1137
      %v1140 = vshrl.u32 %v630, 16
      %v1142 = vrot.slane %v1140, 3
      %v1143 = vshll.u32 %v630, 16
      %v1145 = vrot.slane %v1143, 4
      %v1146 = vor.u32 %v1142, %v1145
      %v1147 = vsel %vm872, %v1138, %v1146
      %v1149 = vshrl.u32 %v702, 16
      %v1151 = vrot.slane %v1149, 3
      %v1152 = vshll.u32 %v702, 16
      %v1154 = vrot.slane %v1152, 4
      %v1155 = vor.u32 %v1151, %v1154
      %v1156 = vsel %vm872, %v1155, %v1155
      %v1158 = vshrl.u32 %v749, 16
      %v1160 = vrot.slane %v1158, 3
      %v1161 = vshll.u32 %v749, 16
      %v1163 = vrot.slane %v1161, 4
      %v1164 = vor.u32 %v1160, %v1163
      %v1166 = vshrl.u32 %v751, 16
      %v1168 = vrot.slane %v1166, 3
      %v1169 = vshll.u32 %v751, 16
      %v1171 = vrot.slane %v1169, 4
      %v1172 = vor.u32 %v1168, %v1171
      %v1173 = vsel %vm872, %v1164, %v1172
      %v1175 = vshrl.u32 %v806, 16
      %v1177 = vrot.slane %v1175, 3
      %v1178 = vshll.u32 %v806, 16
      %v1180 = vrot.slane %v1178, 4
      %v1181 = vor.u32 %v1177, %v1180
      %v1183 = vshrl.u32 %v807, 16
      %v1185 = vrot.slane %v1183, 3
      %v1186 = vshll.u32 %v807, 16
      %v1188 = vrot.slane %v1186, 4
      %v1189 = vor.u32 %v1185, %v1188
      %v1190 = vsel %vm872, %v1181, %v1189
      %v1192 = vshrl.u32 %v816, 16
      %v1194 = vrot.slane %v1192, 3
      %v1195 = vshll.u32 %v816, 16
      %v1197 = vrot.slane %v1195, 4
      %v1198 = vor.u32 %v1194, %v1197
      %v1199 = vsel %vm872, %v1198, %v1198
      %v1201 = vshrl.u32 %v820, 16
      %v1203 = vrot.slane %v1201, 3
      %v1204 = vshll.u32 %v820, 16
      %v1206 = vrot.slane %v1204, 4
      %v1207 = vor.u32 %v1203, %v1206
      %v1209 = vshrl.u32 %v822, 16
      %v1211 = vrot.slane %v1209, 3
      %v1212 = vshll.u32 %v822, 16
      %v1214 = vrot.slane %v1212, 4
      %v1215 = vor.u32 %v1211, %v1214
      %v1216 = vsel %vm872, %v1207, %v1215
      %v1289 = vunpack.c.l.b16 %v824
      %v1290 = vunpack.c.l.b16 %v825
      %v1291 = vunpack.c.l.b16 %v826
      %v1292 = vunpack.c.l.b16 %v827
      %v1293 = vunpack.c.l.b16 %v828
      %v1294 = vunpack.c.l.b16 %v829
      %v1295 = vunpack.c.l.b16 %v830
      %v1296 = vunpack.c.l.b16 %v831
      %v1297 = vunpack.c.l.b16 %v832
      %v1298 = vunpack.c.l.b16 %v833
      %v1299 = vunpack.c.l.b16 %v834
      %v1300 = vunpack.c.l.b16 %v835
      %v1301 = vunpack.c.l.b16 %v836
      %v1302 = vunpack.c.l.b16 %v837
      %v1303 = vunpack.c.l.b16 %v838
      %v1304 = vunpack.c.l.b16 %v839
      %v1305 = vunpack.c.l.b16 %v840
      %v1306 = vunpack.c.l.b16 %v841
      %v1307 = vunpack.c.l.b16 %v842
      %v1308 = vunpack.c.l.b16 %v843
      %v1309 = vunpack.c.l.b16 %v844
      %v1310 = vunpack.c.l.b16 %v845
      %v1311 = vunpack.c.l.b16 %v846
      %v1312 = vunpack.c.l.b16 %v847
      %v1313 = vunpack.c.l.b16 %v848
      %v1314 = vunpack.c.l.b16 %v849
      %v1315 = vunpack.c.l.b16 %v850
      %v1316 = vunpack.c.l.b16 %v851
      %v1317 = vunpack.c.l.b16 %v852
      %v1318 = vunpack.c.l.b16 %v853
      %v1319 = vunpack.c.l.b16 %v854
      %v1320 = vunpack.c.l.b16 %v855
      %v1321 = vunpack.c.l.b16 %v856
      %v1322 = vunpack.c.l.b16 %v857
      %v1323 = vunpack.c.l.b16 %v858
      %v1324 = vunpack.c.l.b16 %v859
      %v1325 = vunpack.c.l.b16 %v860
      %v1326 = vunpack.c.l.b16 %v861
      %v1327 = vunpack.c.l.b16 %v862
      %v1328 = vunpack.c.l.b16 %v863
      %v1329 = vunpack.c.l.b16 %v864
      %v1330 = vunpack.c.l.b16 %v865
      %v1331 = vunpack.c.l.b16 %v866
      %v1332 = vunpack.c.l.b16 %v867
      %v1333 = vunpack.c.l.b16 %v868
      %v1334 = vunpack.c.l.b16 %v869
      %v1335 = vunpack.c.l.b16 %v870
      %v1336 = vunpack.c.l.b16 %v871
      %v1337 = vpack.c.b16 %v1290, %v1289
      %v1338 = vpack.c.b16 %v1292, %v1291
      %v1339 = vpack.c.b16 %v1294, %v1293
      %v1340 = vpack.c.b16 %v1296, %v1295
      %v1341 = vpack.c.b16 %v1298, %v1297
      %v1342 = vpack.c.b16 %v1300, %v1299
      %v1343 = vpack.c.b16 %v1302, %v1301
      %v1344 = vpack.c.b16 %v1304, %v1303
      %v1345 = vpack.c.b16 %v1306, %v1305
      %v1346 = vpack.c.b16 %v1308, %v1307
      %v1347 = vpack.c.b16 %v1310, %v1309
      %v1348 = vpack.c.b16 %v1312, %v1311
      %v1349 = vpack.c.b16 %v1314, %v1313
      %v1350 = vpack.c.b16 %v1316, %v1315
      %v1351 = vpack.c.b16 %v1318, %v1317
      %v1352 = vpack.c.b16 %v1320, %v1319
      %v1353 = vpack.c.b16 %v1322, %v1321
      %v1354 = vpack.c.b16 %v1324, %v1323
      %v1355 = vpack.c.b16 %v1326, %v1325
      %v1356 = vpack.c.b16 %v1328, %v1327
      %v1357 = vpack.c.b16 %v1330, %v1329
      %v1358 = vpack.c.b16 %v1332, %v1331
      %v1359 = vpack.c.b16 %v1334, %v1333
      %v1360 = vpack.c.b16 %v1336, %v1335
      %1385 = vmatpush.bf16.msra.mxu0 %v1344
      %1386 = vmatpush.bf16.msra.mxu0 %v1343
      %1387 = vmatpush.bf16.msra.mxu0 %v1342
      %1388 = vmatpush.bf16.msra.mxu0 %v1341
      %1389 = vmatpush.bf16.msra.mxu0 %v1340
      %1390 = vmatpush.bf16.msra.mxu0 %v1339
      %1391 = vmatpush.bf16.msra.mxu0 %v1338
      %1392 = vmatpush.bf16.msra.mxu0 %v1337
      %1393 = vmatmul.bf16.gmra.mxu0 %v889
      %v1394 = vpop.f32.mrf.mxu0
      %v1395 = vadd.f32 0.0, %v1394
      %v1396 = vpop.f32.mrf.mxu0
      %v1397 = vadd.f32 0.0, %v1396
      %1398 = vmatmul.bf16.gmra.mxu0 %v932
      %v1399 = vpop.f32.mrf.mxu0
      %v1400 = vadd.f32 0.0, %v1399
      %v1401 = vpop.f32.mrf.mxu0
      %v1402 = vadd.f32 0.0, %v1401
      %1403 = vmatmul.bf16.gmra.mxu0 %v975
      %v1404 = vpop.f32.mrf.mxu0
      %v1405 = vadd.f32 0.0, %v1404
      %v1406 = vpop.f32.mrf.mxu0
      %v1407 = vadd.f32 0.0, %v1406
      %1408 = vmatmul.bf16.gmra.mxu0 %v1018
      %v1409 = vpop.f32.mrf.mxu0
      %v1410 = vadd.f32 0.0, %v1409
      %v1411 = vpop.f32.mrf.mxu0
      %v1412 = vadd.f32 0.0, %v1411
      %1413 = vmatmul.bf16.gmra.mxu0 %v1061
      %v1414 = vpop.f32.mrf.mxu0
      %v1415 = vadd.f32 0.0, %v1414
      %v1416 = vpop.f32.mrf.mxu0
      %v1417 = vadd.f32 0.0, %v1416
      %1418 = vmatmul.bf16.gmra.mxu0 %v1104
      %v1419 = vpop.f32.mrf.mxu0
      %v1420 = vadd.f32 0.0, %v1419
      %v1421 = vpop.f32.mrf.mxu0
      %v1422 = vadd.f32 0.0, %v1421
      %1423 = vmatmul.bf16.gmra.mxu0 %v1147
      %v1424 = vpop.f32.mrf.mxu0
      %v1425 = vadd.f32 0.0, %v1424
      %v1426 = vpop.f32.mrf.mxu0
      %v1427 = vadd.f32 0.0, %v1426
      %1428 = vmatmul.bf16.gmra.mxu0 %v1190
      %v1429 = vpop.f32.mrf.mxu0
      %v1430 = vadd.f32 0.0, %v1429
      %v1431 = vpop.f32.mrf.mxu0
      %v1432 = vadd.f32 0.0, %v1431
      %1433 = vdwg.mxu0
      %1434 = vmatpush.bf16.msra.mxu0 %v1352
      %1435 = vmatpush.bf16.msra.mxu0 %v1351
      %1436 = vmatpush.bf16.msra.mxu0 %v1350
      %1437 = vmatpush.bf16.msra.mxu0 %v1349
      %1438 = vmatpush.bf16.msra.mxu0 %v1348
      %1439 = vmatpush.bf16.msra.mxu0 %v1347
      %1440 = vmatpush.bf16.msra.mxu0 %v1346
      %1441 = vmatpush.bf16.msra.mxu0 %v1345
      %1442 = vmatmul.bf16.gmra.mxu0 %v898
      %v1443 = vpop.f32.mrf.mxu0
      %v1444 = vadd.f32 %v1395, %v1443
      %v1445 = vpop.f32.mrf.mxu0
      %v1446 = vadd.f32 %v1397, %v1445
      %1447 = vmatmul.bf16.gmra.mxu0 %v941
      %v1448 = vpop.f32.mrf.mxu0
      %v1449 = vadd.f32 %v1400, %v1448
      %v1450 = vpop.f32.mrf.mxu0
      %v1451 = vadd.f32 %v1402, %v1450
      %1452 = vmatmul.bf16.gmra.mxu0 %v984
      %v1453 = vpop.f32.mrf.mxu0
      %v1454 = vadd.f32 %v1405, %v1453
      %v1455 = vpop.f32.mrf.mxu0
      %v1456 = vadd.f32 %v1407, %v1455
      %1457 = vmatmul.bf16.gmra.mxu0 %v1027
      %v1458 = vpop.f32.mrf.mxu0
      %v1459 = vadd.f32 %v1410, %v1458
      %v1460 = vpop.f32.mrf.mxu0
      %v1461 = vadd.f32 %v1412, %v1460
      %1462 = vmatmul.bf16.gmra.mxu0 %v1070
      %v1463 = vpop.f32.mrf.mxu0
      %v1464 = vadd.f32 %v1415, %v1463
      %v1465 = vpop.f32.mrf.mxu0
      %v1466 = vadd.f32 %v1417, %v1465
      %1467 = vmatmul.bf16.gmra.mxu0 %v1113
      %v1468 = vpop.f32.mrf.mxu0
      %v1469 = vadd.f32 %v1420, %v1468
      %v1470 = vpop.f32.mrf.mxu0
      %v1471 = vadd.f32 %v1422, %v1470
      %1472 = vmatmul.bf16.gmra.mxu0 %v1156
      %v1473 = vpop.f32.mrf.mxu0
      %v1474 = vadd.f32 %v1425, %v1473
      %v1475 = vpop.f32.mrf.mxu0
      %v1476 = vadd.f32 %v1427, %v1475
      %1477 = vmatmul.bf16.gmra.mxu0 %v1199
      %v1478 = vpop.f32.mrf.mxu0
      %v1479 = vadd.f32 %v1430, %v1478
      %v1480 = vpop.f32.mrf.mxu0
      %v1481 = vadd.f32 %v1432, %v1480
      %1482 = vdwg.mxu0
      %1483 = vmatpush.bf16.msra.mxu0 %v1360
      %1484 = vmatpush.bf16.msra.mxu0 %v1359
      %1485 = vmatpush.bf16.msra.mxu0 %v1358
      %1486 = vmatpush.bf16.msra.mxu0 %v1357
      %1487 = vmatpush.bf16.msra.mxu0 %v1356
      %1488 = vmatpush.bf16.msra.mxu0 %v1355
      %1489 = vmatpush.bf16.msra.mxu0 %v1354
      %1490 = vmatpush.bf16.msra.mxu0 %v1353
      %1491 = vmatmul.bf16.gmra.mxu0 %v915
      %v1492 = vpop.f32.mrf.mxu0
      %v1493 = vadd.f32 %v1444, %v1492
      %v1494 = vpop.f32.mrf.mxu0
      %v1495 = vadd.f32 %v1446, %v1494
      %1496 = vmatmul.bf16.gmra.mxu0 %v958
      %v1497 = vpop.f32.mrf.mxu0
      %v1498 = vadd.f32 %v1449, %v1497
      %v1499 = vpop.f32.mrf.mxu0
      %v1500 = vadd.f32 %v1451, %v1499
      %1501 = vmatmul.bf16.gmra.mxu0 %v1001
      %v1502 = vpop.f32.mrf.mxu0
      %v1503 = vadd.f32 %v1454, %v1502
      %v1504 = vpop.f32.mrf.mxu0
      %v1505 = vadd.f32 %v1456, %v1504
      %1506 = vmatmul.bf16.gmra.mxu0 %v1044
      %v1507 = vpop.f32.mrf.mxu0
      %v1508 = vadd.f32 %v1459, %v1507
      %v1509 = vpop.f32.mrf.mxu0
      %v1510 = vadd.f32 %v1461, %v1509
      %1511 = vmatmul.bf16.gmra.mxu0 %v1087
      %v1512 = vpop.f32.mrf.mxu0
      %v1513 = vadd.f32 %v1464, %v1512
      %v1514 = vpop.f32.mrf.mxu0
      %v1515 = vadd.f32 %v1466, %v1514
      %1516 = vmatmul.bf16.gmra.mxu0 %v1130
      %v1517 = vpop.f32.mrf.mxu0
      %v1518 = vadd.f32 %v1469, %v1517
      %v1519 = vpop.f32.mrf.mxu0
      %v1520 = vadd.f32 %v1471, %v1519
      %1521 = vmatmul.bf16.gmra.mxu0 %v1173
      %v1522 = vpop.f32.mrf.mxu0
      %v1523 = vadd.f32 %v1474, %v1522
      %v1524 = vpop.f32.mrf.mxu0
      %v1525 = vadd.f32 %v1476, %v1524
      %1526 = vmatmul.bf16.gmra.mxu0 %v1216
      %v1527 = vpop.f32.mrf.mxu0
      %v1528 = vadd.f32 %v1479, %v1527
      %v1529 = vpop.f32.mrf.mxu0
      %v1530 = vadd.f32 %v1481, %v1529
      %1531 = vdwg.mxu0
      %v1533 = vshrl.u32 %v615, 16
      %v1535 = vrot.slane %v1533, 3
      %v1536 = vshll.u32 %v615, 16
      %v1538 = vrot.slane %v1536, 4
      %v1539 = vor.u32 %v1535, %v1538
      %v1541 = vshrl.u32 %v616, 16
      %v1543 = vrot.slane %v1541, 3
      %v1544 = vshll.u32 %v616, 16
      %v1546 = vrot.slane %v1544, 4
      %v1547 = vor.u32 %v1543, %v1546
      %v1548 = vsel %vm872, %v1539, %v1547
      %v1550 = vshrl.u32 %v646, 16
      %v1552 = vrot.slane %v1550, 3
      %v1553 = vshll.u32 %v646, 16
      %v1555 = vrot.slane %v1553, 4
      %v1556 = vor.u32 %v1552, %v1555
      %v1557 = vsel %vm872, %v1556, %v1556
      %v1559 = vshrl.u32 %v728, 16
      %v1561 = vrot.slane %v1559, 3
      %v1562 = vshll.u32 %v728, 16
      %v1564 = vrot.slane %v1562, 4
      %v1565 = vor.u32 %v1561, %v1564
      %v1567 = vshrl.u32 %v730, 16
      %v1569 = vrot.slane %v1567, 3
      %v1570 = vshll.u32 %v730, 16
      %v1572 = vrot.slane %v1570, 4
      %v1573 = vor.u32 %v1569, %v1572
      %v1574 = vsel %vm872, %v1565, %v1573
      %v1626 = vunpack.c.l.b16 %v752
      %v1627 = vunpack.c.l.b16 %v753
      %v1628 = vunpack.c.l.b16 %v754
      %v1629 = vunpack.c.l.b16 %v755
      %v1630 = vunpack.c.l.b16 %v756
      %v1631 = vunpack.c.l.b16 %v757
      %v1632 = vunpack.c.l.b16 %v758
      %v1633 = vunpack.c.l.b16 %v759
      %v1634 = vunpack.c.l.b16 %v760
      %v1635 = vunpack.c.l.b16 %v761
      %v1636 = vunpack.c.l.b16 %v762
      %v1637 = vunpack.c.l.b16 %v763
      %v1638 = vunpack.c.l.b16 %v764
      %v1639 = vunpack.c.l.b16 %v765
      %v1640 = vunpack.c.l.b16 %v766
      %v1641 = vunpack.c.l.b16 %v767
      %v1642 = vunpack.c.l.b16 %v768
      %v1643 = vunpack.c.l.b16 %v769
      %v1644 = vunpack.c.l.b16 %v770
      %v1645 = vunpack.c.l.b16 %v771
      %v1646 = vunpack.c.l.b16 %v772
      %v1647 = vunpack.c.l.b16 %v773
      %v1648 = vunpack.c.l.b16 %v774
      %v1649 = vunpack.c.l.b16 %v775
      %v1650 = vunpack.c.l.b16 %v776
      %v1651 = vunpack.c.l.b16 %v777
      %v1652 = vunpack.c.l.b16 %v778
      %v1653 = vunpack.c.l.b16 %v779
      %v1654 = vunpack.c.l.b16 %v780
      %v1655 = vunpack.c.l.b16 %v781
      %v1656 = vunpack.c.l.b16 %v782
      %v1657 = vunpack.c.l.b16 %v783
      %v1658 = vunpack.c.l.b16 %v784
      %v1659 = vunpack.c.l.b16 %v785
      %v1660 = vunpack.c.l.b16 %v786
      %v1661 = vunpack.c.l.b16 %v787
      %v1662 = vunpack.c.l.b16 %v788
      %v1663 = vunpack.c.l.b16 %v789
      %v1664 = vunpack.c.l.b16 %v790
      %v1665 = vunpack.c.l.b16 %v791
      %v1666 = vunpack.c.l.b16 %v792
      %v1667 = vunpack.c.l.b16 %v793
      %v1668 = vunpack.c.l.b16 %v794
      %v1669 = vunpack.c.l.b16 %v795
      %v1670 = vunpack.c.l.b16 %v796
      %v1671 = vunpack.c.l.b16 %v797
      %v1672 = vunpack.c.l.b16 %v798
      %v1673 = vunpack.c.l.b16 %v799
      %v1674 = vpack.c.b16 %v1627, %v1626
      %v1675 = vpack.c.b16 %v1629, %v1628
      %v1676 = vpack.c.b16 %v1631, %v1630
      %v1677 = vpack.c.b16 %v1633, %v1632
      %v1678 = vpack.c.b16 %v1635, %v1634
      %v1679 = vpack.c.b16 %v1637, %v1636
      %v1680 = vpack.c.b16 %v1639, %v1638
      %v1681 = vpack.c.b16 %v1641, %v1640
      %v1682 = vpack.c.b16 %v1643, %v1642
      %v1683 = vpack.c.b16 %v1645, %v1644
      %v1684 = vpack.c.b16 %v1647, %v1646
      %v1685 = vpack.c.b16 %v1649, %v1648
      %v1686 = vpack.c.b16 %v1651, %v1650
      %v1687 = vpack.c.b16 %v1653, %v1652
      %v1688 = vpack.c.b16 %v1655, %v1654
      %v1689 = vpack.c.b16 %v1657, %v1656
      %v1690 = vpack.c.b16 %v1659, %v1658
      %v1691 = vpack.c.b16 %v1661, %v1660
      %v1692 = vpack.c.b16 %v1663, %v1662
      %v1693 = vpack.c.b16 %v1665, %v1664
      %v1694 = vpack.c.b16 %v1667, %v1666
      %v1695 = vpack.c.b16 %v1669, %v1668
      %v1696 = vpack.c.b16 %v1671, %v1670
      %v1697 = vpack.c.b16 %v1673, %v1672
      %1722 = vmatpush.bf16.msra.mxu0 %v1681
      %1723 = vmatpush.bf16.msra.mxu0 %v1680
      %1724 = vmatpush.bf16.msra.mxu0 %v1679
      %1725 = vmatpush.bf16.msra.mxu0 %v1678
      %1726 = vmatpush.bf16.msra.mxu0 %v1677
      %1727 = vmatpush.bf16.msra.mxu0 %v1676
      %1728 = vmatpush.bf16.msra.mxu0 %v1675
      %1729 = vmatpush.bf16.msra.mxu0 %v1674
      %1730 = vmatmul.bf16.gmra.mxu0 %v1548
      %v1731 = vpop.f32.mrf.mxu0
      %v1732 = vadd.f32 %v1493, %v1731
      %v1733 = vpop.f32.mrf.mxu0
      %v1734 = vadd.f32 %v1495, %v1733
      %1735 = vmatmul.bf16.gmra.mxu0 %v889
      %v1736 = vpop.f32.mrf.mxu0
      %v1737 = vadd.f32 %v1498, %v1736
      %v1738 = vpop.f32.mrf.mxu0
      %v1739 = vadd.f32 %v1500, %v1738
      %1740 = vmatmul.bf16.gmra.mxu0 %v932
      %v1741 = vpop.f32.mrf.mxu0
      %v1742 = vadd.f32 %v1503, %v1741
      %v1743 = vpop.f32.mrf.mxu0
      %v1744 = vadd.f32 %v1505, %v1743
      %1745 = vmatmul.bf16.gmra.mxu0 %v975
      %v1746 = vpop.f32.mrf.mxu0
      %v1747 = vadd.f32 %v1508, %v1746
      %v1748 = vpop.f32.mrf.mxu0
      %v1749 = vadd.f32 %v1510, %v1748
      %1750 = vmatmul.bf16.gmra.mxu0 %v1018
      %v1751 = vpop.f32.mrf.mxu0
      %v1752 = vadd.f32 %v1513, %v1751
      %v1753 = vpop.f32.mrf.mxu0
      %v1754 = vadd.f32 %v1515, %v1753
      %1755 = vmatmul.bf16.gmra.mxu0 %v1061
      %v1756 = vpop.f32.mrf.mxu0
      %v1757 = vadd.f32 %v1518, %v1756
      %v1758 = vpop.f32.mrf.mxu0
      %v1759 = vadd.f32 %v1520, %v1758
      %1760 = vmatmul.bf16.gmra.mxu0 %v1104
      %v1761 = vpop.f32.mrf.mxu0
      %v1762 = vadd.f32 %v1523, %v1761
      %v1763 = vpop.f32.mrf.mxu0
      %v1764 = vadd.f32 %v1525, %v1763
      %1765 = vmatmul.bf16.gmra.mxu0 %v1147
      %v1766 = vpop.f32.mrf.mxu0
      %v1767 = vadd.f32 %v1528, %v1766
      %v1768 = vpop.f32.mrf.mxu0
      %v1769 = vadd.f32 %v1530, %v1768
      %1770 = vdwg.mxu0
      %1771 = vmatpush.bf16.msra.mxu0 %v1689
      %1772 = vmatpush.bf16.msra.mxu0 %v1688
      %1773 = vmatpush.bf16.msra.mxu0 %v1687
      %1774 = vmatpush.bf16.msra.mxu0 %v1686
      %1775 = vmatpush.bf16.msra.mxu0 %v1685
      %1776 = vmatpush.bf16.msra.mxu0 %v1684
      %1777 = vmatpush.bf16.msra.mxu0 %v1683
      %1778 = vmatpush.bf16.msra.mxu0 %v1682
      %1779 = vmatmul.bf16.gmra.mxu0 %v1557
      %v1780 = vpop.f32.mrf.mxu0
      %v1781 = vadd.f32 %v1732, %v1780
      %v1782 = vpop.f32.mrf.mxu0
      %v1783 = vadd.f32 %v1734, %v1782
      %1784 = vmatmul.bf16.gmra.mxu0 %v898
      %v1785 = vpop.f32.mrf.mxu0
      %v1786 = vadd.f32 %v1737, %v1785
      %v1787 = vpop.f32.mrf.mxu0
      %v1788 = vadd.f32 %v1739, %v1787
      %1789 = vmatmul.bf16.gmra.mxu0 %v941
      %v1790 = vpop.f32.mrf.mxu0
      %v1791 = vadd.f32 %v1742, %v1790
      %v1792 = vpop.f32.mrf.mxu0
      %v1793 = vadd.f32 %v1744, %v1792
      %1794 = vmatmul.bf16.gmra.mxu0 %v984
      %v1795 = vpop.f32.mrf.mxu0
      %v1796 = vadd.f32 %v1747, %v1795
      %v1797 = vpop.f32.mrf.mxu0
      %v1798 = vadd.f32 %v1749, %v1797
      %1799 = vmatmul.bf16.gmra.mxu0 %v1027
      %v1800 = vpop.f32.mrf.mxu0
      %v1801 = vadd.f32 %v1752, %v1800
      %v1802 = vpop.f32.mrf.mxu0
      %v1803 = vadd.f32 %v1754, %v1802
      %1804 = vmatmul.bf16.gmra.mxu0 %v1070
      %v1805 = vpop.f32.mrf.mxu0
      %v1806 = vadd.f32 %v1757, %v1805
      %v1807 = vpop.f32.mrf.mxu0
      %v1808 = vadd.f32 %v1759, %v1807
      %1809 = vmatmul.bf16.gmra.mxu0 %v1113
      %v1810 = vpop.f32.mrf.mxu0
      %v1811 = vadd.f32 %v1762, %v1810
      %v1812 = vpop.f32.mrf.mxu0
      %v1813 = vadd.f32 %v1764, %v1812
      %1814 = vmatmul.bf16.gmra.mxu0 %v1156
      %v1815 = vpop.f32.mrf.mxu0
      %v1816 = vadd.f32 %v1767, %v1815
      %v1817 = vpop.f32.mrf.mxu0
      %v1818 = vadd.f32 %v1769, %v1817
      %1819 = vdwg.mxu0
      %1820 = vmatpush.bf16.msra.mxu0 %v1697
      %1821 = vmatpush.bf16.msra.mxu0 %v1696
      %1822 = vmatpush.bf16.msra.mxu0 %v1695
      %1823 = vmatpush.bf16.msra.mxu0 %v1694
      %1824 = vmatpush.bf16.msra.mxu0 %v1693
      %1825 = vmatpush.bf16.msra.mxu0 %v1692
      %1826 = vmatpush.bf16.msra.mxu0 %v1691
      %1827 = vmatpush.bf16.msra.mxu0 %v1690
      %1828 = vmatmul.bf16.gmra.mxu0 %v1574
      %v1829 = vpop.f32.mrf.mxu0
      %v1830 = vadd.f32 %v1781, %v1829
      %v1831 = vpop.f32.mrf.mxu0
      %v1832 = vadd.f32 %v1783, %v1831
      %1833 = vmatmul.bf16.gmra.mxu0 %v915
      %v1834 = vpop.f32.mrf.mxu0
      %v1835 = vadd.f32 %v1786, %v1834
      %v1836 = vpop.f32.mrf.mxu0
      %v1837 = vadd.f32 %v1788, %v1836
      %1838 = vmatmul.bf16.gmra.mxu0 %v958
      %v1839 = vpop.f32.mrf.mxu0
      %v1840 = vadd.f32 %v1791, %v1839
      %v1841 = vpop.f32.mrf.mxu0
      %v1842 = vadd.f32 %v1793, %v1841
      %1843 = vmatmul.bf16.gmra.mxu0 %v1001
      %v1844 = vpop.f32.mrf.mxu0
      %v1845 = vadd.f32 %v1796, %v1844
      %v1846 = vpop.f32.mrf.mxu0
      %v1847 = vadd.f32 %v1798, %v1846
      %1848 = vmatmul.bf16.gmra.mxu0 %v1044
      %v1849 = vpop.f32.mrf.mxu0
      %v1850 = vadd.f32 %v1801, %v1849
      %v1851 = vpop.f32.mrf.mxu0
      %v1852 = vadd.f32 %v1803, %v1851
      %1853 = vmatmul.bf16.gmra.mxu0 %v1087
      %v1854 = vpop.f32.mrf.mxu0
      %v1855 = vadd.f32 %v1806, %v1854
      %v1856 = vpop.f32.mrf.mxu0
      %v1857 = vadd.f32 %v1808, %v1856
      %1858 = vmatmul.bf16.gmra.mxu0 %v1130
      %v1859 = vpop.f32.mrf.mxu0
      %v1860 = vadd.f32 %v1811, %v1859
      %v1861 = vpop.f32.mrf.mxu0
      %v1862 = vadd.f32 %v1813, %v1861
      %1863 = vmatmul.bf16.gmra.mxu0 %v1173
      %v1864 = vpop.f32.mrf.mxu0
      %v1865 = vadd.f32 %v1816, %v1864
      %v1866 = vpop.f32.mrf.mxu0
      %v1867 = vadd.f32 %v1818, %v1866
      %1868 = vdwg.mxu0
      %v1872 = vunpack.c.l.b16 %v563
      %v1873 = vunpack.c.l.b16 %v564
      %v1874 = vunpack.c.l.b16 %v565
      %v1875 = vpack.c.b16 %v1873, %v1872
      %v1876 = vpack.c.b16 %v1874, %v1874
      %v1877 = vpack.c.b16 %v1874, %v1873
      %v1879 = vshrl.u32 %v1877, 16
      %v1881 = vrot.slane %v1879, 4
      %v1882 = vshll.u32 %v1877, 16
      %v1884 = vrot.slane %v1882, 5
      %v1885 = vor.u32 %v1881, %v1884
      %v1887 = vunpack.c.l.b16 %v566
      %v1888 = vpack.c.b16 %v1887, %v1887
      %v1889 = vrot.slane %v1877, 5
      %v1890 = vrot.slane %v1888, 5
      %v1891 = vsel %vm727, %v1889, %v1890
      %s1892 = scalar_lea.vmem %s3, 384
      %v1893 = vld [vmem:[%s1892] sm:$0xf]
      %v1894 = vld [vmem:[%s1892 + $0x4] sm:$0xf]
      %v1895 = vld [vmem:[%s1892 + $0x8] sm:$0xf]
      %v1896 = vld [vmem:[%s1892 + $0xc] sm:$0xf]
      %v1897 = vld [vmem:[%s1892 + $0x10] sm:$0xf]
      %v1898 = vld [vmem:[%s1892 + $0x14] sm:$0xf]
      %v1899 = vld [vmem:[%s1892 + $0x18] sm:$0xf]
      %v1900 = vld [vmem:[%s1892 + $0x1c] sm:$0xf]
      %v1901 = vld [vmem:[%s1892 + $0x20] sm:$0xf]
      %v1902 = vld [vmem:[%s1892 + $0x24] sm:$0xf]
      %v1903 = vld [vmem:[%s1892 + $0x28] sm:$0xf]
      %v1904 = vld [vmem:[%s1892 + $0x2c] sm:$0xf]
      %v1905 = vld [vmem:[%s1892 + $0x30] sm:$0xf]
      %v1906 = vld [vmem:[%s1892 + $0x34] sm:$0xf]
      %v1907 = vld [vmem:[%s1892 + $0x38] sm:$0xf]
      %v1908 = vld [vmem:[%s1892 + $0x3c] sm:$0xf]
      %v1909 = vld [vmem:[%s1892 + $0x40] sm:$0xf]
      %v1910 = vld [vmem:[%s1892 + $0x44] sm:$0xf]
      %v1911 = vld [vmem:[%s1892 + $0x48] sm:$0xf]
      %v1912 = vld [vmem:[%s1892 + $0x4c] sm:$0xf]
      %v1913 = vld [vmem:[%s1892 + $0x50] sm:$0xf]
      %v1914 = vld [vmem:[%s1892 + $0x54] sm:$0xf]
      %v1915 = vld [vmem:[%s1892 + $0x58] sm:$0xf]
      %v1916 = vld [vmem:[%s1892 + $0x5c] sm:$0xf]
      %v1917 = vld [vmem:[%s1892 + $0x60] sm:$0xf]
      %v1918 = vld [vmem:[%s1892 + $0x64] sm:$0xf]
      %v1919 = vld [vmem:[%s1892 + $0x68] sm:$0xf]
      %v1920 = vld [vmem:[%s1892 + $0x6c] sm:$0xf]
      %v1921 = vld [vmem:[%s1892 + $0x70] sm:$0xf]
      %v1922 = vld [vmem:[%s1892 + $0x74] sm:$0xf]
      %v1923 = vld [vmem:[%s1892 + $0x78] sm:$0xf]
      %v1924 = vld [vmem:[%s1892 + $0x7c] sm:$0xf]
      %v1925 = vld [vmem:[%s1892 + $0x80] sm:$0xf]
      %v1926 = vld [vmem:[%s1892 + $0x84] sm:$0xf]
      %v1927 = vld [vmem:[%s1892 + $0x88] sm:$0xf]
      %v1928 = vld [vmem:[%s1892 + $0x8c] sm:$0xf]
      %v1929 = vld [vmem:[%s1892 + $0x90] sm:$0xf]
      %v1930 = vld [vmem:[%s1892 + $0x94] sm:$0xf]
      %v1931 = vld [vmem:[%s1892 + $0x98] sm:$0xf]
      %v1932 = vld [vmem:[%s1892 + $0x9c] sm:$0xf]
      %v1933 = vld [vmem:[%s1892 + $0xa0] sm:$0xf]
      %v1934 = vld [vmem:[%s1892 + $0xa4] sm:$0xf]
      %v1935 = vld [vmem:[%s1892 + $0xa8] sm:$0xf]
      %v1936 = vld [vmem:[%s1892 + $0xac] sm:$0xf]
      %v1937 = vld [vmem:[%s1892 + $0xb0] sm:$0xf]
      %v1938 = vld [vmem:[%s1892 + $0xb4] sm:$0xf]
      %v1939 = vld [vmem:[%s1892 + $0xb8] sm:$0xf]
      %v1940 = vld [vmem:[%s1892 + $0xbc] sm:$0xf]
      %v1942 = vshrl.u32 %v1875, 16
      %v1944 = vrot.slane %v1942, 3
      %v1945 = vshll.u32 %v1875, 16
      %v1947 = vrot.slane %v1945, 4
      %v1948 = vor.u32 %v1944, %v1947
      %v1950 = vshrl.u32 %v1876, 16
      %v1952 = vrot.slane %v1950, 3
      %v1953 = vshll.u32 %v1876, 16
      %v1955 = vrot.slane %v1953, 4
      %v1956 = vor.u32 %v1952, %v1955
      %v1957 = vsel %vm872, %v1948, %v1956
      %v1959 = vshrl.u32 %v1885, 16
      %v1961 = vrot.slane %v1959, 3
      %v1962 = vshll.u32 %v1885, 16
      %v1964 = vrot.slane %v1962, 4
      %v1965 = vor.u32 %v1961, %v1964
      %v1966 = vsel %vm872, %v1965, %v1965
      %v1968 = vshrl.u32 %v1889, 16
      %v1970 = vrot.slane %v1968, 3
      %v1971 = vshll.u32 %v1889, 16
      %v1973 = vrot.slane %v1971, 4
      %v1974 = vor.u32 %v1970, %v1973
      %v1976 = vshrl.u32 %v1891, 16
      %v1978 = vrot.slane %v1976, 3
      %v1979 = vshll.u32 %v1891, 16
      %v1981 = vrot.slane %v1979, 4
      %v1982 = vor.u32 %v1978, %v1981
      %v1983 = vsel %vm872, %v1974, %v1982
      %v2035 = vunpack.c.l.b16 %v1893
      %v2036 = vunpack.c.l.b16 %v1894
      %v2037 = vunpack.c.l.b16 %v1895
      %v2038 = vunpack.c.l.b16 %v1896
      %v2039 = vunpack.c.l.b16 %v1897
      %v2040 = vunpack.c.l.b16 %v1898
      %v2041 = vunpack.c.l.b16 %v1899
      %v2042 = vunpack.c.l.b16 %v1900
      %v2043 = vunpack.c.l.b16 %v1901
      %v2044 = vunpack.c.l.b16 %v1902
      %v2045 = vunpack.c.l.b16 %v1903
      %v2046 = vunpack.c.l.b16 %v1904
      %v2047 = vunpack.c.l.b16 %v1905
      %v2048 = vunpack.c.l.b16 %v1906
      %v2049 = vunpack.c.l.b16 %v1907
      %v2050 = vunpack.c.l.b16 %v1908
      %v2051 = vunpack.c.l.b16 %v1909
      %v2052 = vunpack.c.l.b16 %v1910
      %v2053 = vunpack.c.l.b16 %v1911
      %v2054 = vunpack.c.l.b16 %v1912
      %v2055 = vunpack.c.l.b16 %v1913
      %v2056 = vunpack.c.l.b16 %v1914
      %v2057 = vunpack.c.l.b16 %v1915
      %v2058 = vunpack.c.l.b16 %v1916
      %v2059 = vunpack.c.l.b16 %v1917
      %v2060 = vunpack.c.l.b16 %v1918
      %v2061 = vunpack.c.l.b16 %v1919
      %v2062 = vunpack.c.l.b16 %v1920
      %v2063 = vunpack.c.l.b16 %v1921
      %v2064 = vunpack.c.l.b16 %v1922
      %v2065 = vunpack.c.l.b16 %v1923
      %v2066 = vunpack.c.l.b16 %v1924
      %v2067 = vunpack.c.l.b16 %v1925
      %v2068 = vunpack.c.l.b16 %v1926
      %v2069 = vunpack.c.l.b16 %v1927
      %v2070 = vunpack.c.l.b16 %v1928
      %v2071 = vunpack.c.l.b16 %v1929
      %v2072 = vunpack.c.l.b16 %v1930
      %v2073 = vunpack.c.l.b16 %v1931
      %v2074 = vunpack.c.l.b16 %v1932
      %v2075 = vunpack.c.l.b16 %v1933
      %v2076 = vunpack.c.l.b16 %v1934
      %v2077 = vunpack.c.l.b16 %v1935
      %v2078 = vunpack.c.l.b16 %v1936
      %v2079 = vunpack.c.l.b16 %v1937
      %v2080 = vunpack.c.l.b16 %v1938
      %v2081 = vunpack.c.l.b16 %v1939
      %v2082 = vunpack.c.l.b16 %v1940
      %v2083 = vpack.c.b16 %v2036, %v2035
      %v2084 = vpack.c.b16 %v2038, %v2037
      %v2085 = vpack.c.b16 %v2040, %v2039
      %v2086 = vpack.c.b16 %v2042, %v2041
      %v2087 = vpack.c.b16 %v2044, %v2043
      %v2088 = vpack.c.b16 %v2046, %v2045
      %v2089 = vpack.c.b16 %v2048, %v2047
      %v2090 = vpack.c.b16 %v2050, %v2049
      %v2091 = vpack.c.b16 %v2052, %v2051
      %v2092 = vpack.c.b16 %v2054, %v2053
      %v2093 = vpack.c.b16 %v2056, %v2055
      %v2094 = vpack.c.b16 %v2058, %v2057
      %v2095 = vpack.c.b16 %v2060, %v2059
      %v2096 = vpack.c.b16 %v2062, %v2061
      %v2097 = vpack.c.b16 %v2064, %v2063
      %v2098 = vpack.c.b16 %v2066, %v2065
      %v2099 = vpack.c.b16 %v2068, %v2067
      %v2100 = vpack.c.b16 %v2070, %v2069
      %v2101 = vpack.c.b16 %v2072, %v2071
      %v2102 = vpack.c.b16 %v2074, %v2073
      %v2103 = vpack.c.b16 %v2076, %v2075
      %v2104 = vpack.c.b16 %v2078, %v2077
      %v2105 = vpack.c.b16 %v2080, %v2079
      %v2106 = vpack.c.b16 %v2082, %v2081
      %2131 = vmatpush.bf16.msra.mxu0 %v2090
      %2132 = vmatpush.bf16.msra.mxu0 %v2089
      %2133 = vmatpush.bf16.msra.mxu0 %v2088
      %2134 = vmatpush.bf16.msra.mxu0 %v2087
      %2135 = vmatpush.bf16.msra.mxu0 %v2086
      %2136 = vmatpush.bf16.msra.mxu0 %v2085
      %2137 = vmatpush.bf16.msra.mxu0 %v2084
      %2138 = vmatpush.bf16.msra.mxu0 %v2083
      %2139 = vmatmul.bf16.gmra.mxu0 %v932
      %v2140 = vpop.f32.mrf.mxu0
      %v2141 = vadd.f32 0.0, %v2140
      %v2142 = vpop.f32.mrf.mxu0
      %v2143 = vadd.f32 0.0, %v2142
      %2144 = vmatmul.bf16.gmra.mxu0 %v975
      %v2145 = vpop.f32.mrf.mxu0
      %v2146 = vadd.f32 0.0, %v2145
      %v2147 = vpop.f32.mrf.mxu0
      %v2148 = vadd.f32 0.0, %v2147
      %2149 = vmatmul.bf16.gmra.mxu0 %v1018
      %v2150 = vpop.f32.mrf.mxu0
      %v2151 = vadd.f32 0.0, %v2150
      %v2152 = vpop.f32.mrf.mxu0
      %v2153 = vadd.f32 0.0, %v2152
      %2154 = vmatmul.bf16.gmra.mxu0 %v1061
      %v2155 = vpop.f32.mrf.mxu0
      %v2156 = vadd.f32 0.0, %v2155
      %v2157 = vpop.f32.mrf.mxu0
      %v2158 = vadd.f32 0.0, %v2157
      %2159 = vmatmul.bf16.gmra.mxu0 %v1104
      %v2160 = vpop.f32.mrf.mxu0
      %v2161 = vadd.f32 0.0, %v2160
      %v2162 = vpop.f32.mrf.mxu0
      %v2163 = vadd.f32 0.0, %v2162
      %2164 = vmatmul.bf16.gmra.mxu0 %v1147
      %v2165 = vpop.f32.mrf.mxu0
      %v2166 = vadd.f32 0.0, %v2165
      %v2167 = vpop.f32.mrf.mxu0
      %v2168 = vadd.f32 0.0, %v2167
      %2169 = vmatmul.bf16.gmra.mxu0 %v1190
      %v2170 = vpop.f32.mrf.mxu0
      %v2171 = vadd.f32 0.0, %v2170
      %v2172 = vpop.f32.mrf.mxu0
      %v2173 = vadd.f32 0.0, %v2172
      %2174 = vmatmul.bf16.gmra.mxu0 %v1957
      %v2175 = vpop.f32.mrf.mxu0
      %v2176 = vadd.f32 0.0, %v2175
      %v2177 = vpop.f32.mrf.mxu0
      %v2178 = vadd.f32 0.0, %v2177
      %2179 = vdwg.mxu0
      %2180 = vmatpush.bf16.msra.mxu0 %v2098
      %2181 = vmatpush.bf16.msra.mxu0 %v2097
      %2182 = vmatpush.bf16.msra.mxu0 %v2096
      %2183 = vmatpush.bf16.msra.mxu0 %v2095
      %2184 = vmatpush.bf16.msra.mxu0 %v2094
      %2185 = vmatpush.bf16.msra.mxu0 %v2093
      %2186 = vmatpush.bf16.msra.mxu0 %v2092
      %2187 = vmatpush.bf16.msra.mxu0 %v2091
      %2188 = vmatmul.bf16.gmra.mxu0 %v941
      %v2189 = vpop.f32.mrf.mxu0
      %v2190 = vadd.f32 %v2141, %v2189
      %v2191 = vpop.f32.mrf.mxu0
      %v2192 = vadd.f32 %v2143, %v2191
      %2193 = vmatmul.bf16.gmra.mxu0 %v984
      %v2194 = vpop.f32.mrf.mxu0
      %v2195 = vadd.f32 %v2146, %v2194
      %v2196 = vpop.f32.mrf.mxu0
      %v2197 = vadd.f32 %v2148, %v2196
      %2198 = vmatmul.bf16.gmra.mxu0 %v1027
      %v2199 = vpop.f32.mrf.mxu0
      %v2200 = vadd.f32 %v2151, %v2199
      %v2201 = vpop.f32.mrf.mxu0
      %v2202 = vadd.f32 %v2153, %v2201
      %2203 = vmatmul.bf16.gmra.mxu0 %v1070
      %v2204 = vpop.f32.mrf.mxu0
      %v2205 = vadd.f32 %v2156, %v2204
      %v2206 = vpop.f32.mrf.mxu0
      %v2207 = vadd.f32 %v2158, %v2206
      %2208 = vmatmul.bf16.gmra.mxu0 %v1113
      %v2209 = vpop.f32.mrf.mxu0
      %v2210 = vadd.f32 %v2161, %v2209
      %v2211 = vpop.f32.mrf.mxu0
      %v2212 = vadd.f32 %v2163, %v2211
      %2213 = vmatmul.bf16.gmra.mxu0 %v1156
      %v2214 = vpop.f32.mrf.mxu0
      %v2215 = vadd.f32 %v2166, %v2214
      %v2216 = vpop.f32.mrf.mxu0
      %v2217 = vadd.f32 %v2168, %v2216
      %2218 = vmatmul.bf16.gmra.mxu0 %v1199
      %v2219 = vpop.f32.mrf.mxu0
      %v2220 = vadd.f32 %v2171, %v2219
      %v2221 = vpop.f32.mrf.mxu0
      %v2222 = vadd.f32 %v2173, %v2221
      %2223 = vmatmul.bf16.gmra.mxu0 %v1966
      %v2224 = vpop.f32.mrf.mxu0
      %v2225 = vadd.f32 %v2176, %v2224
      %v2226 = vpop.f32.mrf.mxu0
      %v2227 = vadd.f32 %v2178, %v2226
      %2228 = vdwg.mxu0
      %2229 = vmatpush.bf16.msra.mxu0 %v2106
      %2230 = vmatpush.bf16.msra.mxu0 %v2105
      %2231 = vmatpush.bf16.msra.mxu0 %v2104
      %2232 = vmatpush.bf16.msra.mxu0 %v2103
      %2233 = vmatpush.bf16.msra.mxu0 %v2102
      %2234 = vmatpush.bf16.msra.mxu0 %v2101
      %2235 = vmatpush.bf16.msra.mxu0 %v2100
      %2236 = vmatpush.bf16.msra.mxu0 %v2099
      %2237 = vmatmul.bf16.gmra.mxu0 %v958
      %v2238 = vpop.f32.mrf.mxu0
      %v2239 = vadd.f32 %v2190, %v2238
      %v2240 = vpop.f32.mrf.mxu0
      %v2241 = vadd.f32 %v2192, %v2240
      %2242 = vmatmul.bf16.gmra.mxu0 %v1001
      %v2243 = vpop.f32.mrf.mxu0
      %v2244 = vadd.f32 %v2195, %v2243
      %v2245 = vpop.f32.mrf.mxu0
      %v2246 = vadd.f32 %v2197, %v2245
      %2247 = vmatmul.bf16.gmra.mxu0 %v1044
      %v2248 = vpop.f32.mrf.mxu0
      %v2249 = vadd.f32 %v2200, %v2248
      %v2250 = vpop.f32.mrf.mxu0
      %v2251 = vadd.f32 %v2202, %v2250
      %2252 = vmatmul.bf16.gmra.mxu0 %v1087
      %v2253 = vpop.f32.mrf.mxu0
      %v2254 = vadd.f32 %v2205, %v2253
      %v2255 = vpop.f32.mrf.mxu0
      %v2256 = vadd.f32 %v2207, %v2255
      %2257 = vmatmul.bf16.gmra.mxu0 %v1130
      %v2258 = vpop.f32.mrf.mxu0
      %v2259 = vadd.f32 %v2210, %v2258
      %v2260 = vpop.f32.mrf.mxu0
      %v2261 = vadd.f32 %v2212, %v2260
      %2262 = vmatmul.bf16.gmra.mxu0 %v1173
      %v2263 = vpop.f32.mrf.mxu0
      %v2264 = vadd.f32 %v2215, %v2263
      %v2265 = vpop.f32.mrf.mxu0
      %v2266 = vadd.f32 %v2217, %v2265
      %2267 = vmatmul.bf16.gmra.mxu0 %v1216
      %v2268 = vpop.f32.mrf.mxu0
      %v2269 = vadd.f32 %v2220, %v2268
      %v2270 = vpop.f32.mrf.mxu0
      %v2271 = vadd.f32 %v2222, %v2270
      %2272 = vmatmul.bf16.gmra.mxu0 %v1983
      %v2273 = vpop.f32.mrf.mxu0
      %v2274 = vadd.f32 %v2225, %v2273
      %v2275 = vpop.f32.mrf.mxu0
      %v2276 = vadd.f32 %v2227, %v2275
      %2277 = vdwg.mxu0
      %v2278 = vadd.f32 %v1830, %v2239
      %v2279 = vadd.f32 %v1832, %v2241
      %v2280 = vadd.f32 %v1835, %v2244
      %v2281 = vadd.f32 %v1837, %v2246
      %v2282 = vadd.f32 %v1840, %v2249
      %v2283 = vadd.f32 %v1842, %v2251
      %v2284 = vadd.f32 %v1845, %v2254
      %v2285 = vadd.f32 %v1847, %v2256
      %v2286 = vadd.f32 %v1850, %v2259
      %v2287 = vadd.f32 %v1852, %v2261
      %v2288 = vadd.f32 %v1855, %v2264
      %v2289 = vadd.f32 %v1857, %v2266
      %v2290 = vadd.f32 %v1860, %v2269
      %v2291 = vadd.f32 %v1862, %v2271
      %v2292 = vadd.f32 %v1865, %v2274
      %v2293 = vadd.f32 %v1867, %v2276
      %v2294 = vld [vmem:[%s4] sm:$0x1]
      %v2296 = vperm.slane %v2294, 0
      %v2298 = vmul.f32 %v2278, %v2296
      %v2299 = vmul.f32 %v2279, %v2296
      %v2300 = vmul.f32 %v2280, %v2296
      %v2301 = vmul.f32 %v2281, %v2296
      %v2302 = vmul.f32 %v2282, %v2296
      %v2303 = vmul.f32 %v2283, %v2296
      %v2304 = vmul.f32 %v2284, %v2296
      %v2305 = vmul.f32 %v2285, %v2296
      %v2306 = vmul.f32 %v2286, %v2296
      %v2307 = vmul.f32 %v2287, %v2296
      %v2308 = vmul.f32 %v2288, %v2296
      %v2309 = vmul.f32 %v2289, %v2296
      %v2310 = vmul.f32 %v2290, %v2296
      %v2311 = vmul.f32 %v2291, %v2296
      %v2312 = vmul.f32 %v2292, %v2296
      %v2313 = vmul.f32 %v2293, %v2296
      %v2314 = vld [vmem:[%s5] sm:$0x1]
      %v2316 = vperm.slane %v2314, 0
      %v2318 = vadd.f32 %v2298, %v2316
      %v2319 = vadd.f32 %v2299, %v2316
      %v2320 = vadd.f32 %v2300, %v2316
      %v2321 = vadd.f32 %v2301, %v2316
      %v2322 = vadd.f32 %v2302, %v2316
      %v2323 = vadd.f32 %v2303, %v2316
      %v2324 = vadd.f32 %v2304, %v2316
      %v2325 = vadd.f32 %v2305, %v2316
      %v2326 = vadd.f32 %v2306, %v2316
      %v2327 = vadd.f32 %v2307, %v2316
      %v2328 = vadd.f32 %v2308, %v2316
      %v2329 = vadd.f32 %v2309, %v2316
      %v2330 = vadd.f32 %v2310, %v2316
      %v2331 = vadd.f32 %v2311, %v2316
      %v2332 = vadd.f32 %v2312, %v2316
      %v2333 = vadd.f32 %v2313, %v2316
      %v2334 = vmax.f32 %v2318, 0.0
      %v2335 = vmax.f32 %v2319, 0.0
      %v2336 = vmax.f32 %v2320, 0.0
      %v2337 = vmax.f32 %v2321, 0.0
      %v2338 = vmax.f32 %v2322, 0.0
      %v2339 = vmax.f32 %v2323, 0.0
      %v2340 = vmax.f32 %v2324, 0.0
      %v2341 = vmax.f32 %v2325, 0.0
      %v2342 = vmax.f32 %v2326, 0.0
      %v2343 = vmax.f32 %v2327, 0.0
      %v2344 = vmax.f32 %v2328, 0.0
      %v2345 = vmax.f32 %v2329, 0.0
      %v2346 = vmax.f32 %v2330, 0.0
      %v2347 = vmax.f32 %v2331, 0.0
      %v2348 = vmax.f32 %v2332, 0.0
      %v2349 = vmax.f32 %v2333, 0.0
      %v2350 = vpack.c.bf16 %v2334, %v2334
      %v2351 = vpack.c.bf16 %v2335, %v2335
      %v2352 = vpack.c.bf16 %v2336, %v2336
      %v2353 = vpack.c.bf16 %v2337, %v2337
      %v2354 = vpack.c.bf16 %v2338, %v2338
      %v2355 = vpack.c.bf16 %v2339, %v2339
      %v2356 = vpack.c.bf16 %v2340, %v2340
      %v2357 = vpack.c.bf16 %v2341, %v2341
      %v2358 = vpack.c.bf16 %v2342, %v2342
      %v2359 = vpack.c.bf16 %v2343, %v2343
      %v2360 = vpack.c.bf16 %v2344, %v2344
      %v2361 = vpack.c.bf16 %v2345, %v2345
      %v2362 = vpack.c.bf16 %v2346, %v2346
      %v2363 = vpack.c.bf16 %v2347, %v2347
      %v2364 = vpack.c.bf16 %v2348, %v2348
      %v2365 = vpack.c.bf16 %v2349, %v2349
      %v2366 = vld [vmem:[%s6] sm:$0xf]
      %v2367 = vld [vmem:[%s6 + $0x4] sm:$0xf]
      %v2368 = vld [vmem:[%s6 + $0x8] sm:$0xf]
      %v2369 = vld [vmem:[%s6 + $0xc] sm:$0xf]
      %v2370 = vld [vmem:[%s6 + $0x10] sm:$0xf]
      %v2371 = vld [vmem:[%s6 + $0x14] sm:$0xf]
      %v2372 = vld [vmem:[%s6 + $0x18] sm:$0xf]
      %v2373 = vld [vmem:[%s6 + $0x1c] sm:$0xf]
      %v2374 = vld [vmem:[%s6 + $0x20] sm:$0xf]
      %v2375 = vld [vmem:[%s6 + $0x24] sm:$0xf]
      %v2376 = vld [vmem:[%s6 + $0x28] sm:$0xf]
      %v2377 = vld [vmem:[%s6 + $0x2c] sm:$0xf]
      %v2378 = vld [vmem:[%s6 + $0x30] sm:$0xf]
      %v2379 = vld [vmem:[%s6 + $0x34] sm:$0xf]
      %v2380 = vld [vmem:[%s6 + $0x38] sm:$0xf]
      %v2381 = vld [vmem:[%s6 + $0x3c] sm:$0xf]
      %v2382 = vld [vmem:[%s7] sm:$0x1]
      %v2384 = vperm.slane %v2382, 0
      %v2402 = vunpack.c.l.b16 %v2350
      %v2403 = vunpack.c.l.b16 %v2351
      %v2404 = vunpack.c.l.b16 %v2352
      %v2405 = vunpack.c.l.b16 %v2353
      %v2406 = vunpack.c.l.b16 %v2354
      %v2407 = vunpack.c.l.b16 %v2355
      %v2408 = vunpack.c.l.b16 %v2356
      %v2409 = vunpack.c.l.b16 %v2357
      %v2410 = vunpack.c.l.b16 %v2358
      %v2411 = vunpack.c.l.b16 %v2359
      %v2412 = vunpack.c.l.b16 %v2360
      %v2413 = vunpack.c.l.b16 %v2361
      %v2414 = vunpack.c.l.b16 %v2362
      %v2415 = vunpack.c.l.b16 %v2363
      %v2416 = vunpack.c.l.b16 %v2364
      %v2417 = vunpack.c.l.b16 %v2365
      %v2418 = vpack.c.b16 %v2403, %v2402
      %v2419 = vpack.c.b16 %v2405, %v2404
      %v2420 = vpack.c.b16 %v2407, %v2406
      %v2421 = vpack.c.b16 %v2409, %v2408
      %v2422 = vpack.c.b16 %v2411, %v2410
      %v2423 = vpack.c.b16 %v2413, %v2412
      %v2424 = vpack.c.b16 %v2415, %v2414
      %v2425 = vpack.c.b16 %v2417, %v2416
      %v2450 = vunpack.c.l.b16 %v2366
      %v2451 = vunpack.c.l.b16 %v2367
      %v2452 = vunpack.c.l.b16 %v2368
      %v2453 = vunpack.c.l.b16 %v2369
      %v2454 = vunpack.c.l.b16 %v2370
      %v2455 = vunpack.c.l.b16 %v2371
      %v2456 = vunpack.c.l.b16 %v2372
      %v2457 = vunpack.c.l.b16 %v2373
      %v2458 = vunpack.c.l.b16 %v2374
      %v2459 = vunpack.c.l.b16 %v2375
      %v2460 = vunpack.c.l.b16 %v2376
      %v2461 = vunpack.c.l.b16 %v2377
      %v2462 = vunpack.c.l.b16 %v2378
      %v2463 = vunpack.c.l.b16 %v2379
      %v2464 = vunpack.c.l.b16 %v2380
      %v2465 = vunpack.c.l.b16 %v2381
      %v2466 = vpack.c.b16 %v2451, %v2450
      %v2467 = vpack.c.b16 %v2453, %v2452
      %v2468 = vpack.c.b16 %v2455, %v2454
      %v2469 = vpack.c.b16 %v2457, %v2456
      %v2470 = vpack.c.b16 %v2459, %v2458
      %v2471 = vpack.c.b16 %v2461, %v2460
      %v2472 = vpack.c.b16 %v2463, %v2462
      %v2473 = vpack.c.b16 %v2465, %v2464
      %2482 = vmatpush.bf16.msra.mxu0 %v2473
      %2483 = vmatpush.bf16.msra.mxu0 %v2472
      %2484 = vmatpush.bf16.msra.mxu0 %v2471
      %2485 = vmatpush.bf16.msra.mxu0 %v2470
      %2486 = vmatpush.bf16.msra.mxu0 %v2469
      %2487 = vmatpush.bf16.msra.mxu0 %v2468
      %2488 = vmatpush.bf16.msra.mxu0 %v2467
      %2489 = vmatpush.bf16.msra.mxu0 %v2466
      %2490 = vmatmul.bf16.gmra.mxu0 %v2418
      %v2491 = vpop.f32.mrf.mxu0
      %v2492 = vadd.f32 %v2384, %v2491
      %v2493 = vpop.f32.mrf.mxu0
      %v2494 = vadd.f32 %v2384, %v2493
      %2495 = vmatmul.bf16.gmra.mxu0 %v2419
      %v2496 = vpop.f32.mrf.mxu0
      %v2497 = vadd.f32 %v2384, %v2496
      %v2498 = vpop.f32.mrf.mxu0
      %v2499 = vadd.f32 %v2384, %v2498
      %2500 = vmatmul.bf16.gmra.mxu0 %v2420
      %v2501 = vpop.f32.mrf.mxu0
      %v2502 = vadd.f32 %v2384, %v2501
      %v2503 = vpop.f32.mrf.mxu0
      %v2504 = vadd.f32 %v2384, %v2503
      %2505 = vmatmul.bf16.gmra.mxu0 %v2421
      %v2506 = vpop.f32.mrf.mxu0
      %v2507 = vadd.f32 %v2384, %v2506
      %v2508 = vpop.f32.mrf.mxu0
      %v2509 = vadd.f32 %v2384, %v2508
      %2510 = vmatmul.bf16.gmra.mxu0 %v2422
      %v2511 = vpop.f32.mrf.mxu0
      %v2512 = vadd.f32 %v2384, %v2511
      %v2513 = vpop.f32.mrf.mxu0
      %v2514 = vadd.f32 %v2384, %v2513
      %2515 = vmatmul.bf16.gmra.mxu0 %v2423
      %v2516 = vpop.f32.mrf.mxu0
      %v2517 = vadd.f32 %v2384, %v2516
      %v2518 = vpop.f32.mrf.mxu0
      %v2519 = vadd.f32 %v2384, %v2518
      %2520 = vmatmul.bf16.gmra.mxu0 %v2424
      %v2521 = vpop.f32.mrf.mxu0
      %v2522 = vadd.f32 %v2384, %v2521
      %v2523 = vpop.f32.mrf.mxu0
      %v2524 = vadd.f32 %v2384, %v2523
      %2525 = vmatmul.bf16.gmra.mxu0 %v2425
      %v2526 = vpop.f32.mrf.mxu0
      %v2527 = vadd.f32 %v2384, %v2526
      %v2528 = vpop.f32.mrf.mxu0
      %v2529 = vadd.f32 %v2384, %v2528
      %2530 = vdwg.mxu0
      %v2531 = vpack.c.bf16 %v2492, %v2492
      %v2532 = vpack.c.bf16 %v2494, %v2494
      %v2533 = vpack.c.bf16 %v2497, %v2497
      %v2534 = vpack.c.bf16 %v2499, %v2499
      %v2535 = vpack.c.bf16 %v2502, %v2502
      %v2536 = vpack.c.bf16 %v2504, %v2504
      %v2537 = vpack.c.bf16 %v2507, %v2507
      %v2538 = vpack.c.bf16 %v2509, %v2509
      %v2539 = vpack.c.bf16 %v2512, %v2512
      %v2540 = vpack.c.bf16 %v2514, %v2514
      %v2541 = vpack.c.bf16 %v2517, %v2517
      %v2542 = vpack.c.bf16 %v2519, %v2519
      %v2543 = vpack.c.bf16 %v2522, %v2522
      %v2544 = vpack.c.bf16 %v2524, %v2524
      %v2545 = vpack.c.bf16 %v2527, %v2527
      %v2546 = vpack.c.bf16 %v2529, %v2529
      %2547 = vst [vmem:[%s416] sm:$0xf] %v2531
      %2548 = vst [vmem:[%s416 + $0x4] sm:$0xf] %v2532
      %2549 = vst [vmem:[%s416 + $0x8] sm:$0xf] %v2533
      %2550 = vst [vmem:[%s416 + $0xc] sm:$0xf] %v2534
      %2551 = vst [vmem:[%s416 + $0x10] sm:$0xf] %v2535
      %2552 = vst [vmem:[%s416 + $0x14] sm:$0xf] %v2536
      %2553 = vst [vmem:[%s416 + $0x18] sm:$0xf] %v2537
      %2554 = vst [vmem:[%s416 + $0x1c] sm:$0xf] %v2538
      %2555 = vst [vmem:[%s416 + $0x20] sm:$0xf] %v2539
      %2556 = vst [vmem:[%s416 + $0x24] sm:$0xf] %v2540
      %2557 = vst [vmem:[%s416 + $0x28] sm:$0xf] %v2541
      %2558 = vst [vmem:[%s416 + $0x2c] sm:$0xf] %v2542
      %2559 = vst [vmem:[%s416 + $0x30] sm:$0xf] %v2543
      %2560 = vst [vmem:[%s416 + $0x34] sm:$0xf] %v2544
      %2561 = vst [vmem:[%s416 + $0x38] sm:$0xf] %v2545
      %2562 = vst [vmem:[%s416 + $0x3c] sm:$0xf] %v2546
      %s2563 = smul.u32 8, %s24
      %p2564 = scmp.lt.s32.totalorder %s23, 1
      %s2565 = scalar_select %p2564, %s23, 1
      %p2566 = scmp.lt.s32.totalorder %s2563, 15
      %s2567 = scalar_select %p2566, %s2563, 15
      %s2568 = smul.addr %s2567, 2
      %s2569 = smul.addr %s2565, 32
      %s2570 = sadd.s32 %s2568, %s2569
      %s2571 = smul.addr %s2570, 4
      %s2572 = scalar_lea.vmem %s8, %s2571
      // Predicated region
      $region53: #{decoder_forward.4} parent=51 // pred_check
        %p2573 = pneg %p240
      $region54: #{decoder_forward.4} parent=51 // pred_check_branch
        %2575 = sbr.rel (%p2573) target = $region56
      $region55: #{decoder_forward.4} parent=51 // pred_region
        %s2576 = smul.u32 8, %s24
      $region56: #{decoder_forward.4} parent=51 // pred_fallthru
        _
    $region52: #{decoder_forward.4} parent=5 // pred_fallthru
      _
    %p2577 = scmp.le.s32.totalorder 2, %s14
    // Predicated region
    $region57: #{decoder_forward.4} parent=5 // pred_check
      %p2578 = pneg %p2577
    $region58: #{decoder_forward.4} parent=5 // pred_check_branch
      %2580 = sbr.rel (%p2578) target = $region60
    $region59: #{decoder_forward.4} parent=5 // pred_region
      %s2581 = ssub.s32 %s14, 2
      // Predicated region
      $region61: #{decoder_forward.4} parent=59 // pred_check
        %p2582 = pneg %p246
      $region62: #{decoder_forward.4} parent=59 // pred_check_branch
        %2584 = sbr.rel (%p2582) target = $region64
      $region63: #{decoder_forward.4} parent=59 // pred_region
        %s2585 = smul.u32 8, %s26
        %p2586 = scmp.lt.s32.totalorder %s25, 1
        %s2587 = scalar_select %p2586, %s25, 1
        %p2588 = scmp.lt.s32.totalorder %s2585, 15
        %s2589 = scalar_select %p2588, %s2585, 15
        %s2590 = smul.addr %s2589, 2
        %s2591 = smul.addr %s2587, 32
        %s2592 = sadd.s32 %s2590, %s2591
        %s2593 = smul.addr %s2592, 4
        %s2594 = scalar_lea.vmem %s8, %s2593
      $region64: #{decoder_forward.4} parent=59 // pred_fallthru
        _
    $region60: #{decoder_forward.4} parent=5 // pred_fallthru
      _
  $region6: #{decoder_forward.4} parent=0 // loop_footer
    %s18 = sadd.s32 1, %s14
  $region7: #{decoder_forward.4} parent=0 // loop_footer_branch
    %13 = sbr.rel target = $region3
  $region8: #{decoder_forward.4} parent=0 // loop_exit
    _

</llo_original>
